<compile_context>
chip_gen: v6e
topology: v6e:2x2x1
jax: 0.10.0
libtpu: 0.0.40
codegen_flags: <defaults>
</compile_context>

<pallas_src>
import functools

import jax
import jax.numpy as jnp
from jax.experimental import pallas as pl
from jax.experimental.pallas import tpu as pltpu

EPS = 1e-5


# ---------------------------------------------------------------------------
# In-kernel helper: (affine BN) -> ReLU -> 3x3 "same" conv on one image.
# ---------------------------------------------------------------------------
def _bn_relu_conv_branch(x, scale, shift, w_ref, bias, edge_l, edge_r,
                         pad_ref, H, W):
    """Channels-first, flattened-pixel layout.

    x      : (C, H*W)            raw/previous activations (channels on sublanes)
    scale  : (C, 1)   f32        folded BN scale  (gamma / sqrt(var + eps))
    shift  : (C, 1)   f32        folded BN shift  (beta - mean * scale)
    w_ref  : (9, Cout, C) bf16   per-tap conv weights (t = ky*3 + kx)
    bias   : (Cout, 1) f32
    edge_l : (1, H*W)  bf16      0 where column x == 0,   else 1
    edge_r : (1, H*W)  bf16      0 where column x == W-1, else 1
    pad_ref: (C, H*W + 2*(W+1)) bf16 VMEM scratch (padded activation)
    returns (Cout, H*W) f32
    """
    C, HW = x.shape
    PAD = W + 1

    # Zero only the halo strips (interior is fully overwritten below).  Done
    # every call: cheap, and correct regardless of how the parallel grid axis
    # is sharded across TensorCores (scratch is per-core and uninitialized).
    zeros_halo = jnp.zeros((C, PAD), pad_ref.dtype)
    pad_ref[:, pl.ds(0, PAD)] = zeros_halo
    pad_ref[:, pl.ds(PAD + HW, PAD)] = zeros_halo

    # BN + ReLU (lane dense), written bf16 into the interior of the scratch.
    a = jnp.maximum(x * scale + shift, 0.0)
    pad_ref[:, pl.ds(PAD, HW)] = a.astype(pad_ref.dtype)

    # Nine accumulating MXU dots straight off the padded activation.
    # Vertical out-of-range taps read the zero halo lanes; horizontal
    # out-of-range taps are zeroed with the multiplicative edge masks.
    acc = None
    for t in range(9):
        dy, dx = t // 3, t % 3
        off = PAD + (dy - 1) * W + (dx - 1)          # static Python int
        v = pad_ref[:, pl.ds(off, HW)]               # (C, HW) bf16
        if dx == 0:          # reads column x-1 -> invalid at x == 0
            v = v * edge_l
        elif dx == 2:        # reads column x+1 -> invalid at x == W-1
            v = v * edge_r
        p = jnp.dot(w_ref[t], v, preferred_element_type=jnp.float32)
        acc = p if acc is None else acc + p
    return acc + bias                                 # (Cout, HW) f32


# ---------------------------------------------------------------------------
# Stage 1: fused  [BN0->ReLU->conv1]  and  [BNsc->ReLU->conv_sc]  + h1 stats.
# ---------------------------------------------------------------------------
def _stage1_kernel(H, W,
                   x_ref, s0_ref, t0_ref, w0_ref, b0_ref,
                   ssc_ref, tsc_ref, wsc_ref, bsc_ref, edge_ref,
                   h1_ref, sc_ref, stats_ref,
                   pad0_ref, padsc_ref):
    x = x_ref[0]                                      # (Cin, HW)
    edge_l = edge_ref[0:1, :]
    edge_r = edge_ref[1:2, :]

    # double_conv first half
    h1 = _bn_relu_conv_branch(x, s0_ref[...], t0_ref[...], w0_ref, b0_ref[...],
                              edge_l, edge_r, pad0_ref, H, W)
    # Partial batch statistics of h1 (for BN1), computed in f32 before the
    # bf16 down-cast, merged into a single (Cout, 2) output stream.
    stats_ref[0] = jnp.concatenate(
        [jnp.sum(h1, axis=1, keepdims=True),
         jnp.sum(h1 * h1, axis=1, keepdims=True)], axis=1)
    h1_ref[0] = h1.astype(h1_ref.dtype)

    # shortcut branch — reuses the already-loaded x tile; separate scratch so
    # its activation build can overlap the first branch's matmuls.
    sc = _bn_relu_conv_branch(x, ssc_ref[...], tsc_ref[...], wsc_ref,
                              bsc_ref[...], edge_l, edge_r, padsc_ref, H, W)
    sc_ref[0] = sc.astype(sc_ref.dtype)


# ---------------------------------------------------------------------------
# Stage 2: fused  BN1 -> ReLU -> conv2 -> + shortcut.
# ---------------------------------------------------------------------------
def _stage2_kernel(H, W,
                   h1_ref, s1_ref, t1_ref, w2_ref, b2_ref, res_ref, edge_ref,
                   out_ref, pad_ref):
    h = h1_ref[0]                                     # (Cout, HW) bf16
    edge_l = edge_ref[0:1, :]
    edge_r = edge_ref[1:2, :]

    y = _bn_relu_conv_branch(h, s1_ref[...], t1_ref[...], w2_ref, b2_ref[...],
                             edge_l, edge_r, pad_ref, H, W)
    out_ref[0] = y + res_ref[0].astype(jnp.float32)


# ---------------------------------------------------------------------------
# Host-side packing helpers.
# ---------------------------------------------------------------------------
def _pack_weight_taps(w):
    """PyTorch (Cout, Cin, 3, 3) -> (9, Cout, Cin) bf16, tap-major."""
    cout, cin = w.shape[0], w.shape[1]
    return jnp.transpose(w, (2, 3, 0, 1)).reshape(9, cout, cin).astype(jnp.bfloat16)


def _fold_bn(gamma, beta, mean, var):
    """Fold training-mode BN into per-channel (C,1) scale/shift (f32)."""
    scale = (gamma / jnp.sqrt(var + EPS)).astype(jnp.float32)
    shift = (beta.astype(jnp.float32) - mean.astype(jnp.float32) * scale)
    return scale.reshape(-1, 1), shift.reshape(-1, 1)


_COMPILER_PARAMS = pltpu.CompilerParams(
    dimension_semantics=("parallel",),           # v7x: 2 TCs share the batch axis
    vmem_limit_bytes=32 * 1024 * 1024,
)


def _stage1_call(x, s0, t0, w0, b0, ssc, tsc, wsc, bsc, edge, H, W, cout):
    N, cin, HW = x.shape
    PAD = W + 1
    kernel = functools.partial(_stage1_kernel, H, W)
    grid_spec = pltpu.PrefetchScalarGridSpec(
        num_scalar_prefetch=0,
        grid=(N,),
        in_specs=[
            pl.BlockSpec((1, cin, HW), lambda n: (n, 0, 0)),       # x (no pad)
            pl.BlockSpec((cin, 1), lambda n: (0, 0)),              # scale0
            pl.BlockSpec((cin, 1), lambda n: (0, 0)),              # shift0
            pl.BlockSpec((9, cout, cin), lambda n: (0, 0, 0)),     # w1 (bf16)
            pl.BlockSpec((cout, 1), lambda n: (0, 0)),             # b1
            pl.BlockSpec((cin, 1), lambda n: (0, 0)),              # scale_sc
            pl.BlockSpec((cin, 1), lambda n: (0, 0)),              # shift_sc
            pl.BlockSpec((9, cout, cin), lambda n: (0, 0, 0)),     # wsc (bf16)
            pl.BlockSpec((cout, 1), lambda n: (0, 0)),             # bsc
            pl.BlockSpec((2, HW), lambda n: (0, 0)),               # edge masks
        ],
        out_specs=[
            pl.BlockSpec((1, cout, HW), lambda n: (n, 0, 0)),      # h1 (bf16)
            pl.BlockSpec((1, cout, HW), lambda n: (n, 0, 0)),      # shortcut (bf16)
            pl.BlockSpec((1, cout, 2), lambda n: (n, 0, 0)),       # [sum, sum_sq]
        ],
        scratch_shapes=[
            pltpu.VMEM((cin, HW + 2 * PAD), jnp.bfloat16),         # branch-1 pad
            pltpu.VMEM((cin, HW + 2 * PAD), jnp.bfloat16),         # shortcut pad
        ],
    )
    out_shapes = (
        jax.ShapeDtypeStruct((N, cout, HW), jnp.bfloat16),
        jax.ShapeDtypeStruct((N, cout, HW), jnp.bfloat16),
        jax.ShapeDtypeStruct((N, cout, 2), jnp.float32),
    )
    return pl.pallas_call(
        kernel, out_shape=out_shapes, grid_spec=grid_spec,
        compiler_params=_COMPILER_PARAMS,
    )(x, s0, t0, w0, b0, ssc, tsc, wsc, bsc, edge)


def _stage2_call(h1, s1, t1, w2, b2, res, edge, H, W, cout):
    N, cmid, HW = h1.shape
    PAD = W + 1
    kernel = functools.partial(_stage2_kernel, H, W)
    grid_spec = pltpu.PrefetchScalarGridSpec(
        num_scalar_prefetch=0,
        grid=(N,),
        in_specs=[
            pl.BlockSpec((1, cmid, HW), lambda n: (n, 0, 0)),      # h1 (bf16)
            pl.BlockSpec((cmid, 1), lambda n: (0, 0)),             # scale1
            pl.BlockSpec((cmid, 1), lambda n: (0, 0)),             # shift1
            pl.BlockSpec((9, cout, cmid), lambda n: (0, 0, 0)),    # w2 (bf16)
            pl.BlockSpec((cout, 1), lambda n: (0, 0)),             # b2
            pl.BlockSpec((1, cout, HW), lambda n: (n, 0, 0)),      # residual (bf16)
            pl.BlockSpec((2, HW), lambda n: (0, 0)),               # edge masks
        ],
        out_specs=pl.BlockSpec((1, cout, HW), lambda n: (n, 0, 0)),
        scratch_shapes=[
            pltpu.VMEM((cmid, HW + 2 * PAD), jnp.bfloat16),
        ],
    )
    return pl.pallas_call(
        kernel,
        out_shape=jax.ShapeDtypeStruct((N, cout, HW), jnp.float32),
        grid_spec=grid_spec,
        compiler_params=_COMPILER_PARAMS,
    )(h1, s1, t1, w2, b2, res, edge)


@jax.jit
def conv_residual_forward(x_nchw, params):
    """Pallas implementation of Conv_residual.forward. Input/output: NCHW."""
    N, Cin, H, W = x_nchw.shape
    HW = H * W
    Cout = params["w1"].shape[0]

    # Training-mode BatchNorm2d statistics of x (shared by bn0 and bn_sc),
    # computed on the original un-padded, un-copied array.
    mean_x = jnp.mean(x_nchw, axis=(0, 2, 3))
    var_x = jnp.mean((x_nchw - mean_x[None, :, None, None]) ** 2, axis=(0, 2, 3))

    s0, t0 = _fold_bn(params["bn0_g"], params["bn0_b"], mean_x, var_x)
    ssc, tsc = _fold_bn(params["bnsc_g"], params["bnsc_b"], mean_x, var_x)

    w0 = _pack_weight_taps(params["w1"])
    wsc = _pack_weight_taps(params["wsc"])
    b0 = params["b1"].reshape(Cout, 1).astype(jnp.float32)
    bsc = params["bsc"].reshape(Cout, 1).astype(jnp.float32)

    # Horizontal-boundary masks for the shifted-slice taps (constant-folded).
    cols = jnp.arange(HW, dtype=jnp.int32) % W
    edge = jnp.stack([(cols != 0), (cols != W - 1)]).astype(jnp.bfloat16)

    # Channels-first flattened-pixel layout: reshape only, no transpose/pad.
    x = x_nchw.reshape(N, Cin, HW)

    h1, sc, hstats = _stage1_call(x, s0, t0, w0, b0, ssc, tsc, wsc, bsc,
                                  edge, H, W, Cout)

    # BN1 batch statistics from the fused per-image partial sums (biased var).
    # TODO(synk): for very large N*H*W switch to shifted/Welford accumulation
    # to avoid cancellation in E[h^2] - mean^2.
    cnt = float(N * HW)
    mean_h = jnp.sum(hstats[:, :, 0], axis=0) / cnt
    ex2_h = jnp.sum(hstats[:, :, 1], axis=0) / cnt
    var_h = jnp.maximum(ex2_h - mean_h * mean_h, 0.0)

    s1, t1 = _fold_bn(params["bn1_g"], params["bn1_b"], mean_h, var_h)
    w2 = _pack_weight_taps(params["w2"])
    b2 = params["b2"].reshape(Cout, 1).astype(jnp.float32)

    out = _stage2_call(h1, s1, t1, w2, b2, sc, edge, H, W, Cout)
    return out.reshape(N, Cout, H, W)


# ----------------------- pure-JAX reference (for checking) ------------------
def _ref_bn_relu_conv(x, g, b, w, bias, eps=EPS):
    mean = jnp.mean(x, axis=(0, 1, 2))
    var = jnp.mean((x - mean) ** 2, axis=(0, 1, 2))
    a = jnp.maximum((x - mean) / jnp.sqrt(var + eps) * g + b, 0.0)
    y = jax.lax.conv_general_dilated(
        a, jnp.transpose(w, (2, 3, 1, 0)), (1, 1), "SAME",
        dimension_numbers=("NHWC", "HWIO", "NHWC"))
    return y + bias[None, None, None, :]


def _reference(x_nchw, p):
    x = jnp.transpose(x_nchw, (0, 2, 3, 1)).astype(jnp.float32)
    sc = _ref_bn_relu_conv(x, p["bnsc_g"], p["bnsc_b"], p["wsc"], p["bsc"])
    h1 = _ref_bn_relu_conv(x, p["bn0_g"], p["bn0_b"], p["w1"], p["b1"])
    o = _ref_bn_relu_conv(h1, p["bn1_g"], p["bn1_b"], p["w2"], p["b2"]) + sc
    return jnp.transpose(o, (0, 3, 1, 2))


# ------------------------------------ main ----------------------------------
if __name__ == "__main__":
    N, Cin, Cout, H, W = 2, 4, 8, 16, 16

    key = jax.random.PRNGKey(0)
    ks = jax.random.split(key, 10)
    x_nchw = jax.random.normal(ks[0], (N, Cin, H, W), jnp.float32)

    def conv_init(k, cout, cin):
        kw, kb = jax.random.split(k)
        bound = 1.0 / (cin * 9.0) ** 0.5
        w = jax.random.uniform(kw, (cout, cin, 3, 3), jnp.float32, -bound, bound)
        b = jax.random.uniform(kb, (cout,), jnp.float32, -bound, bound)
        return w, b

    w1, b1 = conv_init(ks[1], Cout, Cin)     # double_conv conv #1
    w2, b2 = conv_init(ks[2], Cout, Cout)    # double_conv conv #2
    wsc, bsc = conv_init(ks[3], Cout, Cin)   # shortcut conv

    params = {
        "w1": w1, "b1": b1, "w2": w2, "b2": b2, "wsc": wsc, "bsc": bsc,
        "bn0_g": jax.random.uniform(ks[4], (Cin,), jnp.float32, 0.5, 1.5),
        "bn0_b": jax.random.uniform(ks[5], (Cin,), jnp.float32, -0.5, 0.5),
        "bn1_g": jax.random.uniform(ks[6], (Cout,), jnp.float32, 0.5, 1.5),
        "bn1_b": jax.random.uniform(ks[7], (Cout,), jnp.float32, -0.5, 0.5),
        "bnsc_g": jax.random.uniform(ks[8], (Cin,), jnp.float32, 0.5, 1.5),
        "bnsc_b": jax.random.uniform(ks[9], (Cin,), jnp.float32, -0.5, 0.5),
    }

    out = conv_residual_forward(x_nchw, params)
    out = jax.block_until_ready(out)

    ref = _reference(x_nchw, params)
    assert out.shape == (N, Cout, H, W), out.shape
    # bf16 MXU operands + bf16 inter-stage storage (f32 accumulation) ->
    # tolerance looser than pure-f32; structural bugs would give O(0.3+).
    max_err = float(jnp.max(jnp.abs(out - ref)))
    assert max_err < 6e-2, max_err

    print("KERNEL_OK")
</pallas_src>

<mosaic_0001>
module attributes {stable_mosaic.version = 11 : i64} {
  func.func @_stage1_kernel(%arg0: i32, %arg1: memref<1x4x256xf32, #tpu.memory_space<vmem>>, %arg2: memref<4x1xf32, #tpu.memory_space<vmem>>, %arg3: memref<4x1xf32, #tpu.memory_space<vmem>>, %arg4: memref<9x8x4xbf16, #tpu.memory_space<vmem>>, %arg5: memref<8x1xf32, #tpu.memory_space<vmem>>, %arg6: memref<4x1xf32, #tpu.memory_space<vmem>>, %arg7: memref<4x1xf32, #tpu.memory_space<vmem>>, %arg8: memref<9x8x4xbf16, #tpu.memory_space<vmem>>, %arg9: memref<8x1xf32, #tpu.memory_space<vmem>>, %arg10: memref<2x256xbf16, #tpu.memory_space<vmem>>, %arg11: memref<1x8x256xbf16, #tpu.memory_space<vmem>>, %arg12: memref<1x8x256xbf16, #tpu.memory_space<vmem>>, %arg13: memref<1x8x2xf32, #tpu.memory_space<vmem>>, %arg14: memref<4x290xbf16, #tpu.memory_space<vmem>>, %arg15: memref<4x290xbf16, #tpu.memory_space<vmem>>) attributes {dimension_semantics = [#tpu.dimension_semantics<parallel>], iteration_bounds = array<i64: 2>, scalar_prefetch = 0 : i64, scratch_operands = 2 : i64, tpu.core_type = #tpu.core_type<tc>, window_params = [{transform_indices = @transform_0, window_bounds = array<i64: 1, 4, 256>}, {pipeline_mode = #tpu.pipeline_mode<synchronous>, transform_indices = @transform_1, window_bounds = array<i64: 4, 1>}, {pipeline_mode = #tpu.pipeline_mode<synchronous>, transform_indices = @transform_2, window_bounds = array<i64: 4, 1>}, {pipeline_mode = #tpu.pipeline_mode<synchronous>, transform_indices = @transform_3, window_bounds = array<i64: 9, 8, 4>}, {pipeline_mode = #tpu.pipeline_mode<synchronous>, transform_indices = @transform_4, window_bounds = array<i64: 8, 1>}, {pipeline_mode = #tpu.pipeline_mode<synchronous>, transform_indices = @transform_5, window_bounds = array<i64: 4, 1>}, {pipeline_mode = #tpu.pipeline_mode<synchronous>, transform_indices = @transform_6, window_bounds = array<i64: 4, 1>}, {pipeline_mode = #tpu.pipeline_mode<synchronous>, transform_indices = @transform_7, window_bounds = array<i64: 9, 8, 4>}, {pipeline_mode = #tpu.pipeline_mode<synchronous>, transform_indices = @transform_8, window_bounds = array<i64: 8, 1>}, {pipeline_mode = #tpu.pipeline_mode<synchronous>, transform_indices = @transform_9, window_bounds = array<i64: 2, 256>}, {transform_indices = @transform_10, window_bounds = array<i64: 1, 8, 256>}, {transform_indices = @transform_11, window_bounds = array<i64: 1, 8, 256>}, {transform_indices = @transform_12, window_bounds = array<i64: 1, 8, 2>}]} {
    %c0 = arith.constant 0 : index
    %c0_0 = arith.constant 0 : index
    %c0_1 = arith.constant 0 : index
    %0 = vector.load %arg1[%c0, %c0_0, %c0_1] : memref<1x4x256xf32, #tpu.memory_space<vmem>>, vector<1x4x256xf32>
    %1 = vector.shape_cast %0 : vector<1x4x256xf32> to vector<4x256xf32>
    %c0_2 = arith.constant 0 : index
    %c0_3 = arith.constant 0 : index
    %2 = vector.load %arg10[%c0_2, %c0_3] : memref<2x256xbf16, #tpu.memory_space<vmem>>, vector<1x256xbf16>
    %c1 = arith.constant 1 : index
    %c0_4 = arith.constant 0 : index
    %3 = vector.load %arg10[%c1, %c0_4] : memref<2x256xbf16, #tpu.memory_space<vmem>>, vector<1x256xbf16>
    %c0_5 = arith.constant 0 : index
    %c0_6 = arith.constant 0 : index
    %4 = vector.load %arg2[%c0_5, %c0_6] : memref<4x1xf32, #tpu.memory_space<vmem>>, vector<4x1xf32>
    %c0_7 = arith.constant 0 : index
    %c0_8 = arith.constant 0 : index
    %5 = vector.load %arg3[%c0_7, %c0_8] : memref<4x1xf32, #tpu.memory_space<vmem>>, vector<4x1xf32>
    %c0_9 = arith.constant 0 : index
    %c0_10 = arith.constant 0 : index
    %6 = vector.load %arg5[%c0_9, %c0_10] : memref<8x1xf32, #tpu.memory_space<vmem>>, vector<8x1xf32>
    %cst = arith.constant 0.000000e+00 : bf16
    %7 = vector.broadcast %cst : bf16 to vector<4x17xbf16>
    %c0_11 = arith.constant 0 : index
    %c0_12 = arith.constant 0 : index
    %8 = vector.load %arg14[%c0_11, %c0_12] : memref<4x290xbf16, #tpu.memory_space<vmem>>, vector<4x17xbf16>
    tpu.vector_store %arg14[%c0_11, %c0_12], %7 {strides = array<i32>} : memref<4x290xbf16, #tpu.memory_space<vmem>>, vector<4x17xbf16>,
    %c0_13 = arith.constant 0 : index
    %c273 = arith.constant 273 : index
    %9 = vector.load %arg14[%c0_13, %c273] : memref<4x290xbf16, #tpu.memory_space<vmem>>, vector<4x17xbf16>
    tpu.vector_store %arg14[%c0_13, %c273], %7 {strides = array<i32>} : memref<4x290xbf16, #tpu.memory_space<vmem>>, vector<4x17xbf16>,
    %10 = vector.broadcast %4 : vector<4x1xf32> to vector<4x256xf32>
    %11 = arith.mulf %1, %10 : vector<4x256xf32>
    %12 = vector.broadcast %5 : vector<4x1xf32> to vector<4x256xf32>
    %13 = arith.addf %11, %12 : vector<4x256xf32>
    %cst_14 = arith.constant 0.000000e+00 : f32
    %14 = vector.broadcast %cst_14 : f32 to vector<4x256xf32>
    %15 = arith.maximumf %13, %14 : vector<4x256xf32>
    %16 = arith.truncf %15 : vector<4x256xf32> to vector<4x256xbf16>
    %c0_15 = arith.constant 0 : index
    %c17 = arith.constant 17 : index
    %17 = vector.load %arg14[%c0_15, %c17] : memref<4x290xbf16, #tpu.memory_space<vmem>>, vector<4x256xbf16>
    tpu.vector_store %arg14[%c0_15, %c17], %16 {strides = array<i32>} : memref<4x290xbf16, #tpu.memory_space<vmem>>, vector<4x256xbf16>,
    %c0_16 = arith.constant 0 : index
    %c0_17 = arith.constant 0 : index
    %18 = vector.load %arg14[%c0_16, %c0_17] : memref<4x290xbf16, #tpu.memory_space<vmem>>, vector<4x256xbf16>
    %19 = vector.broadcast %2 : vector<1x256xbf16> to vector<4x256xbf16>
    %20 = arith.mulf %18, %19 : vector<4x256xbf16>
    %c0_18 = arith.constant 0 : index
    %c0_19 = arith.constant 0 : index
    %c0_20 = arith.constant 0 : index
    %21 = vector.load %arg4[%c0_18, %c0_19, %c0_20] : memref<9x8x4xbf16, #tpu.memory_space<vmem>>, vector<1x8x4xbf16>
    %22 = vector.shape_cast %21 : vector<1x8x4xbf16> to vector<8x4xbf16>
    %cst_21 = arith.constant dense<0.000000e+00> : vector<8x256xf32>
    %23 = tpu.matmul %22, %20, %cst_21 {dimension_numbers = #tpu.dot_dimension_numbers<[1], [0], [0], [1], [0, 0, 1, 1], [], []>} : vector<8x4xbf16>, vector<4x256xbf16>, vector<8x256xf32> -> vector<8x256xf32>
    %c0_22 = arith.constant 0 : index
    %c1_23 = arith.constant 1 : index
    %24 = vector.load %arg14[%c0_22, %c1_23] : memref<4x290xbf16, #tpu.memory_space<vmem>>, vector<4x256xbf16>
    %c1_24 = arith.constant 1 : index
    %c0_25 = arith.constant 0 : index
    %c0_26 = arith.constant 0 : index
    %25 = vector.load %arg4[%c1_24, %c0_25, %c0_26] : memref<9x8x4xbf16, #tpu.memory_space<vmem>>, vector<1x8x4xbf16>
    %26 = vector.shape_cast %25 : vector<1x8x4xbf16> to vector<8x4xbf16>
    %cst_27 = arith.constant dense<0.000000e+00> : vector<8x256xf32>
    %27 = tpu.matmul %26, %24, %cst_27 {dimension_numbers = #tpu.dot_dimension_numbers<[1], [0], [0], [1], [0, 0, 1, 1], [], []>} : vector<8x4xbf16>, vector<4x256xbf16>, vector<8x256xf32> -> vector<8x256xf32>
    %28 = arith.addf %23, %27 : vector<8x256xf32>
    %c0_28 = arith.constant 0 : index
    %c2 = arith.constant 2 : index
    %29 = vector.load %arg14[%c0_28, %c2] : memref<4x290xbf16, #tpu.memory_space<vmem>>, vector<4x256xbf16>
    %30 = vector.broadcast %3 : vector<1x256xbf16> to vector<4x256xbf16>
    %31 = arith.mulf %29, %30 : vector<4x256xbf16>
    %c2_29 = arith.constant 2 : index
    %c0_30 = arith.constant 0 : index
    %c0_31 = arith.constant 0 : index
    %32 = vector.load %arg4[%c2_29, %c0_30, %c0_31] : memref<9x8x4xbf16, #tpu.memory_space<vmem>>, vector<1x8x4xbf16>
    %33 = vector.shape_cast %32 : vector<1x8x4xbf16> to vector<8x4xbf16>
    %cst_32 = arith.constant dense<0.000000e+00> : vector<8x256xf32>
    %34 = tpu.matmul %33, %31, %cst_32 {dimension_numbers = #tpu.dot_dimension_numbers<[1], [0], [0], [1], [0, 0, 1, 1], [], []>} : vector<8x4xbf16>, vector<4x256xbf16>, vector<8x256xf32> -> vector<8x256xf32>
    %35 = arith.addf %28, %34 : vector<8x256xf32>
    %c0_33 = arith.constant 0 : index
    %c16 = arith.constant 16 : index
    %36 = vector.load %arg14[%c0_33, %c16] : memref<4x290xbf16, #tpu.memory_space<vmem>>, vector<4x256xbf16>
    %37 = vector.broadcast %2 : vector<1x256xbf16> to vector<4x256xbf16>
    %38 = arith.mulf %36, %37 : vector<4x256xbf16>
    %c3 = arith.constant 3 : index
    %c0_34 = arith.constant 0 : index
    %c0_35 = arith.constant 0 : index
    %39 = vector.load %arg4[%c3, %c0_34, %c0_35] : memref<9x8x4xbf16, #tpu.memory_space<vmem>>, vector<1x8x4xbf16>
    %40 = vector.shape_cast %39 : vector<1x8x4xbf16> to vector<8x4xbf16>
    %cst_36 = arith.constant dense<0.000000e+00> : vector<8x256xf32>
    %41 = tpu.matmul %40, %38, %cst_36 {dimension_numbers = #tpu.dot_dimension_numbers<[1], [0], [0], [1], [0, 0, 1, 1], [], []>} : vector<8x4xbf16>, vector<4x256xbf16>, vector<8x256xf32> -> vector<8x256xf32>
    %42 = arith.addf %35, %41 : vector<8x256xf32>
    %c0_37 = arith.constant 0 : index
    %c17_38 = arith.constant 17 : index
    %43 = vector.load %arg14[%c0_37, %c17_38] : memref<4x290xbf16, #tpu.memory_space<vmem>>, vector<4x256xbf16>
    %c4 = arith.constant 4 : index
    %c0_39 = arith.constant 0 : index
    %c0_40 = arith.constant 0 : index
    %44 = vector.load %arg4[%c4, %c0_39, %c0_40] : memref<9x8x4xbf16, #tpu.memory_space<vmem>>, vector<1x8x4xbf16>
    %45 = vector.shape_cast %44 : vector<1x8x4xbf16> to vector<8x4xbf16>
    %cst_41 = arith.constant dense<0.000000e+00> : vector<8x256xf32>
    %46 = tpu.matmul %45, %43, %cst_41 {dimension_numbers = #tpu.dot_dimension_numbers<[1], [0], [0], [1], [0, 0, 1, 1], [], []>} : vector<8x4xbf16>, vector<4x256xbf16>, vector<8x256xf32> -> vector<8x256xf32>
    %47 = arith.addf %42, %46 : vector<8x256xf32>
    %c0_42 = arith.constant 0 : index
    %c18 = arith.constant 18 : index
    %48 = vector.load %arg14[%c0_42, %c18] : memref<4x290xbf16, #tpu.memory_space<vmem>>, vector<4x256xbf16>
    %49 = vector.broadcast %3 : vector<1x256xbf16> to vector<4x256xbf16>
    %50 = arith.mulf %48, %49 : vector<4x256xbf16>
    %c5 = arith.constant 5 : index
    %c0_43 = arith.constant 0 : index
    %c0_44 = arith.constant 0 : index
    %51 = vector.load %arg4[%c5, %c0_43, %c0_44] : memref<9x8x4xbf16, #tpu.memory_space<vmem>>, vector<1x8x4xbf16>
    %52 = vector.shape_cast %51 : vector<1x8x4xbf16> to vector<8x4xbf16>
    %cst_45 = arith.constant dense<0.000000e+00> : vector<8x256xf32>
    %53 = tpu.matmul %52, %50, %cst_45 {dimension_numbers = #tpu.dot_dimension_numbers<[1], [0], [0], [1], [0, 0, 1, 1], [], []>} : vector<8x4xbf16>, vector<4x256xbf16>, vector<8x256xf32> -> vector<8x256xf32>
    %54 = arith.addf %47, %53 : vector<8x256xf32>
    %c0_46 = arith.constant 0 : index
    %c32 = arith.constant 32 : index
    %55 = vector.load %arg14[%c0_46, %c32] : memref<4x290xbf16, #tpu.memory_space<vmem>>, vector<4x256xbf16>
    %56 = vector.broadcast %2 : vector<1x256xbf16> to vector<4x256xbf16>
    %57 = arith.mulf %55, %56 : vector<4x256xbf16>
    %c6 = arith.constant 6 : index
    %c0_47 = arith.constant 0 : index
    %c0_48 = arith.constant 0 : index
    %58 = vector.load %arg4[%c6, %c0_47, %c0_48] : memref<9x8x4xbf16, #tpu.memory_space<vmem>>, vector<1x8x4xbf16>
    %59 = vector.shape_cast %58 : vector<1x8x4xbf16> to vector<8x4xbf16>
    %cst_49 = arith.constant dense<0.000000e+00> : vector<8x256xf32>
    %60 = tpu.matmul %59, %57, %cst_49 {dimension_numbers = #tpu.dot_dimension_numbers<[1], [0], [0], [1], [0, 0, 1, 1], [], []>} : vector<8x4xbf16>, vector<4x256xbf16>, vector<8x256xf32> -> vector<8x256xf32>
    %61 = arith.addf %54, %60 : vector<8x256xf32>
    %c0_50 = arith.constant 0 : index
    %c33 = arith.constant 33 : index
    %62 = vector.load %arg14[%c0_50, %c33] : memref<4x290xbf16, #tpu.memory_space<vmem>>, vector<4x256xbf16>
    %c7 = arith.constant 7 : index
    %c0_51 = arith.constant 0 : index
    %c0_52 = arith.constant 0 : index
    %63 = vector.load %arg4[%c7, %c0_51, %c0_52] : memref<9x8x4xbf16, #tpu.memory_space<vmem>>, vector<1x8x4xbf16>
    %64 = vector.shape_cast %63 : vector<1x8x4xbf16> to vector<8x4xbf16>
    %cst_53 = arith.constant dense<0.000000e+00> : vector<8x256xf32>
    %65 = tpu.matmul %64, %62, %cst_53 {dimension_numbers = #tpu.dot_dimension_numbers<[1], [0], [0], [1], [0, 0, 1, 1], [], []>} : vector<8x4xbf16>, vector<4x256xbf16>, vector<8x256xf32> -> vector<8x256xf32>
    %66 = arith.addf %61, %65 : vector<8x256xf32>
    %c0_54 = arith.constant 0 : index
    %c34 = arith.constant 34 : index
    %67 = vector.load %arg14[%c0_54, %c34] : memref<4x290xbf16, #tpu.memory_space<vmem>>, vector<4x256xbf16>
    %68 = vector.broadcast %3 : vector<1x256xbf16> to vector<4x256xbf16>
    %69 = arith.mulf %67, %68 : vector<4x256xbf16>
    %c8 = arith.constant 8 : index
    %c0_55 = arith.constant 0 : index
    %c0_56 = arith.constant 0 : index
    %70 = vector.load %arg4[%c8, %c0_55, %c0_56] : memref<9x8x4xbf16, #tpu.memory_space<vmem>>, vector<1x8x4xbf16>
    %71 = vector.shape_cast %70 : vector<1x8x4xbf16> to vector<8x4xbf16>
    %cst_57 = arith.constant dense<0.000000e+00> : vector<8x256xf32>
    %72 = tpu.matmul %71, %69, %cst_57 {dimension_numbers = #tpu.dot_dimension_numbers<[1], [0], [0], [1], [0, 0, 1, 1], [], []>} : vector<8x4xbf16>, vector<4x256xbf16>, vector<8x256xf32> -> vector<8x256xf32>
    %73 = arith.addf %66, %72 : vector<8x256xf32>
    %74 = vector.broadcast %6 : vector<8x1xf32> to vector<8x256xf32>
    %75 = arith.addf %73, %74 : vector<8x256xf32>
    %cst_58 = arith.constant dense<0.000000e+00> : vector<8xf32>
    %76 = vector.multi_reduction <add>, %75, %cst_58 [1] : vector<8x256xf32> to vector<8xf32>
    %77 = vector.shape_cast %76 : vector<8xf32> to vector<8x1xf32>
    %78 = arith.mulf %75, %75 : vector<8x256xf32>
    %cst_59 = arith.constant dense<0.000000e+00> : vector<8xf32>
    %79 = vector.multi_reduction <add>, %78, %cst_59 [1] : vector<8x256xf32> to vector<8xf32>
    %80 = vector.shape_cast %79 : vector<8xf32> to vector<8x1xf32>
    %81 = tpu.concatenate %77, %80 in 1 : vector<8x1xf32>, vector<8x1xf32> -> vector<8x2xf32>
    %c0_60 = arith.constant 0 : index
    %c0_61 = arith.constant 0 : index
    %c0_62 = arith.constant 0 : index
    %82 = vector.load %arg13[%c0_60, %c0_61, %c0_62] : memref<1x8x2xf32, #tpu.memory_space<vmem>>, vector<1x8x2xf32>
    %83 = vector.shape_cast %82 : vector<1x8x2xf32> to vector<8x2xf32>
    %84 = vector.shape_cast %81 : vector<8x2xf32> to vector<1x8x2xf32>
    tpu.vector_store %arg13[%c0_60, %c0_61, %c0_62], %84 {strides = array<i32>} : memref<1x8x2xf32, #tpu.memory_space<vmem>>, vector<1x8x2xf32>,
    %85 = arith.truncf %75 : vector<8x256xf32> to vector<8x256xbf16>
    %c0_63 = arith.constant 0 : index
    %c0_64 = arith.constant 0 : index
    %c0_65 = arith.constant 0 : index
    %86 = vector.load %arg11[%c0_63, %c0_64, %c0_65] : memref<1x8x256xbf16, #tpu.memory_space<vmem>>, vector<1x8x256xbf16>
    %87 = vector.shape_cast %86 : vector<1x8x256xbf16> to vector<8x256xbf16>
    %88 = vector.shape_cast %85 : vector<8x256xbf16> to vector<1x8x256xbf16>
    tpu.vector_store %arg11[%c0_63, %c0_64, %c0_65], %88 {strides = array<i32>} : memref<1x8x256xbf16, #tpu.memory_space<vmem>>, vector<1x8x256xbf16>,
    %c0_66 = arith.constant 0 : index
    %c0_67 = arith.constant 0 : index
    %89 = vector.load %arg6[%c0_66, %c0_67] : memref<4x1xf32, #tpu.memory_space<vmem>>, vector<4x1xf32>
    %c0_68 = arith.constant 0 : index
    %c0_69 = arith.constant 0 : index
    %90 = vector.load %arg7[%c0_68, %c0_69] : memref<4x1xf32, #tpu.memory_space<vmem>>, vector<4x1xf32>
    %c0_70 = arith.constant 0 : index
    %c0_71 = arith.constant 0 : index
    %91 = vector.load %arg9[%c0_70, %c0_71] : memref<8x1xf32, #tpu.memory_space<vmem>>, vector<8x1xf32>
    %cst_72 = arith.constant 0.000000e+00 : bf16
    %92 = vector.broadcast %cst_72 : bf16 to vector<4x17xbf16>
    %c0_73 = arith.constant 0 : index
    %c0_74 = arith.constant 0 : index
    %93 = vector.load %arg15[%c0_73, %c0_74] : memref<4x290xbf16, #tpu.memory_space<vmem>>, vector<4x17xbf16>
    tpu.vector_store %arg15[%c0_73, %c0_74], %92 {strides = array<i32>} : memref<4x290xbf16, #tpu.memory_space<vmem>>, vector<4x17xbf16>,
    %c0_75 = arith.constant 0 : index
    %c273_76 = arith.constant 273 : index
    %94 = vector.load %arg15[%c0_75, %c273_76] : memref<4x290xbf16, #tpu.memory_space<vmem>>, vector<4x17xbf16>
    tpu.vector_store %arg15[%c0_75, %c273_76], %92 {strides = array<i32>} : memref<4x290xbf16, #tpu.memory_space<vmem>>, vector<4x17xbf16>,
    %95 = vector.broadcast %89 : vector<4x1xf32> to vector<4x256xf32>
    %96 = arith.mulf %1, %95 : vector<4x256xf32>
    %97 = vector.broadcast %90 : vector<4x1xf32> to vector<4x256xf32>
    %98 = arith.addf %96, %97 : vector<4x256xf32>
    %cst_77 = arith.constant 0.000000e+00 : f32
    %99 = vector.broadcast %cst_77 : f32 to vector<4x256xf32>
    %100 = arith.maximumf %98, %99 : vector<4x256xf32>
    %101 = arith.truncf %100 : vector<4x256xf32> to vector<4x256xbf16>
    %c0_78 = arith.constant 0 : index
    %c17_79 = arith.constant 17 : index
    %102 = vector.load %arg15[%c0_78, %c17_79] : memref<4x290xbf16, #tpu.memory_space<vmem>>, vector<4x256xbf16>
    tpu.vector_store %arg15[%c0_78, %c17_79], %101 {strides = array<i32>} : memref<4x290xbf16, #tpu.memory_space<vmem>>, vector<4x256xbf16>,
    %c0_80 = arith.constant 0 : index
    %c0_81 = arith.constant 0 : index
    %103 = vector.load %arg15[%c0_80, %c0_81] : memref<4x290xbf16, #tpu.memory_space<vmem>>, vector<4x256xbf16>
    %104 = vector.broadcast %2 : vector<1x256xbf16> to vector<4x256xbf16>
    %105 = arith.mulf %103, %104 : vector<4x256xbf16>
    %c0_82 = arith.constant 0 : index
    %c0_83 = arith.constant 0 : index
    %c0_84 = arith.constant 0 : index
    %106 = vector.load %arg8[%c0_82, %c0_83, %c0_84] : memref<9x8x4xbf16, #tpu.memory_space<vmem>>, vector<1x8x4xbf16>
    %107 = vector.shape_cast %106 : vector<1x8x4xbf16> to vector<8x4xbf16>
    %cst_85 = arith.constant dense<0.000000e+00> : vector<8x256xf32>
    %108 = tpu.matmul %107, %105, %cst_85 {dimension_numbers = #tpu.dot_dimension_numbers<[1], [0], [0], [1], [0, 0, 1, 1], [], []>} : vector<8x4xbf16>, vector<4x256xbf16>, vector<8x256xf32> -> vector<8x256xf32>
    %c0_86 = arith.constant 0 : index
    %c1_87 = arith.constant 1 : index
    %109 = vector.load %arg15[%c0_86, %c1_87] : memref<4x290xbf16, #tpu.memory_space<vmem>>, vector<4x256xbf16>
    %c1_88 = arith.constant 1 : index
    %c0_89 = arith.constant 0 : index
    %c0_90 = arith.constant 0 : index
    %110 = vector.load %arg8[%c1_88, %c0_89, %c0_90] : memref<9x8x4xbf16, #tpu.memory_space<vmem>>, vector<1x8x4xbf16>
    %111 = vector.shape_cast %110 : vector<1x8x4xbf16> to vector<8x4xbf16>
    %cst_91 = arith.constant dense<0.000000e+00> : vector<8x256xf32>
    %112 = tpu.matmul %111, %109, %cst_91 {dimension_numbers = #tpu.dot_dimension_numbers<[1], [0], [0], [1], [0, 0, 1, 1], [], []>} : vector<8x4xbf16>, vector<4x256xbf16>, vector<8x256xf32> -> vector<8x256xf32>
    %113 = arith.addf %108, %112 : vector<8x256xf32>
    %c0_92 = arith.constant 0 : index
    %c2_93 = arith.constant 2 : index
    %114 = vector.load %arg15[%c0_92, %c2_93] : memref<4x290xbf16, #tpu.memory_space<vmem>>, vector<4x256xbf16>
    %115 = vector.broadcast %3 : vector<1x256xbf16> to vector<4x256xbf16>
    %116 = arith.mulf %114, %115 : vector<4x256xbf16>
    %c2_94 = arith.constant 2 : index
    %c0_95 = arith.constant 0 : index
    %c0_96 = arith.constant 0 : index
    %117 = vector.load %arg8[%c2_94, %c0_95, %c0_96] : memref<9x8x4xbf16, #tpu.memory_space<vmem>>, vector<1x8x4xbf16>
    %118 = vector.shape_cast %117 : vector<1x8x4xbf16> to vector<8x4xbf16>
    %cst_97 = arith.constant dense<0.000000e+00> : vector<8x256xf32>
    %119 = tpu.matmul %118, %116, %cst_97 {dimension_numbers = #tpu.dot_dimension_numbers<[1], [0], [0], [1], [0, 0, 1, 1], [], []>} : vector<8x4xbf16>, vector<4x256xbf16>, vector<8x256xf32> -> vector<8x256xf32>
    %120 = arith.addf %113, %119 : vector<8x256xf32>
    %c0_98 = arith.constant 0 : index
    %c16_99 = arith.constant 16 : index
    %121 = vector.load %arg15[%c0_98, %c16_99] : memref<4x290xbf16, #tpu.memory_space<vmem>>, vector<4x256xbf16>
    %122 = vector.broadcast %2 : vector<1x256xbf16> to vector<4x256xbf16>
    %123 = arith.mulf %121, %122 : vector<4x256xbf16>
    %c3_100 = arith.constant 3 : index
    %c0_101 = arith.constant 0 : index
    %c0_102 = arith.constant 0 : index
    %124 = vector.load %arg8[%c3_100, %c0_101, %c0_102] : memref<9x8x4xbf16, #tpu.memory_space<vmem>>, vector<1x8x4xbf16>
    %125 = vector.shape_cast %124 : vector<1x8x4xbf16> to vector<8x4xbf16>
    %cst_103 = arith.constant dense<0.000000e+00> : vector<8x256xf32>
    %126 = tpu.matmul %125, %123, %cst_103 {dimension_numbers = #tpu.dot_dimension_numbers<[1], [0], [0], [1], [0, 0, 1, 1], [], []>} : vector<8x4xbf16>, vector<4x256xbf16>, vector<8x256xf32> -> vector<8x256xf32>
    %127 = arith.addf %120, %126 : vector<8x256xf32>
    %c0_104 = arith.constant 0 : index
    %c17_105 = arith.constant 17 : index
    %128 = vector.load %arg15[%c0_104, %c17_105] : memref<4x290xbf16, #tpu.memory_space<vmem>>, vector<4x256xbf16>
    %c4_106 = arith.constant 4 : index
    %c0_107 = arith.constant 0 : index
    %c0_108 = arith.constant 0 : index
    %129 = vector.load %arg8[%c4_106, %c0_107, %c0_108] : memref<9x8x4xbf16, #tpu.memory_space<vmem>>, vector<1x8x4xbf16>
    %130 = vector.shape_cast %129 : vector<1x8x4xbf16> to vector<8x4xbf16>
    %cst_109 = arith.constant dense<0.000000e+00> : vector<8x256xf32>
    %131 = tpu.matmul %130, %128, %cst_109 {dimension_numbers = #tpu.dot_dimension_numbers<[1], [0], [0], [1], [0, 0, 1, 1], [], []>} : vector<8x4xbf16>, vector<4x256xbf16>, vector<8x256xf32> -> vector<8x256xf32>
    %132 = arith.addf %127, %131 : vector<8x256xf32>
    %c0_110 = arith.constant 0 : index
    %c18_111 = arith.constant 18 : index
    %133 = vector.load %arg15[%c0_110, %c18_111] : memref<4x290xbf16, #tpu.memory_space<vmem>>, vector<4x256xbf16>
    %134 = vector.broadcast %3 : vector<1x256xbf16> to vector<4x256xbf16>
    %135 = arith.mulf %133, %134 : vector<4x256xbf16>
    %c5_112 = arith.constant 5 : index
    %c0_113 = arith.constant 0 : index
    %c0_114 = arith.constant 0 : index
    %136 = vector.load %arg8[%c5_112, %c0_113, %c0_114] : memref<9x8x4xbf16, #tpu.memory_space<vmem>>, vector<1x8x4xbf16>
    %137 = vector.shape_cast %136 : vector<1x8x4xbf16> to vector<8x4xbf16>
    %cst_115 = arith.constant dense<0.000000e+00> : vector<8x256xf32>
    %138 = tpu.matmul %137, %135, %cst_115 {dimension_numbers = #tpu.dot_dimension_numbers<[1], [0], [0], [1], [0, 0, 1, 1], [], []>} : vector<8x4xbf16>, vector<4x256xbf16>, vector<8x256xf32> -> vector<8x256xf32>
    %139 = arith.addf %132, %138 : vector<8x256xf32>
    %c0_116 = arith.constant 0 : index
    %c32_117 = arith.constant 32 : index
    %140 = vector.load %arg15[%c0_116, %c32_117] : memref<4x290xbf16, #tpu.memory_space<vmem>>, vector<4x256xbf16>
    %141 = vector.broadcast %2 : vector<1x256xbf16> to vector<4x256xbf16>
    %142 = arith.mulf %140, %141 : vector<4x256xbf16>
    %c6_118 = arith.constant 6 : index
    %c0_119 = arith.constant 0 : index
    %c0_120 = arith.constant 0 : index
    %143 = vector.load %arg8[%c6_118, %c0_119, %c0_120] : memref<9x8x4xbf16, #tpu.memory_space<vmem>>, vector<1x8x4xbf16>
    %144 = vector.shape_cast %143 : vector<1x8x4xbf16> to vector<8x4xbf16>
    %cst_121 = arith.constant dense<0.000000e+00> : vector<8x256xf32>
    %145 = tpu.matmul %144, %142, %cst_121 {dimension_numbers = #tpu.dot_dimension_numbers<[1], [0], [0], [1], [0, 0, 1, 1], [], []>} : vector<8x4xbf16>, vector<4x256xbf16>, vector<8x256xf32> -> vector<8x256xf32>
    %146 = arith.addf %139, %145 : vector<8x256xf32>
    %c0_122 = arith.constant 0 : index
    %c33_123 = arith.constant 33 : index
    %147 = vector.load %arg15[%c0_122, %c33_123] : memref<4x290xbf16, #tpu.memory_space<vmem>>, vector<4x256xbf16>
    %c7_124 = arith.constant 7 : index
    %c0_125 = arith.constant 0 : index
    %c0_126 = arith.constant 0 : index
    %148 = vector.load %arg8[%c7_124, %c0_125, %c0_126] : memref<9x8x4xbf16, #tpu.memory_space<vmem>>, vector<1x8x4xbf16>
    %149 = vector.shape_cast %148 : vector<1x8x4xbf16> to vector<8x4xbf16>
    %cst_127 = arith.constant dense<0.000000e+00> : vector<8x256xf32>
    %150 = tpu.matmul %149, %147, %cst_127 {dimension_numbers = #tpu.dot_dimension_numbers<[1], [0], [0], [1], [0, 0, 1, 1], [], []>} : vector<8x4xbf16>, vector<4x256xbf16>, vector<8x256xf32> -> vector<8x256xf32>
    %151 = arith.addf %146, %150 : vector<8x256xf32>
    %c0_128 = arith.constant 0 : index
    %c34_129 = arith.constant 34 : index
    %152 = vector.load %arg15[%c0_128, %c34_129] : memref<4x290xbf16, #tpu.memory_space<vmem>>, vector<4x256xbf16>
    %153 = vector.broadcast %3 : vector<1x256xbf16> to vector<4x256xbf16>
    %154 = arith.mulf %152, %153 : vector<4x256xbf16>
    %c8_130 = arith.constant 8 : index
    %c0_131 = arith.constant 0 : index
    %c0_132 = arith.constant 0 : index
    %155 = vector.load %arg8[%c8_130, %c0_131, %c0_132] : memref<9x8x4xbf16, #tpu.memory_space<vmem>>, vector<1x8x4xbf16>
    %156 = vector.shape_cast %155 : vector<1x8x4xbf16> to vector<8x4xbf16>
    %cst_133 = arith.constant dense<0.000000e+00> : vector<8x256xf32>
    %157 = tpu.matmul %156, %154, %cst_133 {dimension_numbers = #tpu.dot_dimension_numbers<[1], [0], [0], [1], [0, 0, 1, 1], [], []>} : vector<8x4xbf16>, vector<4x256xbf16>, vector<8x256xf32> -> vector<8x256xf32>
    %158 = arith.addf %151, %157 : vector<8x256xf32>
    %159 = vector.broadcast %91 : vector<8x1xf32> to vector<8x256xf32>
    %160 = arith.addf %158, %159 : vector<8x256xf32>
    %161 = arith.truncf %160 : vector<8x256xf32> to vector<8x256xbf16>
    %c0_134 = arith.constant 0 : index
    %c0_135 = arith.constant 0 : index
    %c0_136 = arith.constant 0 : index
    %162 = vector.load %arg12[%c0_134, %c0_135, %c0_136] : memref<1x8x256xbf16, #tpu.memory_space<vmem>>, vector<1x8x256xbf16>
    %163 = vector.shape_cast %162 : vector<1x8x256xbf16> to vector<8x256xbf16>
    %164 = vector.shape_cast %161 : vector<8x256xbf16> to vector<1x8x256xbf16>
    tpu.vector_store %arg12[%c0_134, %c0_135, %c0_136], %164 {strides = array<i32>} : memref<1x8x256xbf16, #tpu.memory_space<vmem>>, vector<1x8x256xbf16>,
    return
  }
  func.func @transform_0(%arg0: i32) -> (i32, i32, i32) {
    %c0_i32 = arith.constant 0 : i32
    %c0_i32_0 = arith.constant 0 : i32
    %c0_i32_1 = arith.constant 0 : i32
    return %arg0, %c0_i32, %c0_i32_0 : i32, i32, i32
  }
  func.func @transform_1(%arg0: i32) -> (i32, i32) {
    %c0_i32 = arith.constant 0 : i32
    %c0_i32_0 = arith.constant 0 : i32
    %c0_i32_1 = arith.constant 0 : i32
    return %c0_i32, %c0_i32_0 : i32, i32
  }
  func.func @transform_2(%arg0: i32) -> (i32, i32) {
    %c0_i32 = arith.constant 0 : i32
    %c0_i32_0 = arith.constant 0 : i32
    %c0_i32_1 = arith.constant 0 : i32
    return %c0_i32, %c0_i32_0 : i32, i32
  }
  func.func @transform_3(%arg0: i32) -> (i32, i32, i32) {
    %c0_i32 = arith.constant 0 : i32
    %c0_i32_0 = arith.constant 0 : i32
    %c0_i32_1 = arith.constant 0 : i32
    %c0_i32_2 = arith.constant 0 : i32
    return %c0_i32, %c0_i32_0, %c0_i32_1 : i32, i32, i32
  }
  func.func @transform_4(%arg0: i32) -> (i32, i32) {
    %c0_i32 = arith.constant 0 : i32
    %c0_i32_0 = arith.constant 0 : i32
    %c0_i32_1 = arith.constant 0 : i32
    return %c0_i32, %c0_i32_0 : i32, i32
  }
  func.func @transform_5(%arg0: i32) -> (i32, i32) {
    %c0_i32 = arith.constant 0 : i32
    %c0_i32_0 = arith.constant 0 : i32
    %c0_i32_1 = arith.constant 0 : i32
    return %c0_i32, %c0_i32_0 : i32, i32
  }
  func.func @transform_6(%arg0: i32) -> (i32, i32) {
    %c0_i32 = arith.constant 0 : i32
    %c0_i32_0 = arith.constant 0 : i32
    %c0_i32_1 = arith.constant 0 : i32
    return %c0_i32, %c0_i32_0 : i32, i32
  }
  func.func @transform_7(%arg0: i32) -> (i32, i32, i32) {
    %c0_i32 = arith.constant 0 : i32
    %c0_i32_0 = arith.constant 0 : i32
    %c0_i32_1 = arith.constant 0 : i32
    %c0_i32_2 = arith.constant 0 : i32
    return %c0_i32, %c0_i32_0, %c0_i32_1 : i32, i32, i32
  }
  func.func @transform_8(%arg0: i32) -> (i32, i32) {
    %c0_i32 = arith.constant 0 : i32
    %c0_i32_0 = arith.constant 0 : i32
    %c0_i32_1 = arith.constant 0 : i32
    return %c0_i32, %c0_i32_0 : i32, i32
  }
  func.func @transform_9(%arg0: i32) -> (i32, i32) {
    %c0_i32 = arith.constant 0 : i32
    %c0_i32_0 = arith.constant 0 : i32
    %c0_i32_1 = arith.constant 0 : i32
    return %c0_i32, %c0_i32_0 : i32, i32
  }
  func.func @transform_10(%arg0: i32) -> (i32, i32, i32) {
    %c0_i32 = arith.constant 0 : i32
    %c0_i32_0 = arith.constant 0 : i32
    %c0_i32_1 = arith.constant 0 : i32
    return %arg0, %c0_i32, %c0_i32_0 : i32, i32, i32
  }
  func.func @transform_11(%arg0: i32) -> (i32, i32, i32) {
    %c0_i32 = arith.constant 0 : i32
    %c0_i32_0 = arith.constant 0 : i32
    %c0_i32_1 = arith.constant 0 : i32
    return %arg0, %c0_i32, %c0_i32_0 : i32, i32, i32
  }
  func.func @transform_12(%arg0: i32) -> (i32, i32, i32) {
    %c0_i32 = arith.constant 0 : i32
    %c0_i32_0 = arith.constant 0 : i32
    %c0_i32_1 = arith.constant 0 : i32
    return %arg0, %c0_i32, %c0_i32_0 : i32, i32, i32
  }
}

module attributes {stable_mosaic.version = 11 : i64} {
  func.func @_stage2_kernel(%arg0: i32, %arg1: memref<1x8x256xbf16, #tpu.memory_space<vmem>>, %arg2: memref<8x1xf32, #tpu.memory_space<vmem>>, %arg3: memref<8x1xf32, #tpu.memory_space<vmem>>, %arg4: memref<9x8x8xbf16, #tpu.memory_space<vmem>>, %arg5: memref<8x1xf32, #tpu.memory_space<vmem>>, %arg6: memref<1x8x256xbf16, #tpu.memory_space<vmem>>, %arg7: memref<2x256xbf16, #tpu.memory_space<vmem>>, %arg8: memref<1x8x256xf32, #tpu.memory_space<vmem>>, %arg9: memref<8x290xbf16, #tpu.memory_space<vmem>>) attributes {dimension_semantics = [#tpu.dimension_semantics<parallel>], iteration_bounds = array<i64: 2>, scalar_prefetch = 0 : i64, scratch_operands = 1 : i64, tpu.core_type = #tpu.core_type<tc>, window_params = [{transform_indices = @transform_0, window_bounds = array<i64: 1, 8, 256>}, {pipeline_mode = #tpu.pipeline_mode<synchronous>, transform_indices = @transform_1, window_bounds = array<i64: 8, 1>}, {pipeline_mode = #tpu.pipeline_mode<synchronous>, transform_indices = @transform_2, window_bounds = array<i64: 8, 1>}, {pipeline_mode = #tpu.pipeline_mode<synchronous>, transform_indices = @transform_3, window_bounds = array<i64: 9, 8, 8>}, {pipeline_mode = #tpu.pipeline_mode<synchronous>, transform_indices = @transform_4, window_bounds = array<i64: 8, 1>}, {transform_indices = @transform_5, window_bounds = array<i64: 1, 8, 256>}, {pipeline_mode = #tpu.pipeline_mode<synchronous>, transform_indices = @transform_6, window_bounds = array<i64: 2, 256>}, {transform_indices = @transform_7, window_bounds = array<i64: 1, 8, 256>}]} {
    %c0 = arith.constant 0 : index
    %c0_0 = arith.constant 0 : index
    %c0_1 = arith.constant 0 : index
    %0 = vector.load %arg1[%c0, %c0_0, %c0_1] : memref<1x8x256xbf16, #tpu.memory_space<vmem>>, vector<1x8x256xbf16>
    %1 = vector.shape_cast %0 : vector<1x8x256xbf16> to vector<8x256xbf16>
    %c0_2 = arith.constant 0 : index
    %c0_3 = arith.constant 0 : index
    %2 = vector.load %arg7[%c0_2, %c0_3] : memref<2x256xbf16, #tpu.memory_space<vmem>>, vector<1x256xbf16>
    %c1 = arith.constant 1 : index
    %c0_4 = arith.constant 0 : index
    %3 = vector.load %arg7[%c1, %c0_4] : memref<2x256xbf16, #tpu.memory_space<vmem>>, vector<1x256xbf16>
    %c0_5 = arith.constant 0 : index
    %c0_6 = arith.constant 0 : index
    %4 = vector.load %arg2[%c0_5, %c0_6] : memref<8x1xf32, #tpu.memory_space<vmem>>, vector<8x1xf32>
    %c0_7 = arith.constant 0 : index
    %c0_8 = arith.constant 0 : index
    %5 = vector.load %arg3[%c0_7, %c0_8] : memref<8x1xf32, #tpu.memory_space<vmem>>, vector<8x1xf32>
    %c0_9 = arith.constant 0 : index
    %c0_10 = arith.constant 0 : index
    %6 = vector.load %arg5[%c0_9, %c0_10] : memref<8x1xf32, #tpu.memory_space<vmem>>, vector<8x1xf32>
    %cst = arith.constant 0.000000e+00 : bf16
    %7 = vector.broadcast %cst : bf16 to vector<8x17xbf16>
    %c0_11 = arith.constant 0 : index
    %c0_12 = arith.constant 0 : index
    %8 = vector.load %arg9[%c0_11, %c0_12] : memref<8x290xbf16, #tpu.memory_space<vmem>>, vector<8x17xbf16>
    tpu.vector_store %arg9[%c0_11, %c0_12], %7 {strides = array<i32>} : memref<8x290xbf16, #tpu.memory_space<vmem>>, vector<8x17xbf16>,
    %c0_13 = arith.constant 0 : index
    %c273 = arith.constant 273 : index
    %9 = vector.load %arg9[%c0_13, %c273] : memref<8x290xbf16, #tpu.memory_space<vmem>>, vector<8x17xbf16>
    tpu.vector_store %arg9[%c0_13, %c273], %7 {strides = array<i32>} : memref<8x290xbf16, #tpu.memory_space<vmem>>, vector<8x17xbf16>,
    %10 = arith.extf %1 : vector<8x256xbf16> to vector<8x256xf32>
    %11 = vector.broadcast %4 : vector<8x1xf32> to vector<8x256xf32>
    %12 = arith.mulf %10, %11 : vector<8x256xf32>
    %13 = vector.broadcast %5 : vector<8x1xf32> to vector<8x256xf32>
    %14 = arith.addf %12, %13 : vector<8x256xf32>
    %cst_14 = arith.constant 0.000000e+00 : f32
    %15 = vector.broadcast %cst_14 : f32 to vector<8x256xf32>
    %16 = arith.maximumf %14, %15 : vector<8x256xf32>
    %17 = arith.truncf %16 : vector<8x256xf32> to vector<8x256xbf16>
    %c0_15 = arith.constant 0 : index
    %c17 = arith.constant 17 : index
    %18 = vector.load %arg9[%c0_15, %c17] : memref<8x290xbf16, #tpu.memory_space<vmem>>, vector<8x256xbf16>
    tpu.vector_store %arg9[%c0_15, %c17], %17 {strides = array<i32>} : memref<8x290xbf16, #tpu.memory_space<vmem>>, vector<8x256xbf16>,
    %c0_16 = arith.constant 0 : index
    %c0_17 = arith.constant 0 : index
    %19 = vector.load %arg9[%c0_16, %c0_17] : memref<8x290xbf16, #tpu.memory_space<vmem>>, vector<8x256xbf16>
    %20 = vector.broadcast %2 : vector<1x256xbf16> to vector<8x256xbf16>
    %21 = arith.mulf %19, %20 : vector<8x256xbf16>
    %c0_18 = arith.constant 0 : index
    %c0_19 = arith.constant 0 : index
    %c0_20 = arith.constant 0 : index
    %22 = vector.load %arg4[%c0_18, %c0_19, %c0_20] : memref<9x8x8xbf16, #tpu.memory_space<vmem>>, vector<1x8x8xbf16>
    %23 = vector.shape_cast %22 : vector<1x8x8xbf16> to vector<8x8xbf16>
    %cst_21 = arith.constant dense<0.000000e+00> : vector<8x256xf32>
    %24 = tpu.matmul %23, %21, %cst_21 {dimension_numbers = #tpu.dot_dimension_numbers<[1], [0], [0], [1], [0, 0, 1, 1], [], []>} : vector<8x8xbf16>, vector<8x256xbf16>, vector<8x256xf32> -> vector<8x256xf32>
    %c0_22 = arith.constant 0 : index
    %c1_23 = arith.constant 1 : index
    %25 = vector.load %arg9[%c0_22, %c1_23] : memref<8x290xbf16, #tpu.memory_space<vmem>>, vector<8x256xbf16>
    %c1_24 = arith.constant 1 : index
    %c0_25 = arith.constant 0 : index
    %c0_26 = arith.constant 0 : index
    %26 = vector.load %arg4[%c1_24, %c0_25, %c0_26] : memref<9x8x8xbf16, #tpu.memory_space<vmem>>, vector<1x8x8xbf16>
    %27 = vector.shape_cast %26 : vector<1x8x8xbf16> to vector<8x8xbf16>
    %cst_27 = arith.constant dense<0.000000e+00> : vector<8x256xf32>
    %28 = tpu.matmul %27, %25, %cst_27 {dimension_numbers = #tpu.dot_dimension_numbers<[1], [0], [0], [1], [0, 0, 1, 1], [], []>} : vector<8x8xbf16>, vector<8x256xbf16>, vector<8x256xf32> -> vector<8x256xf32>
    %29 = arith.addf %24, %28 : vector<8x256xf32>
    %c0_28 = arith.constant 0 : index
    %c2 = arith.constant 2 : index
    %30 = vector.load %arg9[%c0_28, %c2] : memref<8x290xbf16, #tpu.memory_space<vmem>>, vector<8x256xbf16>
    %31 = vector.broadcast %3 : vector<1x256xbf16> to vector<8x256xbf16>
    %32 = arith.mulf %30, %31 : vector<8x256xbf16>
    %c2_29 = arith.constant 2 : index
    %c0_30 = arith.constant 0 : index
    %c0_31 = arith.constant 0 : index
    %33 = vector.load %arg4[%c2_29, %c0_30, %c0_31] : memref<9x8x8xbf16, #tpu.memory_space<vmem>>, vector<1x8x8xbf16>
    %34 = vector.shape_cast %33 : vector<1x8x8xbf16> to vector<8x8xbf16>
    %cst_32 = arith.constant dense<0.000000e+00> : vector<8x256xf32>
    %35 = tpu.matmul %34, %32, %cst_32 {dimension_numbers = #tpu.dot_dimension_numbers<[1], [0], [0], [1], [0, 0, 1, 1], [], []>} : vector<8x8xbf16>, vector<8x256xbf16>, vector<8x256xf32> -> vector<8x256xf32>
    %36 = arith.addf %29, %35 : vector<8x256xf32>
    %c0_33 = arith.constant 0 : index
    %c16 = arith.constant 16 : index
    %37 = vector.load %arg9[%c0_33, %c16] : memref<8x290xbf16, #tpu.memory_space<vmem>>, vector<8x256xbf16>
    %38 = vector.broadcast %2 : vector<1x256xbf16> to vector<8x256xbf16>
    %39 = arith.mulf %37, %38 : vector<8x256xbf16>
    %c3 = arith.constant 3 : index
    %c0_34 = arith.constant 0 : index
    %c0_35 = arith.constant 0 : index
    %40 = vector.load %arg4[%c3, %c0_34, %c0_35] : memref<9x8x8xbf16, #tpu.memory_space<vmem>>, vector<1x8x8xbf16>
    %41 = vector.shape_cast %40 : vector<1x8x8xbf16> to vector<8x8xbf16>
    %cst_36 = arith.constant dense<0.000000e+00> : vector<8x256xf32>
    %42 = tpu.matmul %41, %39, %cst_36 {dimension_numbers = #tpu.dot_dimension_numbers<[1], [0], [0], [1], [0, 0, 1, 1], [], []>} : vector<8x8xbf16>, vector<8x256xbf16>, vector<8x256xf32> -> vector<8x256xf32>
    %43 = arith.addf %36, %42 : vector<8x256xf32>
    %c0_37 = arith.constant 0 : index
    %c17_38 = arith.constant 17 : index
    %44 = vector.load %arg9[%c0_37, %c17_38] : memref<8x290xbf16, #tpu.memory_space<vmem>>, vector<8x256xbf16>
    %c4 = arith.constant 4 : index
    %c0_39 = arith.constant 0 : index
    %c0_40 = arith.constant 0 : index
    %45 = vector.load %arg4[%c4, %c0_39, %c0_40] : memref<9x8x8xbf16, #tpu.memory_space<vmem>>, vector<1x8x8xbf16>
    %46 = vector.shape_cast %45 : vector<1x8x8xbf16> to vector<8x8xbf16>
    %cst_41 = arith.constant dense<0.000000e+00> : vector<8x256xf32>
    %47 = tpu.matmul %46, %44, %cst_41 {dimension_numbers = #tpu.dot_dimension_numbers<[1], [0], [0], [1], [0, 0, 1, 1], [], []>} : vector<8x8xbf16>, vector<8x256xbf16>, vector<8x256xf32> -> vector<8x256xf32>
    %48 = arith.addf %43, %47 : vector<8x256xf32>
    %c0_42 = arith.constant 0 : index
    %c18 = arith.constant 18 : index
    %49 = vector.load %arg9[%c0_42, %c18] : memref<8x290xbf16, #tpu.memory_space<vmem>>, vector<8x256xbf16>
    %50 = vector.broadcast %3 : vector<1x256xbf16> to vector<8x256xbf16>
    %51 = arith.mulf %49, %50 : vector<8x256xbf16>
    %c5 = arith.constant 5 : index
    %c0_43 = arith.constant 0 : index
    %c0_44 = arith.constant 0 : index
    %52 = vector.load %arg4[%c5, %c0_43, %c0_44] : memref<9x8x8xbf16, #tpu.memory_space<vmem>>, vector<1x8x8xbf16>
    %53 = vector.shape_cast %52 : vector<1x8x8xbf16> to vector<8x8xbf16>
    %cst_45 = arith.constant dense<0.000000e+00> : vector<8x256xf32>
    %54 = tpu.matmul %53, %51, %cst_45 {dimension_numbers = #tpu.dot_dimension_numbers<[1], [0], [0], [1], [0, 0, 1, 1], [], []>} : vector<8x8xbf16>, vector<8x256xbf16>, vector<8x256xf32> -> vector<8x256xf32>
    %55 = arith.addf %48, %54 : vector<8x256xf32>
    %c0_46 = arith.constant 0 : index
    %c32 = arith.constant 32 : index
    %56 = vector.load %arg9[%c0_46, %c32] : memref<8x290xbf16, #tpu.memory_space<vmem>>, vector<8x256xbf16>
    %57 = vector.broadcast %2 : vector<1x256xbf16> to vector<8x256xbf16>
    %58 = arith.mulf %56, %57 : vector<8x256xbf16>
    %c6 = arith.constant 6 : index
    %c0_47 = arith.constant 0 : index
    %c0_48 = arith.constant 0 : index
    %59 = vector.load %arg4[%c6, %c0_47, %c0_48] : memref<9x8x8xbf16, #tpu.memory_space<vmem>>, vector<1x8x8xbf16>
    %60 = vector.shape_cast %59 : vector<1x8x8xbf16> to vector<8x8xbf16>
    %cst_49 = arith.constant dense<0.000000e+00> : vector<8x256xf32>
    %61 = tpu.matmul %60, %58, %cst_49 {dimension_numbers = #tpu.dot_dimension_numbers<[1], [0], [0], [1], [0, 0, 1, 1], [], []>} : vector<8x8xbf16>, vector<8x256xbf16>, vector<8x256xf32> -> vector<8x256xf32>
    %62 = arith.addf %55, %61 : vector<8x256xf32>
    %c0_50 = arith.constant 0 : index
    %c33 = arith.constant 33 : index
    %63 = vector.load %arg9[%c0_50, %c33] : memref<8x290xbf16, #tpu.memory_space<vmem>>, vector<8x256xbf16>
    %c7 = arith.constant 7 : index
    %c0_51 = arith.constant 0 : index
    %c0_52 = arith.constant 0 : index
    %64 = vector.load %arg4[%c7, %c0_51, %c0_52] : memref<9x8x8xbf16, #tpu.memory_space<vmem>>, vector<1x8x8xbf16>
    %65 = vector.shape_cast %64 : vector<1x8x8xbf16> to vector<8x8xbf16>
    %cst_53 = arith.constant dense<0.000000e+00> : vector<8x256xf32>
    %66 = tpu.matmul %65, %63, %cst_53 {dimension_numbers = #tpu.dot_dimension_numbers<[1], [0], [0], [1], [0, 0, 1, 1], [], []>} : vector<8x8xbf16>, vector<8x256xbf16>, vector<8x256xf32> -> vector<8x256xf32>
    %67 = arith.addf %62, %66 : vector<8x256xf32>
    %c0_54 = arith.constant 0 : index
    %c34 = arith.constant 34 : index
    %68 = vector.load %arg9[%c0_54, %c34] : memref<8x290xbf16, #tpu.memory_space<vmem>>, vector<8x256xbf16>
    %69 = vector.broadcast %3 : vector<1x256xbf16> to vector<8x256xbf16>
    %70 = arith.mulf %68, %69 : vector<8x256xbf16>
    %c8 = arith.constant 8 : index
    %c0_55 = arith.constant 0 : index
    %c0_56 = arith.constant 0 : index
    %71 = vector.load %arg4[%c8, %c0_55, %c0_56] : memref<9x8x8xbf16, #tpu.memory_space<vmem>>, vector<1x8x8xbf16>
    %72 = vector.shape_cast %71 : vector<1x8x8xbf16> to vector<8x8xbf16>
    %cst_57 = arith.constant dense<0.000000e+00> : vector<8x256xf32>
    %73 = tpu.matmul %72, %70, %cst_57 {dimension_numbers = #tpu.dot_dimension_numbers<[1], [0], [0], [1], [0, 0, 1, 1], [], []>} : vector<8x8xbf16>, vector<8x256xbf16>, vector<8x256xf32> -> vector<8x256xf32>
    %74 = arith.addf %67, %73 : vector<8x256xf32>
    %75 = vector.broadcast %6 : vector<8x1xf32> to vector<8x256xf32>
    %76 = arith.addf %74, %75 : vector<8x256xf32>
    %c0_58 = arith.constant 0 : index
    %c0_59 = arith.constant 0 : index
    %c0_60 = arith.constant 0 : index
    %77 = vector.load %arg6[%c0_58, %c0_59, %c0_60] : memref<1x8x256xbf16, #tpu.memory_space<vmem>>, vector<1x8x256xbf16>
    %78 = vector.shape_cast %77 : vector<1x8x256xbf16> to vector<8x256xbf16>
    %79 = arith.extf %78 : vector<8x256xbf16> to vector<8x256xf32>
    %80 = arith.addf %76, %79 : vector<8x256xf32>
    %c0_61 = arith.constant 0 : index
    %c0_62 = arith.constant 0 : index
    %c0_63 = arith.constant 0 : index
    %81 = vector.load %arg8[%c0_61, %c0_62, %c0_63] : memref<1x8x256xf32, #tpu.memory_space<vmem>>, vector<1x8x256xf32>
    %82 = vector.shape_cast %81 : vector<1x8x256xf32> to vector<8x256xf32>
    %83 = vector.shape_cast %80 : vector<8x256xf32> to vector<1x8x256xf32>
    tpu.vector_store %arg8[%c0_61, %c0_62, %c0_63], %83 {strides = array<i32>} : memref<1x8x256xf32, #tpu.memory_space<vmem>>, vector<1x8x256xf32>,
    return
  }
  func.func @transform_0(%arg0: i32) -> (i32, i32, i32) {
    %c0_i32 = arith.constant 0 : i32
    %c0_i32_0 = arith.constant 0 : i32
    %c0_i32_1 = arith.constant 0 : i32
    return %arg0, %c0_i32, %c0_i32_0 : i32, i32, i32
  }
  func.func @transform_1(%arg0: i32) -> (i32, i32) {
    %c0_i32 = arith.constant 0 : i32
    %c0_i32_0 = arith.constant 0 : i32
    %c0_i32_1 = arith.constant 0 : i32
    return %c0_i32, %c0_i32_0 : i32, i32
  }
  func.func @transform_2(%arg0: i32) -> (i32, i32) {
    %c0_i32 = arith.constant 0 : i32
    %c0_i32_0 = arith.constant 0 : i32
    %c0_i32_1 = arith.constant 0 : i32
    return %c0_i32, %c0_i32_0 : i32, i32
  }
  func.func @transform_3(%arg0: i32) -> (i32, i32, i32) {
    %c0_i32 = arith.constant 0 : i32
    %c0_i32_0 = arith.constant 0 : i32
    %c0_i32_1 = arith.constant 0 : i32
    %c0_i32_2 = arith.constant 0 : i32
    return %c0_i32, %c0_i32_0, %c0_i32_1 : i32, i32, i32
  }
  func.func @transform_4(%arg0: i32) -> (i32, i32) {
    %c0_i32 = arith.constant 0 : i32
    %c0_i32_0 = arith.constant 0 : i32
    %c0_i32_1 = arith.constant 0 : i32
    return %c0_i32, %c0_i32_0 : i32, i32
  }
  func.func @transform_5(%arg0: i32) -> (i32, i32, i32) {
    %c0_i32 = arith.constant 0 : i32
    %c0_i32_0 = arith.constant 0 : i32
    %c0_i32_1 = arith.constant 0 : i32
    return %arg0, %c0_i32, %c0_i32_0 : i32, i32, i32
  }
  func.func @transform_6(%arg0: i32) -> (i32, i32) {
    %c0_i32 = arith.constant 0 : i32
    %c0_i32_0 = arith.constant 0 : i32
    %c0_i32_1 = arith.constant 0 : i32
    return %c0_i32, %c0_i32_0 : i32, i32
  }
  func.func @transform_7(%arg0: i32) -> (i32, i32, i32) {
    %c0_i32 = arith.constant 0 : i32
    %c0_i32_0 = arith.constant 0 : i32
    %c0_i32_1 = arith.constant 0 : i32
    return %arg0, %c0_i32, %c0_i32_0 : i32, i32, i32
  }
}

</mosaic_0001>

<llo_original>
// kernel: conv_residual_forward.3
$region0: #{conv_residual_forward.3}
  #allocation0 [shape = 'u32[]', space=smem, size = 0x4, offset = 0x4, fixed_abs, tag = 'smem constant byte address 0x4 - core index']
  #allocation1 [shape = 'u32[144,128]{1,0:T(1,128)}', space=vmem, size = 0x12000, scoped, tag = 'internal scratch']
  #allocation2 [shape = 'bf16[8,290]{1,0:T(8,128)(2,1)}', space=vmem, size = 0x1800, scoped, tag = 'scratch operand']
  %s0 = inlined_call_operand.vmem [shape: bf16[2,8,256], index: 0, kind: input, shape index: {}]
  %s1 = inlined_call_operand.vmem [shape: f32[8,1], index: 1, kind: input, shape index: {}]
  %s2 = inlined_call_operand.vmem [shape: f32[8,1], index: 2, kind: input, shape index: {}]
  %s3 = inlined_call_operand.vmem [shape: bf16[9,8,8], index: 3, kind: input, shape index: {}]
  %s4 = inlined_call_operand.vmem [shape: f32[8,1], index: 4, kind: input, shape index: {}]
  %s5 = inlined_call_operand.vmem [shape: bf16[2,8,256], index: 5, kind: input, shape index: {}]
  %s6 = inlined_call_operand.vmem [shape: bf16[2,256], index: 6, kind: input, shape index: {}]
  %s7 = inlined_call_operand.vmem [shape: f32[2,8,256], index: 7, kind: output, shape index: {}]
  %s8 = sld [smem:[#allocation0]]
  $region61: #{conv_residual_forward.3} parent=0
    _
  %s10 = ssub.s32 1, %s8
  %s11 = scalar_select 0, %s10, %s8
  loop: start=0, step=1, limit=4
  $region2: #{conv_residual_forward.3} parent=0 // loop_pre_header
    _
  $region3: #{conv_residual_forward.3} parent=0 // loop_header
    %s13 = sphi 0, %s17
    %p14 = scmp.ge.s32.totalorder %s13, 4
    %s23 = sphi 0, %s25
    %s26 = sphi 0, %s23
    %s27 = sphi 0, %s26
    %s43 = sphi 0, %s27
    %s47 = sphi 0, %s47
    %s49 = sphi 0, %s47
    %s50 = sphi 0, %s49
    %s64 = sphi 0, %s50
    %s68 = sphi 0, %s68
    %s70 = sphi 0, %s68
    %s71 = sphi 0, %s70
    %s85 = sphi 0, %s71
    %s89 = sphi 0, %s89
    %s91 = sphi 0, %s89
    %s92 = sphi 0, %s91
    %s106 = sphi 0, %s92
    %s110 = sphi 0, %s110
    %s112 = sphi 0, %s110
    %s113 = sphi 0, %s112
    %s127 = sphi 0, %s113
    %s133 = sphi 0, %s135
    %s136 = sphi 0, %s133
    %s137 = sphi 0, %s136
    %s153 = sphi 0, %s137
    %s157 = sphi 0, %s157
    %s159 = sphi 0, %s157
    %s160 = sphi 0, %s159
    %s174 = sphi 0, %s160
    %s180 = sphi 0, %s182
    %s183 = sphi 0, %s180
    %s184 = sphi 0, %s183
    %s200 = sphi 0, %s184
  $region4: #{conv_residual_forward.3} parent=0 // loop_header_branch
    %16 = sbr.rel (%p14) target = $region8
  $region5: #{conv_residual_forward.3} parent=0 // loop_body
    %s18 = ssub.s32 %s13, 1
    %s19 = ssub.s32 %s13, 2
    %s20 = sadd.s32 %s13, 1
    %s21 = ssub.s32 %s13, %s20
    %p22 = scmp.eq.s32.totalorder %s21, 0
    %s24 = sadd.s32 %s23, 1
    %s25 = scalar_select %p22, %s23, %s24
    %p28 = pneg %p22
    %p29 = scmp.eq.s32.totalorder %s13, 1
    %p30 = por %p28, %p29
    %p31 = scmp.ne.s32.totalorder %s23, %s26
    %p32 = scmp.eq.s32.totalorder %s13, 0
    %p33 = por %p31, %p32
    %p34 = scmp.ne.s32.totalorder %s23, %s26
    %p35 = scmp.eq.s32.totalorder %s18, 1
    %p36 = por %p34, %p35
    %p37 = scmp.ne.s32.totalorder %s26, %s27
    %p38 = scmp.eq.s32.totalorder %s18, 0
    %p39 = por %p37, %p38
    %p40 = scmp.ne.s32.totalorder %s26, %s27
    %p41 = scmp.eq.s32.totalorder %s19, 1
    %p42 = por %p40, %p41
    %p44 = scmp.ne.s32.totalorder %s27, %s43
    %p45 = scmp.eq.s32.totalorder %s19, 0
    %p46 = por %p44, %p45
    %s48 = sadd.s32 %s47, 1
    %p51 = scmp.eq.s32.totalorder %s13, 1
    %p52 = scmp.ne.s32.totalorder %s47, %s49
    %p53 = scmp.eq.s32.totalorder %s13, 0
    %p54 = por %p52, %p53
    %p55 = scmp.ne.s32.totalorder %s47, %s49
    %p56 = scmp.eq.s32.totalorder %s18, 1
    %p57 = por %p55, %p56
    %p58 = scmp.ne.s32.totalorder %s49, %s50
    %p59 = scmp.eq.s32.totalorder %s18, 0
    %p60 = por %p58, %p59
    %p61 = scmp.ne.s32.totalorder %s49, %s50
    %p62 = scmp.eq.s32.totalorder %s19, 1
    %p63 = por %p61, %p62
    %p65 = scmp.ne.s32.totalorder %s50, %s64
    %p66 = scmp.eq.s32.totalorder %s19, 0
    %p67 = por %p65, %p66
    %s69 = sadd.s32 %s68, 1
    %p72 = scmp.eq.s32.totalorder %s13, 1
    %p73 = scmp.ne.s32.totalorder %s68, %s70
    %p74 = scmp.eq.s32.totalorder %s13, 0
    %p75 = por %p73, %p74
    %p76 = scmp.ne.s32.totalorder %s68, %s70
    %p77 = scmp.eq.s32.totalorder %s18, 1
    %p78 = por %p76, %p77
    %p79 = scmp.ne.s32.totalorder %s70, %s71
    %p80 = scmp.eq.s32.totalorder %s18, 0
    %p81 = por %p79, %p80
    %p82 = scmp.ne.s32.totalorder %s70, %s71
    %p83 = scmp.eq.s32.totalorder %s19, 1
    %p84 = por %p82, %p83
    %p86 = scmp.ne.s32.totalorder %s71, %s85
    %p87 = scmp.eq.s32.totalorder %s19, 0
    %p88 = por %p86, %p87
    %s90 = sadd.s32 %s89, 1
    %p93 = scmp.eq.s32.totalorder %s13, 1
    %p94 = scmp.ne.s32.totalorder %s89, %s91
    %p95 = scmp.eq.s32.totalorder %s13, 0
    %p96 = por %p94, %p95
    %p97 = scmp.ne.s32.totalorder %s89, %s91
    %p98 = scmp.eq.s32.totalorder %s18, 1
    %p99 = por %p97, %p98
    %p100 = scmp.ne.s32.totalorder %s91, %s92
    %p101 = scmp.eq.s32.totalorder %s18, 0
    %p102 = por %p100, %p101
    %p103 = scmp.ne.s32.totalorder %s91, %s92
    %p104 = scmp.eq.s32.totalorder %s19, 1
    %p105 = por %p103, %p104
    %p107 = scmp.ne.s32.totalorder %s92, %s106
    %p108 = scmp.eq.s32.totalorder %s19, 0
    %p109 = por %p107, %p108
    %s111 = sadd.s32 %s110, 1
    %p114 = scmp.eq.s32.totalorder %s13, 1
    %p115 = scmp.ne.s32.totalorder %s110, %s112
    %p116 = scmp.eq.s32.totalorder %s13, 0
    %p117 = por %p115, %p116
    %p118 = scmp.ne.s32.totalorder %s110, %s112
    %p119 = scmp.eq.s32.totalorder %s18, 1
    %p120 = por %p118, %p119
    %p121 = scmp.ne.s32.totalorder %s112, %s113
    %p122 = scmp.eq.s32.totalorder %s18, 0
    %p123 = por %p121, %p122
    %p124 = scmp.ne.s32.totalorder %s112, %s113
    %p125 = scmp.eq.s32.totalorder %s19, 1
    %p126 = por %p124, %p125
    %p128 = scmp.ne.s32.totalorder %s113, %s127
    %p129 = scmp.eq.s32.totalorder %s19, 0
    %p130 = por %p128, %p129
    %s131 = ssub.s32 %s13, %s20
    %p132 = scmp.eq.s32.totalorder %s131, 0
    %s134 = sadd.s32 %s133, 1
    %s135 = scalar_select %p132, %s133, %s134
    %p138 = pneg %p132
    %p139 = scmp.eq.s32.totalorder %s13, 1
    %p140 = por %p138, %p139
    %p141 = scmp.ne.s32.totalorder %s133, %s136
    %p142 = scmp.eq.s32.totalorder %s13, 0
    %p143 = por %p141, %p142
    %p144 = scmp.ne.s32.totalorder %s133, %s136
    %p145 = scmp.eq.s32.totalorder %s18, 1
    %p146 = por %p144, %p145
    %p147 = scmp.ne.s32.totalorder %s136, %s137
    %p148 = scmp.eq.s32.totalorder %s18, 0
    %p149 = por %p147, %p148
    %p150 = scmp.ne.s32.totalorder %s136, %s137
    %p151 = scmp.eq.s32.totalorder %s19, 1
    %p152 = por %p150, %p151
    %p154 = scmp.ne.s32.totalorder %s137, %s153
    %p155 = scmp.eq.s32.totalorder %s19, 0
    %p156 = por %p154, %p155
    %s158 = sadd.s32 %s157, 1
    %p161 = scmp.eq.s32.totalorder %s13, 1
    %p162 = scmp.ne.s32.totalorder %s157, %s159
    %p163 = scmp.eq.s32.totalorder %s13, 0
    %p164 = por %p162, %p163
    %p165 = scmp.ne.s32.totalorder %s157, %s159
    %p166 = scmp.eq.s32.totalorder %s18, 1
    %p167 = por %p165, %p166
    %p168 = scmp.ne.s32.totalorder %s159, %s160
    %p169 = scmp.eq.s32.totalorder %s18, 0
    %p170 = por %p168, %p169
    %p171 = scmp.ne.s32.totalorder %s159, %s160
    %p172 = scmp.eq.s32.totalorder %s19, 1
    %p173 = por %p171, %p172
    %p175 = scmp.ne.s32.totalorder %s160, %s174
    %p176 = scmp.eq.s32.totalorder %s19, 0
    %p177 = por %p175, %p176
    %s178 = ssub.s32 %s13, %s20
    %p179 = scmp.eq.s32.totalorder %s178, 0
    %s181 = sadd.s32 %s180, 1
    %s182 = scalar_select %p179, %s180, %s181
    %p185 = pneg %p179
    %p186 = scmp.eq.s32.totalorder %s13, 1
    %p187 = por %p185, %p186
    %p188 = scmp.ne.s32.totalorder %s180, %s183
    %p189 = scmp.eq.s32.totalorder %s13, 0
    %p190 = por %p188, %p189
    %p191 = scmp.ne.s32.totalorder %s180, %s183
    %p192 = scmp.eq.s32.totalorder %s18, 1
    %p193 = por %p191, %p192
    %p194 = scmp.ne.s32.totalorder %s183, %s184
    %p195 = scmp.eq.s32.totalorder %s18, 0
    %p196 = por %p194, %p195
    %p197 = scmp.ne.s32.totalorder %s183, %s184
    %p198 = scmp.eq.s32.totalorder %s19, 1
    %p199 = por %p197, %p198
    %p201 = scmp.ne.s32.totalorder %s184, %s200
    %p202 = scmp.eq.s32.totalorder %s19, 0
    %p203 = por %p201, %p202
    %p204 = scmp.le.s32.totalorder 1, %s13
    %p205 = scmp.lt.s32.totalorder %s13, 3
    %p206 = pnand %p204, %p205
    %p207 = pneg %p206
    // Predicated region
    $region9: #{conv_residual_forward.3} parent=5 // pred_check
      _
    $region10: #{conv_residual_forward.3} parent=5 // pred_check_branch
      %209 = sbr.rel (%p206) target = $region12
    $region11: #{conv_residual_forward.3} parent=5 // pred_region
      %s210 = ssub.s32 %s13, 1
      // Predicated region
      $region13: #{conv_residual_forward.3} parent=11 // pred_check
        %p211 = pneg %p60
      $region14: #{conv_residual_forward.3} parent=11 // pred_check_branch
        %213 = sbr.rel (%p211) target = $region16
      $region15: #{conv_residual_forward.3} parent=11 // pred_region
        _
      $region16: #{conv_residual_forward.3} parent=11 // pred_fallthru
        _
      // Predicated region
      $region17: #{conv_residual_forward.3} parent=11 // pred_check
        %p214 = pneg %p81
      $region18: #{conv_residual_forward.3} parent=11 // pred_check_branch
        %216 = sbr.rel (%p214) target = $region20
      $region19: #{conv_residual_forward.3} parent=11 // pred_region
        _
      $region20: #{conv_residual_forward.3} parent=11 // pred_fallthru
        _
      // Predicated region
      $region21: #{conv_residual_forward.3} parent=11 // pred_check
        %p217 = pneg %p102
      $region22: #{conv_residual_forward.3} parent=11 // pred_check_branch
        %219 = sbr.rel (%p217) target = $region24
      $region23: #{conv_residual_forward.3} parent=11 // pred_region
        _
      $region24: #{conv_residual_forward.3} parent=11 // pred_fallthru
        _
      // Predicated region
      $region25: #{conv_residual_forward.3} parent=11 // pred_check
        %p220 = pneg %p123
      $region26: #{conv_residual_forward.3} parent=11 // pred_check_branch
        %222 = sbr.rel (%p220) target = $region28
      $region27: #{conv_residual_forward.3} parent=11 // pred_region
        _
      $region28: #{conv_residual_forward.3} parent=11 // pred_fallthru
        _
      // Predicated region
      $region29: #{conv_residual_forward.3} parent=11 // pred_check
        %p223 = pneg %p170
      $region30: #{conv_residual_forward.3} parent=11 // pred_check_branch
        %225 = sbr.rel (%p223) target = $region32
      $region31: #{conv_residual_forward.3} parent=11 // pred_region
        _
      $region32: #{conv_residual_forward.3} parent=11 // pred_fallthru
        _
    $region12: #{conv_residual_forward.3} parent=5 // pred_fallthru
      _
    %p226 = scmp.lt.s32.totalorder %s13, 2
    // Predicated region
    $region33: #{conv_residual_forward.3} parent=5 // pred_check
      %p227 = pneg %p226
    $region34: #{conv_residual_forward.3} parent=5 // pred_check_branch
      %229 = sbr.rel (%p227) target = $region36
    $region35: #{conv_residual_forward.3} parent=5 // pred_region
      // Predicated region
      $region37: #{conv_residual_forward.3} parent=35 // pred_check
        %p230 = pneg %p33
      $region38: #{conv_residual_forward.3} parent=35 // pred_check_branch
        %232 = sbr.rel (%p230) target = $region40
      $region39: #{conv_residual_forward.3} parent=35 // pred_region
        %p233 = scmp.lt.s32.totalorder %s13, 1
        %s234 = scalar_select %p233, %s13, 1
        %s235 = smul.addr %s234, 2
        %s236 = smul.addr %s235, 4
        %s237 = scalar_lea.vmem %s0, %s236
      $region40: #{conv_residual_forward.3} parent=35 // pred_fallthru
        _
      // Predicated region
      $region41: #{conv_residual_forward.3} parent=35 // pred_check
        %p238 = pneg %p143
      $region42: #{conv_residual_forward.3} parent=35 // pred_check_branch
        %240 = sbr.rel (%p238) target = $region44
      $region43: #{conv_residual_forward.3} parent=35 // pred_region
        %p241 = scmp.lt.s32.totalorder %s13, 1
        %s242 = scalar_select %p241, %s13, 1
        %s243 = smul.addr %s242, 2
        %s244 = smul.addr %s243, 4
        %s245 = scalar_lea.vmem %s5, %s244
      $region44: #{conv_residual_forward.3} parent=35 // pred_fallthru
        _
    $region36: #{conv_residual_forward.3} parent=5 // pred_fallthru
      _
    %p246 = scmp.le.s32.totalorder 1, %s13
    %p247 = scmp.lt.s32.totalorder %s13, 3
    %p248 = pnand %p246, %p247
    %p249 = pneg %p248
    // Predicated region
    $region45: #{conv_residual_forward.3} parent=5 // pred_check
      _
    $region46: #{conv_residual_forward.3} parent=5 // pred_check_branch
      %251 = sbr.rel (%p248) target = $region48
    $region47: #{conv_residual_forward.3} parent=5 // pred_region
      %s252 = ssub.s32 %s13, 1
      %p253 = scmp.lt.s32.totalorder %s18, 1
      %s254 = scalar_select %p253, %s18, 1
      %s255 = smul.addr %s254, 2
      %s256 = smul.addr %s255, 4
      %s257 = scalar_lea.vmem %s0, %s256
      %p258 = pneg %p39
      %p259 = pneg %p36
      %p260 = pneg %p60
      %p261 = pneg %p57
      %p262 = pneg %p81
      %p263 = pneg %p78
      %p264 = pneg %p102
      %p265 = pneg %p99
      %p266 = pneg %p123
      %p267 = pneg %p120
      %p268 = scmp.lt.s32.totalorder %s18, 1
      %s269 = scalar_select %p268, %s18, 1
      %s270 = smul.addr %s269, 2
      %s271 = smul.addr %s270, 4
      %s272 = scalar_lea.vmem %s5, %s271
      %p273 = pneg %p149
      %p274 = pneg %p146
      %p275 = pneg %p170
      %p276 = pneg %p167
      %p277 = pneg %p196
      %p278 = pneg %p193
      %p279 = scmp.lt.s32.totalorder %s18, 1
      %s280 = scalar_select %p279, %s18, 1
      %s281 = smul.addr %s280, 2
      %s282 = smul.addr %s281, 8
      %s283 = scalar_lea.vmem %s7, %s282
      %p284 = scmp.lt.s32.totalorder %s18, 1
      %s285 = scalar_select %p284, %s18, 1
      %s286 = smul.addr %s285, 2
      %s287 = smul.addr %s286, 4
      %s288 = scalar_lea.vmem %s0, %s287
      %p289 = scmp.lt.s32.totalorder %s18, 1
      %s290 = scalar_select %p289, %s18, 1
      %s291 = smul.addr %s290, 2
      %s292 = smul.addr %s291, 4
      %s293 = scalar_lea.vmem %s5, %s292
      %p294 = scmp.lt.s32.totalorder %s18, 1
      %s295 = scalar_select %p294, %s18, 1
      %s296 = smul.addr %s295, 2
      %s297 = smul.addr %s296, 8
      %s298 = scalar_lea.vmem %s7, %s297
      %v300 = vld [vmem:[%s288] sm:$0xff]
      %v301 = vld [vmem:[%s6] sm:$0x3]
      %v302 = vld [vmem:[%s1] sm:$0xff]
      %v303 = vld [vmem:[%s2] sm:$0xff]
      %v304 = vld [vmem:[%s4] sm:$0xff]
      %vm305 = vcmask 134144
      %306 = vst.msk [vmem:[#allocation2] sm:$0xf] %vm305, 0
      %vm307 = vcmask 273544
      %308 = vst.msk [vmem:[#allocation2 + $0x8] sm:$0xf] %vm307, 0
      %v309 = vunpack.c.l.bf16 %v300
      %v310 = vunpack.c.h.bf16 %v300
      %312 = vset.pattern.permute.xlu0 0
      %313 = vperm.xlu0 %312, %v302
      %v314 = vpop.permute.xlu0 %313
      %v316 = vmul.f32 %v309, %v314
      %v317 = vmul.f32 %v310, %v314
      %319 = vset.pattern.permute.xlu0 0
      %320 = vperm.xlu0 %319, %v303
      %v321 = vpop.permute.xlu0 %320
      %v323 = vadd.f32 %v316, %v321
      %v324 = vadd.f32 %v317, %v321
      %v325 = vmax.f32 %v323, 0.0
      %v326 = vmax.f32 %v324, 0.0
      %v327 = vpack.c.bf16 %v325, %v325
      %v328 = vpack.c.bf16 %v326, %v326
      %v331 = vunpack.c.l.b16 %v327
      %v332 = vunpack.c.l.b16 %v328
      %v333 = vpack.c.b16 %v332, %v331
      %334 = vrot.lane.b32.xlu0 %v333, 17
      %v335 = vpop.permute.xlu0 %334
      %v336 = vrot.slane %v335, 4
      %vm337 = vcmask 138240
      %v338 = vsel %vm337, %v336, %v335
      %vm341 = vcmask 1043592
      %vm342 = vcmask 1047556
      %vm343 = vmor %vm342, %vm341
      %344 = vst.msk [vmem:[#allocation2] sm:$0xff] %vm343, %v338
      %345 = vst.msk [vmem:[#allocation2 + $0x8] sm:$0xf] %vm305, %v336
      %v346 = vld [vmem:[#allocation2] sm:$0xff]
      %v349 = vunpack.c.l.s4 1966171168
      %v350 = vunpack.c.0.s8 %v349
      %v351 = vlaneseq
      %v352 = vshrl.u32 %v351, 7
      %v353 = vsub.s32 %v350, %v352
      %v354 = vrot.slane %v301, %v353
      %v355 = vcombine.high %v354, %v354
      %v357 = vunpack.c.l.s4 1966171168
      %v358 = vunpack.c.0.s8 %v357
      %v359 = vlaneseq
      %v360 = vshrl.u32 %v359, 7
      %v361 = vsub.s32 %v358, %v360
      %v362 = vrot.slane %v354, %v361
      %v364 = vunpack.c.l.s4 1966171168
      %v365 = vunpack.c.0.s8 %v364
      %v366 = vlaneseq
      %v367 = vshrl.u32 %v366, 7
      %v368 = vsub.s32 %v365, %v367
      %v369 = vrot.slane %v355, %v368
      %v371 = vpack.i.b16 %v362, %v362
      %v373 = vlaneseq
      %v374 = vshrl.u32 %v373, 7
      %v375 = vsub.s32 0, %v374
      %v376 = vrot.slane %v371, %v375
      %v378 = vpack.i.b16 %v369, %v369
      %v380 = vlaneseq
      %v381 = vshrl.u32 %v380, 7
      %v382 = vsub.s32 0, %v381
      %v383 = vrot.slane %v378, %v382
      %v386 = vunpack.c.l.b16 %v376
      %v387 = vunpack.c.l.b16 %v383
      %v388 = vpack.c.b16 %v387, %v386
      %v390 = vmul.bf16 %v346, %v388
      %v391 = vld [vmem:[%s3] sm:$0xf]
      %v392 = vld [vmem:[#allocation2 + $0x8] sm:$0xf]
      %s393 = scalar_lea.vmem %s3, 4
      %v394 = vld [vmem:[%s393] sm:$0xf]
      %v397 = vunpack.c.l.b16 %v346
      %v398 = vunpack.c.h.b16 %v346
      %v399 = vunpack.c.l.b16 %v392
      %v400 = vpack.c.b16 %v397, %v397
      %v401 = vpack.c.b16 %v398, %v398
      %v402 = vpack.c.b16 %v399, %v399
      %403 = vrot.lane.b32.xlu0 %v400, 127
      %v404 = vpop.permute.xlu0 %403
      %405 = vrot.lane.b32.xlu0 %v401, 127
      %v406 = vpop.permute.xlu0 %405
      %407 = vrot.lane.b32.xlu0 %v402, 127
      %v408 = vpop.permute.xlu0 %407
      %vm409 = vcmask 1039360
      %v410 = vsel %vm409, %v404, %v406
      %v411 = vsel %vm409, %v406, %v408
      %vm412 = vcmask 64512
      %v414 = vsel %vm412, %v394, 0
      %vm416 = vcmask 1043456
      %v418 = vsel %vm416, %v410, 0
      %v421 = vsel %vm416, %v411, 0
      %423 = vmatprep.subr.bf16.mxu0 0
      %424 = vmatpush1.bf16.msra.mxu0 0
      %425 = vmatprep.subr.bf16.mxu0 0
      %426 = vmatpush1.bf16.msra.mxu0 0
      %427 = vmatprep.subr.bf16.mxu0 0
      %428 = vmatpush1.bf16.msra.mxu0 0
      %429 = vmatprep.subr.bf16.mxu0 0
      %430 = vmatpush1.bf16.msra.mxu0 0
      %431 = vmatprep.subr.bf16.mxu0 0
      %432 = vmatpush1.bf16.msra.mxu0 0
      %433 = vmatprep.subr.bf16.mxu0 0
      %434 = vmatpush1.bf16.msra.mxu0 0
      %435 = vmatprep.subr.bf16.mxu0 0
      %436 = vmatpush1.bf16.msra.mxu0 0
      %437 = vmatprep.subr.bf16.mxu0 %v421
      %438 = vmatpush1.bf16.msra.mxu0 %v418
      %439 = vmatprep.subr.bf16.mxu0 0
      %440 = vmatpush2.bf16.msra.mxu0 0
      %441 = vmatprep.subr.bf16.mxu0 0
      %442 = vmatpush2.bf16.msra.mxu0 0
      %443 = vmatprep.subr.bf16.mxu0 0
      %444 = vmatpush2.bf16.msra.mxu0 0
      %445 = vmatprep.subr.bf16.mxu0 0
      %446 = vmatpush2.bf16.msra.mxu0 0
      %447 = vmatprep.subr.bf16.mxu0 0
      %448 = vmatpush2.bf16.msra.mxu0 0
      %449 = vmatprep.subr.bf16.mxu0 0
      %450 = vmatpush2.bf16.msra.mxu0 0
      %451 = vmatprep.subr.bf16.mxu0 0
      %452 = vmatpush2.bf16.msra.mxu0 0
      %453 = vmatprep.subr.bf16.mxu0 0
      %454 = vmatpush2.bf16.msra.mxu0 0
      %455 = vmatprep.mubr.bf16.mxu0 0
      %456 = vmatmul.mubr.bf16.gmra.mxu0 %v414
      %v457 = vpop.f32.mrf.mxu0
      %v458 = vadd.f32 0.0, %v457
      %v459 = vpop.f32.mrf.mxu0
      %v460 = vadd.f32 0.0, %v459
      %v461 = vpop.f32.mrf.mxu0
      %v462 = vpop.f32.mrf.mxu0
      %463 = vdwg.mxu0
      %v465 = vunpack.c.l.b16 %v390
      %v466 = vunpack.c.h.b16 %v390
      %v467 = vpack.c.b16 %v465, %v465
      %v468 = vpack.c.b16 %v466, %v466
      %v470 = vsel %vm412, %v391, 0
      %v473 = vsel %vm416, %v467, 0
      %v476 = vsel %vm416, %v468, 0
      %478 = vmatprep.subr.bf16.mxu0 0
      %479 = vmatpush1.bf16.msra.mxu0 0
      %480 = vmatprep.subr.bf16.mxu0 0
      %481 = vmatpush1.bf16.msra.mxu0 0
      %482 = vmatprep.subr.bf16.mxu0 0
      %483 = vmatpush1.bf16.msra.mxu0 0
      %484 = vmatprep.subr.bf16.mxu0 0
      %485 = vmatpush1.bf16.msra.mxu0 0
      %486 = vmatprep.subr.bf16.mxu0 0
      %487 = vmatpush1.bf16.msra.mxu0 0
      %488 = vmatprep.subr.bf16.mxu0 0
      %489 = vmatpush1.bf16.msra.mxu0 0
      %490 = vmatprep.subr.bf16.mxu0 0
      %491 = vmatpush1.bf16.msra.mxu0 0
      %492 = vmatprep.subr.bf16.mxu0 %v476
      %493 = vmatpush1.bf16.msra.mxu0 %v473
      %494 = vmatprep.subr.bf16.mxu0 0
      %495 = vmatpush2.bf16.msra.mxu0 0
      %496 = vmatprep.subr.bf16.mxu0 0
      %497 = vmatpush2.bf16.msra.mxu0 0
      %498 = vmatprep.subr.bf16.mxu0 0
      %499 = vmatpush2.bf16.msra.mxu0 0
      %500 = vmatprep.subr.bf16.mxu0 0
      %501 = vmatpush2.bf16.msra.mxu0 0
      %502 = vmatprep.subr.bf16.mxu0 0
      %503 = vmatpush2.bf16.msra.mxu0 0
      %504 = vmatprep.subr.bf16.mxu0 0
      %505 = vmatpush2.bf16.msra.mxu0 0
      %506 = vmatprep.subr.bf16.mxu0 0
      %507 = vmatpush2.bf16.msra.mxu0 0
      %508 = vmatprep.subr.bf16.mxu0 0
      %509 = vmatpush2.bf16.msra.mxu0 0
      %510 = vmatprep.mubr.bf16.mxu0 0
      %511 = vmatmul.mubr.bf16.gmra.mxu0 %v470
      %v512 = vpop.f32.mrf.mxu0
      %v513 = vadd.f32 %v458, %v512
      %v514 = vpop.f32.mrf.mxu0
      %v515 = vadd.f32 %v460, %v514
      %v516 = vpop.f32.mrf.mxu0
      %v517 = vpop.f32.mrf.mxu0
      %518 = vdwg.mxu0
      %v519 = vshrl.u32 %v362, 16
      %v520 = vpack.i.b16 %v519, %v519
      %v522 = vlaneseq
      %v523 = vshrl.u32 %v522, 7
      %v524 = vsub.s32 0, %v523
      %v525 = vrot.slane %v520, %v524
      %v526 = vshrl.u32 %v369, 16
      %v527 = vpack.i.b16 %v526, %v526
      %v529 = vlaneseq
      %v530 = vshrl.u32 %v529, 7
      %v531 = vsub.s32 0, %v530
      %v532 = vrot.slane %v527, %v531
      %v535 = vunpack.c.l.b16 %v525
      %v536 = vunpack.c.l.b16 %v532
      %v537 = vpack.c.b16 %v536, %v535
      %538 = vrot.lane.b32.xlu0 %v537, 2
      %v539 = vpop.permute.xlu0 %538
      %v540 = vrot.slane %v539, 4
      %vm541 = vcmask 15360
      %v542 = vsel %vm541, %v540, %v539
      %v545 = vmul.bf16 %v346, %v542
      %v546 = vmul.bf16 %v392, %v540
      %s547 = scalar_lea.vmem %s3, 8
      %v548 = vld [vmem:[%s547] sm:$0xf]
      %v551 = vunpack.c.l.b16 %v545
      %v552 = vunpack.c.h.b16 %v545
      %v553 = vunpack.c.l.b16 %v546
      %v554 = vpack.c.b16 %v551, %v551
      %v555 = vpack.c.b16 %v552, %v552
      %v556 = vpack.c.b16 %v553, %v553
      %557 = vrot.lane.b32.xlu0 %v554, 126
      %v558 = vpop.permute.xlu0 %557
      %559 = vrot.lane.b32.xlu0 %v555, 126
      %v560 = vpop.permute.xlu0 %559
      %561 = vrot.lane.b32.xlu0 %v556, 126
      %v562 = vpop.permute.xlu0 %561
      %vm563 = vcmask 1031168
      %v564 = vsel %vm563, %v558, %v560
      %v565 = vsel %vm563, %v560, %v562
      %v567 = vsel %vm412, %v548, 0
      %v570 = vsel %vm416, %v564, 0
      %v573 = vsel %vm416, %v565, 0
      %575 = vmatprep.subr.bf16.mxu0 0
      %576 = vmatpush1.bf16.msra.mxu0 0
      %577 = vmatprep.subr.bf16.mxu0 0
      %578 = vmatpush1.bf16.msra.mxu0 0
      %579 = vmatprep.subr.bf16.mxu0 0
      %580 = vmatpush1.bf16.msra.mxu0 0
      %581 = vmatprep.subr.bf16.mxu0 0
      %582 = vmatpush1.bf16.msra.mxu0 0
      %583 = vmatprep.subr.bf16.mxu0 0
      %584 = vmatpush1.bf16.msra.mxu0 0
      %585 = vmatprep.subr.bf16.mxu0 0
      %586 = vmatpush1.bf16.msra.mxu0 0
      %587 = vmatprep.subr.bf16.mxu0 0
      %588 = vmatpush1.bf16.msra.mxu0 0
      %589 = vmatprep.subr.bf16.mxu0 %v573
      %590 = vmatpush1.bf16.msra.mxu0 %v570
      %591 = vmatprep.subr.bf16.mxu0 0
      %592 = vmatpush2.bf16.msra.mxu0 0
      %593 = vmatprep.subr.bf16.mxu0 0
      %594 = vmatpush2.bf16.msra.mxu0 0
      %595 = vmatprep.subr.bf16.mxu0 0
      %596 = vmatpush2.bf16.msra.mxu0 0
      %597 = vmatprep.subr.bf16.mxu0 0
      %598 = vmatpush2.bf16.msra.mxu0 0
      %599 = vmatprep.subr.bf16.mxu0 0
      %600 = vmatpush2.bf16.msra.mxu0 0
      %601 = vmatprep.subr.bf16.mxu0 0
      %602 = vmatpush2.bf16.msra.mxu0 0
      %603 = vmatprep.subr.bf16.mxu0 0
      %604 = vmatpush2.bf16.msra.mxu0 0
      %605 = vmatprep.subr.bf16.mxu0 0
      %606 = vmatpush2.bf16.msra.mxu0 0
      %607 = vmatprep.mubr.bf16.mxu0 0
      %608 = vmatmul.mubr.bf16.gmra.mxu0 %v567
      %v609 = vpop.f32.mrf.mxu0
      %v610 = vadd.f32 0.0, %v609
      %v611 = vpop.f32.mrf.mxu0
      %v612 = vadd.f32 0.0, %v611
      %v613 = vpop.f32.mrf.mxu0
      %v614 = vpop.f32.mrf.mxu0
      %615 = vdwg.mxu0
      %v616 = vadd.f32 %v513, %v610
      %v617 = vadd.f32 %v515, %v612
      %v618 = vld [vmem:[#allocation2] sm:$0xff]
      %v619 = vld [vmem:[#allocation2 + $0x8] sm:$0xf]
      %620 = vrot.lane.b32.xlu0 %v388, 16
      %v621 = vpop.permute.xlu0 %620
      %v622 = vrot.slane %v621, 4
      %vm623 = vcmask 130048
      %v624 = vsel %vm623, %v622, %v621
      %v627 = vmul.bf16 %v618, %v624
      %v628 = vmul.bf16 %v619, %v622
      %s629 = scalar_lea.vmem %s3, 12
      %v630 = vld [vmem:[%s629] sm:$0xf]
      %v633 = vunpack.c.l.b16 %v627
      %v634 = vunpack.c.h.b16 %v627
      %v635 = vunpack.c.l.b16 %v628
      %v636 = vpack.c.b16 %v633, %v633
      %v637 = vpack.c.b16 %v634, %v634
      %v638 = vpack.c.b16 %v635, %v635
      %639 = vrot.lane.b32.xlu0 %v636, 112
      %v640 = vpop.permute.xlu0 %639
      %641 = vrot.lane.b32.xlu0 %v637, 112
      %v642 = vpop.permute.xlu0 %641
      %643 = vrot.lane.b32.xlu0 %v638, 112
      %v644 = vpop.permute.xlu0 %643
      %vm645 = vcmask 916480
      %v646 = vsel %vm645, %v640, %v642
      %v647 = vsel %vm645, %v642, %v644
      %v649 = vsel %vm412, %v630, 0
      %v652 = vsel %vm416, %v646, 0
      %v655 = vsel %vm416, %v647, 0
      %657 = vmatprep.subr.bf16.mxu0 0
      %658 = vmatpush1.bf16.msra.mxu0 0
      %659 = vmatprep.subr.bf16.mxu0 0
      %660 = vmatpush1.bf16.msra.mxu0 0
      %661 = vmatprep.subr.bf16.mxu0 0
      %662 = vmatpush1.bf16.msra.mxu0 0
      %663 = vmatprep.subr.bf16.mxu0 0
      %664 = vmatpush1.bf16.msra.mxu0 0
      %665 = vmatprep.subr.bf16.mxu0 0
      %666 = vmatpush1.bf16.msra.mxu0 0
      %667 = vmatprep.subr.bf16.mxu0 0
      %668 = vmatpush1.bf16.msra.mxu0 0
      %669 = vmatprep.subr.bf16.mxu0 0
      %670 = vmatpush1.bf16.msra.mxu0 0
      %671 = vmatprep.subr.bf16.mxu0 %v655
      %672 = vmatpush1.bf16.msra.mxu0 %v652
      %673 = vmatprep.subr.bf16.mxu0 0
      %674 = vmatpush2.bf16.msra.mxu0 0
      %675 = vmatprep.subr.bf16.mxu0 0
      %676 = vmatpush2.bf16.msra.mxu0 0
      %677 = vmatprep.subr.bf16.mxu0 0
      %678 = vmatpush2.bf16.msra.mxu0 0
      %679 = vmatprep.subr.bf16.mxu0 0
      %680 = vmatpush2.bf16.msra.mxu0 0
      %681 = vmatprep.subr.bf16.mxu0 0
      %682 = vmatpush2.bf16.msra.mxu0 0
      %683 = vmatprep.subr.bf16.mxu0 0
      %684 = vmatpush2.bf16.msra.mxu0 0
      %685 = vmatprep.subr.bf16.mxu0 0
      %686 = vmatpush2.bf16.msra.mxu0 0
      %687 = vmatprep.subr.bf16.mxu0 0
      %688 = vmatpush2.bf16.msra.mxu0 0
      %689 = vmatprep.mubr.bf16.mxu0 0
      %690 = vmatmul.mubr.bf16.gmra.mxu0 %v649
      %v691 = vpop.f32.mrf.mxu0
      %v692 = vadd.f32 0.0, %v691
      %v693 = vpop.f32.mrf.mxu0
      %v694 = vadd.f32 0.0, %v693
      %v695 = vpop.f32.mrf.mxu0
      %v696 = vpop.f32.mrf.mxu0
      %697 = vdwg.mxu0
      %v698 = vadd.f32 %v616, %v692
      %v699 = vadd.f32 %v617, %v694
      %s700 = scalar_lea.vmem %s3, 16
      %v701 = vld [vmem:[%s700] sm:$0xf]
      %v704 = vunpack.c.l.b16 %v618
      %v705 = vunpack.c.h.b16 %v618
      %v706 = vunpack.c.l.b16 %v619
      %v707 = vpack.c.b16 %v704, %v704
      %v708 = vpack.c.b16 %v705, %v705
      %v709 = vpack.c.b16 %v706, %v706
      %710 = vrot.lane.b32.xlu0 %v707, 111
      %v711 = vpop.permute.xlu0 %710
      %712 = vrot.lane.b32.xlu0 %v708, 111
      %v713 = vpop.permute.xlu0 %712
      %714 = vrot.lane.b32.xlu0 %v709, 111
      %v715 = vpop.permute.xlu0 %714
      %vm716 = vcmask 908288
      %v717 = vsel %vm716, %v711, %v713
      %v718 = vsel %vm716, %v713, %v715
      %v720 = vsel %vm412, %v701, 0
      %v723 = vsel %vm416, %v717, 0
      %v726 = vsel %vm416, %v718, 0
      %728 = vmatprep.subr.bf16.mxu0 0
      %729 = vmatpush1.bf16.msra.mxu0 0
      %730 = vmatprep.subr.bf16.mxu0 0
      %731 = vmatpush1.bf16.msra.mxu0 0
      %732 = vmatprep.subr.bf16.mxu0 0
      %733 = vmatpush1.bf16.msra.mxu0 0
      %734 = vmatprep.subr.bf16.mxu0 0
      %735 = vmatpush1.bf16.msra.mxu0 0
      %736 = vmatprep.subr.bf16.mxu0 0
      %737 = vmatpush1.bf16.msra.mxu0 0
      %738 = vmatprep.subr.bf16.mxu0 0
      %739 = vmatpush1.bf16.msra.mxu0 0
      %740 = vmatprep.subr.bf16.mxu0 0
      %741 = vmatpush1.bf16.msra.mxu0 0
      %742 = vmatprep.subr.bf16.mxu0 %v726
      %743 = vmatpush1.bf16.msra.mxu0 %v723
      %744 = vmatprep.subr.bf16.mxu0 0
      %745 = vmatpush2.bf16.msra.mxu0 0
      %746 = vmatprep.subr.bf16.mxu0 0
      %747 = vmatpush2.bf16.msra.mxu0 0
      %748 = vmatprep.subr.bf16.mxu0 0
      %749 = vmatpush2.bf16.msra.mxu0 0
      %750 = vmatprep.subr.bf16.mxu0 0
      %751 = vmatpush2.bf16.msra.mxu0 0
      %752 = vmatprep.subr.bf16.mxu0 0
      %753 = vmatpush2.bf16.msra.mxu0 0
      %754 = vmatprep.subr.bf16.mxu0 0
      %755 = vmatpush2.bf16.msra.mxu0 0
      %756 = vmatprep.subr.bf16.mxu0 0
      %757 = vmatpush2.bf16.msra.mxu0 0
      %758 = vmatprep.subr.bf16.mxu0 0
      %759 = vmatpush2.bf16.msra.mxu0 0
      %760 = vmatprep.mubr.bf16.mxu0 0
      %761 = vmatmul.mubr.bf16.gmra.mxu0 %v720
      %v762 = vpop.f32.mrf.mxu0
      %v763 = vadd.f32 0.0, %v762
      %v764 = vpop.f32.mrf.mxu0
      %v765 = vadd.f32 0.0, %v764
      %v766 = vpop.f32.mrf.mxu0
      %v767 = vpop.f32.mrf.mxu0
      %768 = vdwg.mxu0
      %v769 = vadd.f32 %v698, %v763
      %v770 = vadd.f32 %v699, %v765
      %771 = vrot.lane.b32.xlu0 %v537, 18
      %v772 = vpop.permute.xlu0 %771
      %v773 = vrot.slane %v772, 4
      %vm774 = vcmask 146432
      %v775 = vsel %vm774, %v773, %v772
      %v778 = vmul.bf16 %v618, %v775
      %v779 = vmul.bf16 %v619, %v773
      %s780 = scalar_lea.vmem %s3, 20
      %v781 = vld [vmem:[%s780] sm:$0xf]
      %v784 = vunpack.c.l.b16 %v778
      %v785 = vunpack.c.h.b16 %v778
      %v786 = vunpack.c.l.b16 %v779
      %v787 = vpack.c.b16 %v784, %v784
      %v788 = vpack.c.b16 %v785, %v785
      %v789 = vpack.c.b16 %v786, %v786
      %790 = vrot.lane.b32.xlu0 %v787, 110
      %v791 = vpop.permute.xlu0 %790
      %792 = vrot.lane.b32.xlu0 %v788, 110
      %v793 = vpop.permute.xlu0 %792
      %794 = vrot.lane.b32.xlu0 %v789, 110
      %v795 = vpop.permute.xlu0 %794
      %vm796 = vcmask 900096
      %v797 = vsel %vm796, %v791, %v793
      %v798 = vsel %vm796, %v793, %v795
      %v800 = vsel %vm412, %v781, 0
      %v803 = vsel %vm416, %v797, 0
      %v806 = vsel %vm416, %v798, 0
      %808 = vmatprep.subr.bf16.mxu0 0
      %809 = vmatpush1.bf16.msra.mxu0 0
      %810 = vmatprep.subr.bf16.mxu0 0
      %811 = vmatpush1.bf16.msra.mxu0 0
      %812 = vmatprep.subr.bf16.mxu0 0
      %813 = vmatpush1.bf16.msra.mxu0 0
      %814 = vmatprep.subr.bf16.mxu0 0
      %815 = vmatpush1.bf16.msra.mxu0 0
      %816 = vmatprep.subr.bf16.mxu0 0
      %817 = vmatpush1.bf16.msra.mxu0 0
      %818 = vmatprep.subr.bf16.mxu0 0
      %819 = vmatpush1.bf16.msra.mxu0 0
      %820 = vmatprep.subr.bf16.mxu0 0
      %821 = vmatpush1.bf16.msra.mxu0 0
      %822 = vmatprep.subr.bf16.mxu0 %v806
      %823 = vmatpush1.bf16.msra.mxu0 %v803
      %824 = vmatprep.subr.bf16.mxu0 0
      %825 = vmatpush2.bf16.msra.mxu0 0
      %826 = vmatprep.subr.bf16.mxu0 0
      %827 = vmatpush2.bf16.msra.mxu0 0
      %828 = vmatprep.subr.bf16.mxu0 0
      %829 = vmatpush2.bf16.msra.mxu0 0
      %830 = vmatprep.subr.bf16.mxu0 0
      %831 = vmatpush2.bf16.msra.mxu0 0
      %832 = vmatprep.subr.bf16.mxu0 0
      %833 = vmatpush2.bf16.msra.mxu0 0
      %834 = vmatprep.subr.bf16.mxu0 0
      %835 = vmatpush2.bf16.msra.mxu0 0
      %836 = vmatprep.subr.bf16.mxu0 0
      %837 = vmatpush2.bf16.msra.mxu0 0
      %838 = vmatprep.subr.bf16.mxu0 0
      %839 = vmatpush2.bf16.msra.mxu0 0
      %840 = vmatprep.mubr.bf16.mxu0 0
      %841 = vmatmul.mubr.bf16.gmra.mxu0 %v800
      %v842 = vpop.f32.mrf.mxu0
      %v843 = vadd.f32 0.0, %v842
      %v844 = vpop.f32.mrf.mxu0
      %v845 = vadd.f32 0.0, %v844
      %v846 = vpop.f32.mrf.mxu0
      %v847 = vpop.f32.mrf.mxu0
      %848 = vdwg.mxu0
      %v849 = vadd.f32 %v769, %v843
      %v850 = vadd.f32 %v770, %v845
      %851 = vrot.lane.b32.xlu0 %v388, 32
      %v852 = vpop.permute.xlu0 %851
      %v853 = vrot.slane %v852, 4
      %vm854 = vcmask 261120
      %v855 = vsel %vm854, %v853, %v852
      %v858 = vmul.bf16 %v618, %v855
      %v859 = vmul.bf16 %v619, %v853
      %s860 = scalar_lea.vmem %s3, 24
      %v861 = vld [vmem:[%s860] sm:$0xf]
      %v864 = vunpack.c.l.b16 %v858
      %v865 = vunpack.c.h.b16 %v858
      %v866 = vunpack.c.l.b16 %v859
      %v867 = vpack.c.b16 %v864, %v864
      %v868 = vpack.c.b16 %v865, %v865
      %v869 = vpack.c.b16 %v866, %v866
      %870 = vrot.lane.b32.xlu0 %v867, 96
      %v871 = vpop.permute.xlu0 %870
      %872 = vrot.lane.b32.xlu0 %v868, 96
      %v873 = vpop.permute.xlu0 %872
      %874 = vrot.lane.b32.xlu0 %v869, 96
      %v875 = vpop.permute.xlu0 %874
      %vm876 = vcmask 785408
      %v877 = vsel %vm876, %v871, %v873
      %v878 = vsel %vm876, %v873, %v875
      %v880 = vsel %vm412, %v861, 0
      %v883 = vsel %vm416, %v877, 0
      %v886 = vsel %vm416, %v878, 0
      %888 = vmatprep.subr.bf16.mxu0 0
      %889 = vmatpush1.bf16.msra.mxu0 0
      %890 = vmatprep.subr.bf16.mxu0 0
      %891 = vmatpush1.bf16.msra.mxu0 0
      %892 = vmatprep.subr.bf16.mxu0 0
      %893 = vmatpush1.bf16.msra.mxu0 0
      %894 = vmatprep.subr.bf16.mxu0 0
      %895 = vmatpush1.bf16.msra.mxu0 0
      %896 = vmatprep.subr.bf16.mxu0 0
      %897 = vmatpush1.bf16.msra.mxu0 0
      %898 = vmatprep.subr.bf16.mxu0 0
      %899 = vmatpush1.bf16.msra.mxu0 0
      %900 = vmatprep.subr.bf16.mxu0 0
      %901 = vmatpush1.bf16.msra.mxu0 0
      %902 = vmatprep.subr.bf16.mxu0 %v886
      %903 = vmatpush1.bf16.msra.mxu0 %v883
      %904 = vmatprep.subr.bf16.mxu0 0
      %905 = vmatpush2.bf16.msra.mxu0 0
      %906 = vmatprep.subr.bf16.mxu0 0
      %907 = vmatpush2.bf16.msra.mxu0 0
      %908 = vmatprep.subr.bf16.mxu0 0
      %909 = vmatpush2.bf16.msra.mxu0 0
      %910 = vmatprep.subr.bf16.mxu0 0
      %911 = vmatpush2.bf16.msra.mxu0 0
      %912 = vmatprep.subr.bf16.mxu0 0
      %913 = vmatpush2.bf16.msra.mxu0 0
      %914 = vmatprep.subr.bf16.mxu0 0
      %915 = vmatpush2.bf16.msra.mxu0 0
      %916 = vmatprep.subr.bf16.mxu0 0
      %917 = vmatpush2.bf16.msra.mxu0 0
      %918 = vmatprep.subr.bf16.mxu0 0
      %919 = vmatpush2.bf16.msra.mxu0 0
      %920 = vmatprep.mubr.bf16.mxu0 0
      %921 = vmatmul.mubr.bf16.gmra.mxu0 %v880
      %v922 = vpop.f32.mrf.mxu0
      %v923 = vadd.f32 0.0, %v922
      %v924 = vpop.f32.mrf.mxu0
      %v925 = vadd.f32 0.0, %v924
      %v926 = vpop.f32.mrf.mxu0
      %v927 = vpop.f32.mrf.mxu0
      %928 = vdwg.mxu0
      %v929 = vadd.f32 %v849, %v923
      %v930 = vadd.f32 %v850, %v925
      %s931 = scalar_lea.vmem %s3, 28
      %v932 = vld [vmem:[%s931] sm:$0xf]
      %933 = vrot.lane.b32.xlu0 %v707, 95
      %v934 = vpop.permute.xlu0 %933
      %935 = vrot.lane.b32.xlu0 %v708, 95
      %v936 = vpop.permute.xlu0 %935
      %937 = vrot.lane.b32.xlu0 %v709, 95
      %v938 = vpop.permute.xlu0 %937
      %vm939 = vcmask 777216
      %v940 = vsel %vm939, %v934, %v936
      %v941 = vsel %vm939, %v936, %v938
      %v943 = vsel %vm412, %v932, 0
      %v946 = vsel %vm416, %v940, 0
      %v949 = vsel %vm416, %v941, 0
      %951 = vmatprep.subr.bf16.mxu0 0
      %952 = vmatpush1.bf16.msra.mxu0 0
      %953 = vmatprep.subr.bf16.mxu0 0
      %954 = vmatpush1.bf16.msra.mxu0 0
      %955 = vmatprep.subr.bf16.mxu0 0
      %956 = vmatpush1.bf16.msra.mxu0 0
      %957 = vmatprep.subr.bf16.mxu0 0
      %958 = vmatpush1.bf16.msra.mxu0 0
      %959 = vmatprep.subr.bf16.mxu0 0
      %960 = vmatpush1.bf16.msra.mxu0 0
      %961 = vmatprep.subr.bf16.mxu0 0
      %962 = vmatpush1.bf16.msra.mxu0 0
      %963 = vmatprep.subr.bf16.mxu0 0
      %964 = vmatpush1.bf16.msra.mxu0 0
      %965 = vmatprep.subr.bf16.mxu0 %v949
      %966 = vmatpush1.bf16.msra.mxu0 %v946
      %967 = vmatprep.subr.bf16.mxu0 0
      %968 = vmatpush2.bf16.msra.mxu0 0
      %969 = vmatprep.subr.bf16.mxu0 0
      %970 = vmatpush2.bf16.msra.mxu0 0
      %971 = vmatprep.subr.bf16.mxu0 0
      %972 = vmatpush2.bf16.msra.mxu0 0
      %973 = vmatprep.subr.bf16.mxu0 0
      %974 = vmatpush2.bf16.msra.mxu0 0
      %975 = vmatprep.subr.bf16.mxu0 0
      %976 = vmatpush2.bf16.msra.mxu0 0
      %977 = vmatprep.subr.bf16.mxu0 0
      %978 = vmatpush2.bf16.msra.mxu0 0
      %979 = vmatprep.subr.bf16.mxu0 0
      %980 = vmatpush2.bf16.msra.mxu0 0
      %981 = vmatprep.subr.bf16.mxu0 0
      %982 = vmatpush2.bf16.msra.mxu0 0
      %983 = vmatprep.mubr.bf16.mxu0 0
      %984 = vmatmul.mubr.bf16.gmra.mxu0 %v943
      %v985 = vpop.f32.mrf.mxu0
      %v986 = vadd.f32 0.0, %v985
      %v987 = vpop.f32.mrf.mxu0
      %v988 = vadd.f32 0.0, %v987
      %v989 = vpop.f32.mrf.mxu0
      %v990 = vpop.f32.mrf.mxu0
      %991 = vdwg.mxu0
      %v992 = vadd.f32 %v929, %v986
      %v993 = vadd.f32 %v930, %v988
      %994 = vrot.lane.b32.xlu0 %v537, 34
      %v995 = vpop.permute.xlu0 %994
      %v996 = vrot.slane %v995, 4
      %vm997 = vcmask 277504
      %v998 = vsel %vm997, %v996, %v995
      %v1001 = vmul.bf16 %v618, %v998
      %v1002 = vmul.bf16 %v619, %v996
      %s1003 = scalar_lea.vmem %s3, 32
      %v1004 = vld [vmem:[%s1003] sm:$0xf]
      %v1007 = vunpack.c.l.b16 %v1001
      %v1008 = vunpack.c.h.b16 %v1001
      %v1009 = vunpack.c.l.b16 %v1002
      %v1010 = vpack.c.b16 %v1007, %v1007
      %v1011 = vpack.c.b16 %v1008, %v1008
      %v1012 = vpack.c.b16 %v1009, %v1009
      %1013 = vrot.lane.b32.xlu0 %v1010, 94
      %v1014 = vpop.permute.xlu0 %1013
      %1015 = vrot.lane.b32.xlu0 %v1011, 94
      %v1016 = vpop.permute.xlu0 %1015
      %1017 = vrot.lane.b32.xlu0 %v1012, 94
      %v1018 = vpop.permute.xlu0 %1017
      %vm1019 = vcmask 769024
      %v1020 = vsel %vm1019, %v1014, %v1016
      %v1021 = vsel %vm1019, %v1016, %v1018
      %v1023 = vsel %vm412, %v1004, 0
      %v1026 = vsel %vm416, %v1020, 0
      %v1029 = vsel %vm416, %v1021, 0
      %1031 = vmatprep.subr.bf16.mxu0 0
      %1032 = vmatpush1.bf16.msra.mxu0 0
      %1033 = vmatprep.subr.bf16.mxu0 0
      %1034 = vmatpush1.bf16.msra.mxu0 0
      %1035 = vmatprep.subr.bf16.mxu0 0
      %1036 = vmatpush1.bf16.msra.mxu0 0
      %1037 = vmatprep.subr.bf16.mxu0 0
      %1038 = vmatpush1.bf16.msra.mxu0 0
      %1039 = vmatprep.subr.bf16.mxu0 0
      %1040 = vmatpush1.bf16.msra.mxu0 0
      %1041 = vmatprep.subr.bf16.mxu0 0
      %1042 = vmatpush1.bf16.msra.mxu0 0
      %1043 = vmatprep.subr.bf16.mxu0 0
      %1044 = vmatpush1.bf16.msra.mxu0 0
      %1045 = vmatprep.subr.bf16.mxu0 %v1029
      %1046 = vmatpush1.bf16.msra.mxu0 %v1026
      %1047 = vmatprep.subr.bf16.mxu0 0
      %1048 = vmatpush2.bf16.msra.mxu0 0
      %1049 = vmatprep.subr.bf16.mxu0 0
      %1050 = vmatpush2.bf16.msra.mxu0 0
      %1051 = vmatprep.subr.bf16.mxu0 0
      %1052 = vmatpush2.bf16.msra.mxu0 0
      %1053 = vmatprep.subr.bf16.mxu0 0
      %1054 = vmatpush2.bf16.msra.mxu0 0
      %1055 = vmatprep.subr.bf16.mxu0 0
      %1056 = vmatpush2.bf16.msra.mxu0 0
      %1057 = vmatprep.subr.bf16.mxu0 0
      %1058 = vmatpush2.bf16.msra.mxu0 0
      %1059 = vmatprep.subr.bf16.mxu0 0
      %1060 = vmatpush2.bf16.msra.mxu0 0
      %1061 = vmatprep.subr.bf16.mxu0 0
      %1062 = vmatpush2.bf16.msra.mxu0 0
      %1063 = vmatprep.mubr.bf16.mxu0 0
      %1064 = vmatmul.mubr.bf16.gmra.mxu0 %v1023
      %v1065 = vpop.f32.mrf.mxu0
      %v1066 = vadd.f32 0.0, %v1065
      %v1067 = vpop.f32.mrf.mxu0
      %v1068 = vadd.f32 0.0, %v1067
      %v1069 = vpop.f32.mrf.mxu0
      %v1070 = vpop.f32.mrf.mxu0
      %1071 = vdwg.mxu0
      %v1072 = vadd.f32 %v992, %v1066
      %v1073 = vadd.f32 %v993, %v1068
      %1075 = vset.pattern.permute.xlu0 0
      %1076 = vperm.xlu0 %1075, %v304
      %v1077 = vpop.permute.xlu0 %1076
      %v1079 = vadd.f32 %v1072, %v1077
      %v1080 = vadd.f32 %v1073, %v1077
      %v1081 = vld [vmem:[%s293] sm:$0xff]
      %v1082 = vunpack.c.l.bf16 %v1081
      %v1083 = vunpack.c.h.bf16 %v1081
      %v1084 = vadd.f32 %v1079, %v1082
      %v1085 = vadd.f32 %v1080, %v1083
      %1086 = vst [vmem:[%s298] sm:$0xff] %v1084
      %1087 = vst [vmem:[%s298 + $0x8] sm:$0xff] %v1085
      %p1088 = scmp.lt.s32.totalorder %s18, 1
      %s1089 = scalar_select %p1088, %s18, 1
      %s1090 = smul.addr %s1089, 2
      %s1091 = smul.addr %s1090, 8
      %s1092 = scalar_lea.vmem %s7, %s1091
      // Predicated region
      $region49: #{conv_residual_forward.3} parent=47 // pred_check
        %p1093 = pneg %p193
      $region50: #{conv_residual_forward.3} parent=47 // pred_check_branch
        %1095 = sbr.rel (%p1093) target = $region52
      $region51: #{conv_residual_forward.3} parent=47 // pred_region
        _
      $region52: #{conv_residual_forward.3} parent=47 // pred_fallthru
        _
    $region48: #{conv_residual_forward.3} parent=5 // pred_fallthru
      _
    %p1096 = scmp.le.s32.totalorder 2, %s13
    // Predicated region
    $region53: #{conv_residual_forward.3} parent=5 // pred_check
      %p1097 = pneg %p1096
    $region54: #{conv_residual_forward.3} parent=5 // pred_check_branch
      %1099 = sbr.rel (%p1097) target = $region56
    $region55: #{conv_residual_forward.3} parent=5 // pred_region
      %s1100 = ssub.s32 %s13, 2
      // Predicated region
      $region57: #{conv_residual_forward.3} parent=55 // pred_check
        %p1101 = pneg %p199
      $region58: #{conv_residual_forward.3} parent=55 // pred_check_branch
        %1103 = sbr.rel (%p1101) target = $region60
      $region59: #{conv_residual_forward.3} parent=55 // pred_region
        %p1104 = scmp.lt.s32.totalorder %s19, 1
        %s1105 = scalar_select %p1104, %s19, 1
        %s1106 = smul.addr %s1105, 2
        %s1107 = smul.addr %s1106, 8
        %s1108 = scalar_lea.vmem %s7, %s1107
      $region60: #{conv_residual_forward.3} parent=55 // pred_fallthru
        _
    $region56: #{conv_residual_forward.3} parent=5 // pred_fallthru
      _
  $region6: #{conv_residual_forward.3} parent=0 // loop_footer
    %s17 = sadd.s32 1, %s13
  $region7: #{conv_residual_forward.3} parent=0 // loop_footer_branch
    %12 = sbr.rel target = $region3
  $region8: #{conv_residual_forward.3} parent=0 // loop_exit
    _

// kernel: conv_residual_forward.2
$region0: #{conv_residual_forward.2}
  #allocation0 [shape = 'u32[]', space=smem, size = 0x4, offset = 0x4, fixed_abs, tag = 'smem constant byte address 0x4 - core index']
  #allocation1 [shape = 'u32[144,128]{1,0:T(1,128)}', space=vmem, size = 0x12000, scoped, tag = 'internal scratch']
  #allocation2 [shape = 'bf16[4,290]{1,0:T(4,128)(2,1)}', space=vmem, size = 0xc00, scoped, tag = 'scratch operand']
  #allocation3 [shape = 'bf16[4,290]{1,0:T(4,128)(2,1)}', space=vmem, size = 0xc00, scoped, tag = 'scratch operand']
  %s0 = inlined_call_operand.vmem [shape: f32[2,4,256], index: 0, kind: input, shape index: {}]
  %s1 = inlined_call_operand.vmem [shape: f32[4,1], index: 1, kind: input, shape index: {}]
  %s2 = inlined_call_operand.vmem [shape: f32[4,1], index: 2, kind: input, shape index: {}]
  %s3 = inlined_call_operand.vmem [shape: bf16[9,8,4], index: 3, kind: input, shape index: {}]
  %s4 = inlined_call_operand.vmem [shape: f32[8,1], index: 4, kind: input, shape index: {}]
  %s5 = inlined_call_operand.vmem [shape: f32[4,1], index: 5, kind: input, shape index: {}]
  %s6 = inlined_call_operand.vmem [shape: f32[4,1], index: 6, kind: input, shape index: {}]
  %s7 = inlined_call_operand.vmem [shape: bf16[9,8,4], index: 7, kind: input, shape index: {}]
  %s8 = inlined_call_operand.vmem [shape: f32[8,1], index: 8, kind: input, shape index: {}]
  %s9 = inlined_call_operand.vmem [shape: bf16[2,256], index: 9, kind: input, shape index: {}]
  %s10 = inlined_call_operand.vmem [shape: bf16[2,8,256], index: 10, kind: output, shape index: {0}]
  %s11 = inlined_call_operand.vmem [shape: bf16[2,8,256], index: 11, kind: output, shape index: {1}]
  %s12 = inlined_call_operand.vmem [shape: f32[2,8,2], index: 12, kind: output, shape index: {2}]
  %13 = xla_tuple %s10, %s11, %s12
  %s14 = sld [smem:[#allocation0]]
  $region89: #{conv_residual_forward.2} parent=0
    _
  %s16 = ssub.s32 1, %s14
  %s17 = scalar_select 0, %s16, %s14
  loop: start=0, step=1, limit=4
  $region2: #{conv_residual_forward.2} parent=0 // loop_pre_header
    _
  $region3: #{conv_residual_forward.2} parent=0 // loop_header
    %s19 = sphi 0, %s23
    %p20 = scmp.ge.s32.totalorder %s19, 4
    %s29 = sphi 0, %s31
    %s32 = sphi 0, %s29
    %s33 = sphi 0, %s32
    %s49 = sphi 0, %s33
    %s53 = sphi 0, %s53
    %s55 = sphi 0, %s53
    %s56 = sphi 0, %s55
    %s70 = sphi 0, %s56
    %s74 = sphi 0, %s74
    %s76 = sphi 0, %s74
    %s77 = sphi 0, %s76
    %s91 = sphi 0, %s77
    %s95 = sphi 0, %s95
    %s97 = sphi 0, %s95
    %s98 = sphi 0, %s97
    %s112 = sphi 0, %s98
    %s116 = sphi 0, %s116
    %s118 = sphi 0, %s116
    %s119 = sphi 0, %s118
    %s133 = sphi 0, %s119
    %s137 = sphi 0, %s137
    %s139 = sphi 0, %s137
    %s140 = sphi 0, %s139
    %s154 = sphi 0, %s140
    %s158 = sphi 0, %s158
    %s160 = sphi 0, %s158
    %s161 = sphi 0, %s160
    %s175 = sphi 0, %s161
    %s179 = sphi 0, %s179
    %s181 = sphi 0, %s179
    %s182 = sphi 0, %s181
    %s196 = sphi 0, %s182
    %s200 = sphi 0, %s200
    %s202 = sphi 0, %s200
    %s203 = sphi 0, %s202
    %s217 = sphi 0, %s203
    %s221 = sphi 0, %s221
    %s223 = sphi 0, %s221
    %s224 = sphi 0, %s223
    %s238 = sphi 0, %s224
    %s244 = sphi 0, %s246
    %s247 = sphi 0, %s244
    %s248 = sphi 0, %s247
    %s264 = sphi 0, %s248
    %s270 = sphi 0, %s272
    %s273 = sphi 0, %s270
    %s274 = sphi 0, %s273
    %s290 = sphi 0, %s274
    %s296 = sphi 0, %s298
    %s299 = sphi 0, %s296
    %s300 = sphi 0, %s299
    %s316 = sphi 0, %s300
  $region4: #{conv_residual_forward.2} parent=0 // loop_header_branch
    %22 = sbr.rel (%p20) target = $region8
  $region5: #{conv_residual_forward.2} parent=0 // loop_body
    %s24 = ssub.s32 %s19, 1
    %s25 = ssub.s32 %s19, 2
    %s26 = sadd.s32 %s19, 1
    %s27 = ssub.s32 %s19, %s26
    %p28 = scmp.eq.s32.totalorder %s27, 0
    %s30 = sadd.s32 %s29, 1
    %s31 = scalar_select %p28, %s29, %s30
    %p34 = pneg %p28
    %p35 = scmp.eq.s32.totalorder %s19, 1
    %p36 = por %p34, %p35
    %p37 = scmp.ne.s32.totalorder %s29, %s32
    %p38 = scmp.eq.s32.totalorder %s19, 0
    %p39 = por %p37, %p38
    %p40 = scmp.ne.s32.totalorder %s29, %s32
    %p41 = scmp.eq.s32.totalorder %s24, 1
    %p42 = por %p40, %p41
    %p43 = scmp.ne.s32.totalorder %s32, %s33
    %p44 = scmp.eq.s32.totalorder %s24, 0
    %p45 = por %p43, %p44
    %p46 = scmp.ne.s32.totalorder %s32, %s33
    %p47 = scmp.eq.s32.totalorder %s25, 1
    %p48 = por %p46, %p47
    %p50 = scmp.ne.s32.totalorder %s33, %s49
    %p51 = scmp.eq.s32.totalorder %s25, 0
    %p52 = por %p50, %p51
    %s54 = sadd.s32 %s53, 1
    %p57 = scmp.eq.s32.totalorder %s19, 1
    %p58 = scmp.ne.s32.totalorder %s53, %s55
    %p59 = scmp.eq.s32.totalorder %s19, 0
    %p60 = por %p58, %p59
    %p61 = scmp.ne.s32.totalorder %s53, %s55
    %p62 = scmp.eq.s32.totalorder %s24, 1
    %p63 = por %p61, %p62
    %p64 = scmp.ne.s32.totalorder %s55, %s56
    %p65 = scmp.eq.s32.totalorder %s24, 0
    %p66 = por %p64, %p65
    %p67 = scmp.ne.s32.totalorder %s55, %s56
    %p68 = scmp.eq.s32.totalorder %s25, 1
    %p69 = por %p67, %p68
    %p71 = scmp.ne.s32.totalorder %s56, %s70
    %p72 = scmp.eq.s32.totalorder %s25, 0
    %p73 = por %p71, %p72
    %s75 = sadd.s32 %s74, 1
    %p78 = scmp.eq.s32.totalorder %s19, 1
    %p79 = scmp.ne.s32.totalorder %s74, %s76
    %p80 = scmp.eq.s32.totalorder %s19, 0
    %p81 = por %p79, %p80
    %p82 = scmp.ne.s32.totalorder %s74, %s76
    %p83 = scmp.eq.s32.totalorder %s24, 1
    %p84 = por %p82, %p83
    %p85 = scmp.ne.s32.totalorder %s76, %s77
    %p86 = scmp.eq.s32.totalorder %s24, 0
    %p87 = por %p85, %p86
    %p88 = scmp.ne.s32.totalorder %s76, %s77
    %p89 = scmp.eq.s32.totalorder %s25, 1
    %p90 = por %p88, %p89
    %p92 = scmp.ne.s32.totalorder %s77, %s91
    %p93 = scmp.eq.s32.totalorder %s25, 0
    %p94 = por %p92, %p93
    %s96 = sadd.s32 %s95, 1
    %p99 = scmp.eq.s32.totalorder %s19, 1
    %p100 = scmp.ne.s32.totalorder %s95, %s97
    %p101 = scmp.eq.s32.totalorder %s19, 0
    %p102 = por %p100, %p101
    %p103 = scmp.ne.s32.totalorder %s95, %s97
    %p104 = scmp.eq.s32.totalorder %s24, 1
    %p105 = por %p103, %p104
    %p106 = scmp.ne.s32.totalorder %s97, %s98
    %p107 = scmp.eq.s32.totalorder %s24, 0
    %p108 = por %p106, %p107
    %p109 = scmp.ne.s32.totalorder %s97, %s98
    %p110 = scmp.eq.s32.totalorder %s25, 1
    %p111 = por %p109, %p110
    %p113 = scmp.ne.s32.totalorder %s98, %s112
    %p114 = scmp.eq.s32.totalorder %s25, 0
    %p115 = por %p113, %p114
    %s117 = sadd.s32 %s116, 1
    %p120 = scmp.eq.s32.totalorder %s19, 1
    %p121 = scmp.ne.s32.totalorder %s116, %s118
    %p122 = scmp.eq.s32.totalorder %s19, 0
    %p123 = por %p121, %p122
    %p124 = scmp.ne.s32.totalorder %s116, %s118
    %p125 = scmp.eq.s32.totalorder %s24, 1
    %p126 = por %p124, %p125
    %p127 = scmp.ne.s32.totalorder %s118, %s119
    %p128 = scmp.eq.s32.totalorder %s24, 0
    %p129 = por %p127, %p128
    %p130 = scmp.ne.s32.totalorder %s118, %s119
    %p131 = scmp.eq.s32.totalorder %s25, 1
    %p132 = por %p130, %p131
    %p134 = scmp.ne.s32.totalorder %s119, %s133
    %p135 = scmp.eq.s32.totalorder %s25, 0
    %p136 = por %p134, %p135
    %s138 = sadd.s32 %s137, 1
    %p141 = scmp.eq.s32.totalorder %s19, 1
    %p142 = scmp.ne.s32.totalorder %s137, %s139
    %p143 = scmp.eq.s32.totalorder %s19, 0
    %p144 = por %p142, %p143
    %p145 = scmp.ne.s32.totalorder %s137, %s139
    %p146 = scmp.eq.s32.totalorder %s24, 1
    %p147 = por %p145, %p146
    %p148 = scmp.ne.s32.totalorder %s139, %s140
    %p149 = scmp.eq.s32.totalorder %s24, 0
    %p150 = por %p148, %p149
    %p151 = scmp.ne.s32.totalorder %s139, %s140
    %p152 = scmp.eq.s32.totalorder %s25, 1
    %p153 = por %p151, %p152
    %p155 = scmp.ne.s32.totalorder %s140, %s154
    %p156 = scmp.eq.s32.totalorder %s25, 0
    %p157 = por %p155, %p156
    %s159 = sadd.s32 %s158, 1
    %p162 = scmp.eq.s32.totalorder %s19, 1
    %p163 = scmp.ne.s32.totalorder %s158, %s160
    %p164 = scmp.eq.s32.totalorder %s19, 0
    %p165 = por %p163, %p164
    %p166 = scmp.ne.s32.totalorder %s158, %s160
    %p167 = scmp.eq.s32.totalorder %s24, 1
    %p168 = por %p166, %p167
    %p169 = scmp.ne.s32.totalorder %s160, %s161
    %p170 = scmp.eq.s32.totalorder %s24, 0
    %p171 = por %p169, %p170
    %p172 = scmp.ne.s32.totalorder %s160, %s161
    %p173 = scmp.eq.s32.totalorder %s25, 1
    %p174 = por %p172, %p173
    %p176 = scmp.ne.s32.totalorder %s161, %s175
    %p177 = scmp.eq.s32.totalorder %s25, 0
    %p178 = por %p176, %p177
    %s180 = sadd.s32 %s179, 1
    %p183 = scmp.eq.s32.totalorder %s19, 1
    %p184 = scmp.ne.s32.totalorder %s179, %s181
    %p185 = scmp.eq.s32.totalorder %s19, 0
    %p186 = por %p184, %p185
    %p187 = scmp.ne.s32.totalorder %s179, %s181
    %p188 = scmp.eq.s32.totalorder %s24, 1
    %p189 = por %p187, %p188
    %p190 = scmp.ne.s32.totalorder %s181, %s182
    %p191 = scmp.eq.s32.totalorder %s24, 0
    %p192 = por %p190, %p191
    %p193 = scmp.ne.s32.totalorder %s181, %s182
    %p194 = scmp.eq.s32.totalorder %s25, 1
    %p195 = por %p193, %p194
    %p197 = scmp.ne.s32.totalorder %s182, %s196
    %p198 = scmp.eq.s32.totalorder %s25, 0
    %p199 = por %p197, %p198
    %s201 = sadd.s32 %s200, 1
    %p204 = scmp.eq.s32.totalorder %s19, 1
    %p205 = scmp.ne.s32.totalorder %s200, %s202
    %p206 = scmp.eq.s32.totalorder %s19, 0
    %p207 = por %p205, %p206
    %p208 = scmp.ne.s32.totalorder %s200, %s202
    %p209 = scmp.eq.s32.totalorder %s24, 1
    %p210 = por %p208, %p209
    %p211 = scmp.ne.s32.totalorder %s202, %s203
    %p212 = scmp.eq.s32.totalorder %s24, 0
    %p213 = por %p211, %p212
    %p214 = scmp.ne.s32.totalorder %s202, %s203
    %p215 = scmp.eq.s32.totalorder %s25, 1
    %p216 = por %p214, %p215
    %p218 = scmp.ne.s32.totalorder %s203, %s217
    %p219 = scmp.eq.s32.totalorder %s25, 0
    %p220 = por %p218, %p219
    %s222 = sadd.s32 %s221, 1
    %p225 = scmp.eq.s32.totalorder %s19, 1
    %p226 = scmp.ne.s32.totalorder %s221, %s223
    %p227 = scmp.eq.s32.totalorder %s19, 0
    %p228 = por %p226, %p227
    %p229 = scmp.ne.s32.totalorder %s221, %s223
    %p230 = scmp.eq.s32.totalorder %s24, 1
    %p231 = por %p229, %p230
    %p232 = scmp.ne.s32.totalorder %s223, %s224
    %p233 = scmp.eq.s32.totalorder %s24, 0
    %p234 = por %p232, %p233
    %p235 = scmp.ne.s32.totalorder %s223, %s224
    %p236 = scmp.eq.s32.totalorder %s25, 1
    %p237 = por %p235, %p236
    %p239 = scmp.ne.s32.totalorder %s224, %s238
    %p240 = scmp.eq.s32.totalorder %s25, 0
    %p241 = por %p239, %p240
    %s242 = ssub.s32 %s19, %s26
    %p243 = scmp.eq.s32.totalorder %s242, 0
    %s245 = sadd.s32 %s244, 1
    %s246 = scalar_select %p243, %s244, %s245
    %p249 = pneg %p243
    %p250 = scmp.eq.s32.totalorder %s19, 1
    %p251 = por %p249, %p250
    %p252 = scmp.ne.s32.totalorder %s244, %s247
    %p253 = scmp.eq.s32.totalorder %s19, 0
    %p254 = por %p252, %p253
    %p255 = scmp.ne.s32.totalorder %s244, %s247
    %p256 = scmp.eq.s32.totalorder %s24, 1
    %p257 = por %p255, %p256
    %p258 = scmp.ne.s32.totalorder %s247, %s248
    %p259 = scmp.eq.s32.totalorder %s24, 0
    %p260 = por %p258, %p259
    %p261 = scmp.ne.s32.totalorder %s247, %s248
    %p262 = scmp.eq.s32.totalorder %s25, 1
    %p263 = por %p261, %p262
    %p265 = scmp.ne.s32.totalorder %s248, %s264
    %p266 = scmp.eq.s32.totalorder %s25, 0
    %p267 = por %p265, %p266
    %s268 = ssub.s32 %s19, %s26
    %p269 = scmp.eq.s32.totalorder %s268, 0
    %s271 = sadd.s32 %s270, 1
    %s272 = scalar_select %p269, %s270, %s271
    %p275 = pneg %p269
    %p276 = scmp.eq.s32.totalorder %s19, 1
    %p277 = por %p275, %p276
    %p278 = scmp.ne.s32.totalorder %s270, %s273
    %p279 = scmp.eq.s32.totalorder %s19, 0
    %p280 = por %p278, %p279
    %p281 = scmp.ne.s32.totalorder %s270, %s273
    %p282 = scmp.eq.s32.totalorder %s24, 1
    %p283 = por %p281, %p282
    %p284 = scmp.ne.s32.totalorder %s273, %s274
    %p285 = scmp.eq.s32.totalorder %s24, 0
    %p286 = por %p284, %p285
    %p287 = scmp.ne.s32.totalorder %s273, %s274
    %p288 = scmp.eq.s32.totalorder %s25, 1
    %p289 = por %p287, %p288
    %p291 = scmp.ne.s32.totalorder %s274, %s290
    %p292 = scmp.eq.s32.totalorder %s25, 0
    %p293 = por %p291, %p292
    %s294 = ssub.s32 %s19, %s26
    %p295 = scmp.eq.s32.totalorder %s294, 0
    %s297 = sadd.s32 %s296, 1
    %s298 = scalar_select %p295, %s296, %s297
    %p301 = pneg %p295
    %p302 = scmp.eq.s32.totalorder %s19, 1
    %p303 = por %p301, %p302
    %p304 = scmp.ne.s32.totalorder %s296, %s299
    %p305 = scmp.eq.s32.totalorder %s19, 0
    %p306 = por %p304, %p305
    %p307 = scmp.ne.s32.totalorder %s296, %s299
    %p308 = scmp.eq.s32.totalorder %s24, 1
    %p309 = por %p307, %p308
    %p310 = scmp.ne.s32.totalorder %s299, %s300
    %p311 = scmp.eq.s32.totalorder %s24, 0
    %p312 = por %p310, %p311
    %p313 = scmp.ne.s32.totalorder %s299, %s300
    %p314 = scmp.eq.s32.totalorder %s25, 1
    %p315 = por %p313, %p314
    %p317 = scmp.ne.s32.totalorder %s300, %s316
    %p318 = scmp.eq.s32.totalorder %s25, 0
    %p319 = por %p317, %p318
    %p320 = scmp.le.s32.totalorder 1, %s19
    %p321 = scmp.lt.s32.totalorder %s19, 3
    %p322 = pnand %p320, %p321
    %p323 = pneg %p322
    // Predicated region
    $region9: #{conv_residual_forward.2} parent=5 // pred_check
      _
    $region10: #{conv_residual_forward.2} parent=5 // pred_check_branch
      %325 = sbr.rel (%p322) target = $region12
    $region11: #{conv_residual_forward.2} parent=5 // pred_region
      %s326 = ssub.s32 %s19, 1
      // Predicated region
      $region13: #{conv_residual_forward.2} parent=11 // pred_check
        %p327 = pneg %p66
      $region14: #{conv_residual_forward.2} parent=11 // pred_check_branch
        %329 = sbr.rel (%p327) target = $region16
      $region15: #{conv_residual_forward.2} parent=11 // pred_region
        _
      $region16: #{conv_residual_forward.2} parent=11 // pred_fallthru
        _
      // Predicated region
      $region17: #{conv_residual_forward.2} parent=11 // pred_check
        %p330 = pneg %p87
      $region18: #{conv_residual_forward.2} parent=11 // pred_check_branch
        %332 = sbr.rel (%p330) target = $region20
      $region19: #{conv_residual_forward.2} parent=11 // pred_region
        _
      $region20: #{conv_residual_forward.2} parent=11 // pred_fallthru
        _
      // Predicated region
      $region21: #{conv_residual_forward.2} parent=11 // pred_check
        %p333 = pneg %p108
      $region22: #{conv_residual_forward.2} parent=11 // pred_check_branch
        %335 = sbr.rel (%p333) target = $region24
      $region23: #{conv_residual_forward.2} parent=11 // pred_region
        _
      $region24: #{conv_residual_forward.2} parent=11 // pred_fallthru
        _
      // Predicated region
      $region25: #{conv_residual_forward.2} parent=11 // pred_check
        %p336 = pneg %p129
      $region26: #{conv_residual_forward.2} parent=11 // pred_check_branch
        %338 = sbr.rel (%p336) target = $region28
      $region27: #{conv_residual_forward.2} parent=11 // pred_region
        _
      $region28: #{conv_residual_forward.2} parent=11 // pred_fallthru
        _
      // Predicated region
      $region29: #{conv_residual_forward.2} parent=11 // pred_check
        %p339 = pneg %p150
      $region30: #{conv_residual_forward.2} parent=11 // pred_check_branch
        %341 = sbr.rel (%p339) target = $region32
      $region31: #{conv_residual_forward.2} parent=11 // pred_region
        _
      $region32: #{conv_residual_forward.2} parent=11 // pred_fallthru
        _
      // Predicated region
      $region33: #{conv_residual_forward.2} parent=11 // pred_check
        %p342 = pneg %p171
      $region34: #{conv_residual_forward.2} parent=11 // pred_check_branch
        %344 = sbr.rel (%p342) target = $region36
      $region35: #{conv_residual_forward.2} parent=11 // pred_region
        _
      $region36: #{conv_residual_forward.2} parent=11 // pred_fallthru
        _
      // Predicated region
      $region37: #{conv_residual_forward.2} parent=11 // pred_check
        %p345 = pneg %p192
      $region38: #{conv_residual_forward.2} parent=11 // pred_check_branch
        %347 = sbr.rel (%p345) target = $region40
      $region39: #{conv_residual_forward.2} parent=11 // pred_region
        _
      $region40: #{conv_residual_forward.2} parent=11 // pred_fallthru
        _
      // Predicated region
      $region41: #{conv_residual_forward.2} parent=11 // pred_check
        %p348 = pneg %p213
      $region42: #{conv_residual_forward.2} parent=11 // pred_check_branch
        %350 = sbr.rel (%p348) target = $region44
      $region43: #{conv_residual_forward.2} parent=11 // pred_region
        _
      $region44: #{conv_residual_forward.2} parent=11 // pred_fallthru
        _
      // Predicated region
      $region45: #{conv_residual_forward.2} parent=11 // pred_check
        %p351 = pneg %p234
      $region46: #{conv_residual_forward.2} parent=11 // pred_check_branch
        %353 = sbr.rel (%p351) target = $region48
      $region47: #{conv_residual_forward.2} parent=11 // pred_region
        _
      $region48: #{conv_residual_forward.2} parent=11 // pred_fallthru
        _
    $region12: #{conv_residual_forward.2} parent=5 // pred_fallthru
      _
    %p354 = scmp.lt.s32.totalorder %s19, 2
    // Predicated region
    $region49: #{conv_residual_forward.2} parent=5 // pred_check
      %p355 = pneg %p354
    $region50: #{conv_residual_forward.2} parent=5 // pred_check_branch
      %357 = sbr.rel (%p355) target = $region52
    $region51: #{conv_residual_forward.2} parent=5 // pred_region
      // Predicated region
      $region53: #{conv_residual_forward.2} parent=51 // pred_check
        %p358 = pneg %p39
      $region54: #{conv_residual_forward.2} parent=51 // pred_check_branch
        %360 = sbr.rel (%p358) target = $region56
      $region55: #{conv_residual_forward.2} parent=51 // pred_region
        %p361 = scmp.lt.s32.totalorder %s19, 1
        %s362 = scalar_select %p361, %s19, 1
        %s363 = smul.addr %s362, 2
        %s364 = smul.addr %s363, 4
        %s365 = scalar_lea.vmem %s0, %s364
      $region56: #{conv_residual_forward.2} parent=51 // pred_fallthru
        _
    $region52: #{conv_residual_forward.2} parent=5 // pred_fallthru
      _
    %p366 = scmp.le.s32.totalorder 1, %s19
    %p367 = scmp.lt.s32.totalorder %s19, 3
    %p368 = pnand %p366, %p367
    %p369 = pneg %p368
    // Predicated region
    $region57: #{conv_residual_forward.2} parent=5 // pred_check
      _
    $region58: #{conv_residual_forward.2} parent=5 // pred_check_branch
      %371 = sbr.rel (%p368) target = $region60
    $region59: #{conv_residual_forward.2} parent=5 // pred_region
      %s372 = ssub.s32 %s19, 1
      %p373 = scmp.lt.s32.totalorder %s24, 1
      %s374 = scalar_select %p373, %s24, 1
      %s375 = smul.addr %s374, 2
      %s376 = smul.addr %s375, 4
      %s377 = scalar_lea.vmem %s0, %s376
      %p378 = pneg %p45
      %p379 = pneg %p42
      %p380 = pneg %p66
      %p381 = pneg %p63
      %p382 = pneg %p87
      %p383 = pneg %p84
      %p384 = pneg %p108
      %p385 = pneg %p105
      %p386 = pneg %p129
      %p387 = pneg %p126
      %p388 = pneg %p150
      %p389 = pneg %p147
      %p390 = pneg %p171
      %p391 = pneg %p168
      %p392 = pneg %p192
      %p393 = pneg %p189
      %p394 = pneg %p213
      %p395 = pneg %p210
      %p396 = pneg %p234
      %p397 = pneg %p231
      %p398 = pneg %p260
      %p399 = pneg %p257
      %p400 = scmp.lt.s32.totalorder %s24, 1
      %s401 = scalar_select %p400, %s24, 1
      %s402 = smul.addr %s401, 2
      %s403 = smul.addr %s402, 4
      %s404 = scalar_lea.vmem %s10, %s403
      %p405 = pneg %p286
      %p406 = pneg %p283
      %p407 = scmp.lt.s32.totalorder %s24, 1
      %s408 = scalar_select %p407, %s24, 1
      %s409 = smul.addr %s408, 2
      %s410 = smul.addr %s409, 4
      %s411 = scalar_lea.vmem %s11, %s410
      %p412 = pneg %p312
      %p413 = pneg %p309
      %p414 = scmp.lt.s32.totalorder %s24, 1
      %s415 = scalar_select %p414, %s24, 1
      %s416 = smul.addr %s415, 8
      %s417 = scalar_lea.vmem %s12, %s416
      %p418 = scmp.lt.s32.totalorder %s24, 1
      %s419 = scalar_select %p418, %s24, 1
      %s420 = smul.addr %s419, 2
      %s421 = smul.addr %s420, 4
      %s422 = scalar_lea.vmem %s0, %s421
      %p423 = scmp.lt.s32.totalorder %s24, 1
      %s424 = scalar_select %p423, %s24, 1
      %s425 = smul.addr %s424, 2
      %s426 = smul.addr %s425, 4
      %s427 = scalar_lea.vmem %s10, %s426
      %p428 = scmp.lt.s32.totalorder %s24, 1
      %s429 = scalar_select %p428, %s24, 1
      %s430 = smul.addr %s429, 2
      %s431 = smul.addr %s430, 4
      %s432 = scalar_lea.vmem %s11, %s431
      %p433 = scmp.lt.s32.totalorder %s24, 1
      %s434 = scalar_select %p433, %s24, 1
      %s435 = smul.addr %s434, 8
      %s436 = scalar_lea.vmem %s12, %s435
      %v438 = vld [vmem:[%s422] sm:$0xff]
      %v439 = vld [vmem:[%s9] sm:$0x3]
      %v440 = vld [vmem:[%s1] sm:$0xf]
      %v441 = vld [vmem:[%s2] sm:$0xf]
      %v442 = vld [vmem:[%s4] sm:$0xff]
      %vm443 = vcmask 132096
      %444 = vst.msk [vmem:[#allocation2] sm:$0x3] %vm443, 0
      %vm445 = vcmask 271496
      %446 = vst.msk [vmem:[#allocation2 + $0x4] sm:$0x3] %vm445, 0
      %448 = vset.pattern.permute.xlu0 0
      %449 = vperm.xlu0 %448, %v440
      %v450 = vpop.permute.xlu0 %449
      %v452 = vunpack.c.l.s4 839922192
      %v453 = vunpack.c.0.s8 %v452
      %v454 = vlaneseq
      %v455 = vshrl.u32 %v454, 7
      %v456 = vsub.s32 %v453, %v455
      %v457 = vrot.slane %v450, %v456
      %v459 = vmul.f32 %v438, %v457
      %461 = vset.pattern.permute.xlu0 0
      %462 = vperm.xlu0 %461, %v441
      %v463 = vpop.permute.xlu0 %462
      %v465 = vunpack.c.l.s4 839922192
      %v466 = vunpack.c.0.s8 %v465
      %v467 = vlaneseq
      %v468 = vshrl.u32 %v467, 7
      %v469 = vsub.s32 %v466, %v468
      %v470 = vrot.slane %v463, %v469
      %v472 = vadd.f32 %v459, %v470
      %v473 = vmax.f32 %v472, 0.0
      %v475 = vcombine.high %v473, %v473
      %v477 = vpack.c.bf16 %v473, %v473
      %v478 = vpack.c.bf16 %v475, %v475
      %v481 = vcombine.low %v477, %v478
      %v483 = vunpack.c.l.s4 1983009808
      %v484 = vunpack.c.0.s8 %v483
      %v485 = vlaneseq
      %v486 = vshrl.u32 %v485, 7
      %v487 = vsub.s32 %v484, %v486
      %v488 = vrot.slane %v481, %v487
      %489 = vrot.lane.b32.xlu0 %v488, 17
      %v490 = vpop.permute.xlu0 %489
      %v491 = vrot.slane %v490, 6
      %vm492 = vcmask 138240
      %v493 = vsel %vm492, %v491, %v490
      %vm495 = vcmask 1041544
      %vm496 = vcmask 1043458
      %vm497 = vmor %vm496, %vm495
      %vm498 = vcmask 136196
      %vm499 = vmor %vm498, %vm497
      %500 = vst.msk [vmem:[#allocation2] sm:$0x3f] %vm499, %v493
      %v501 = vld [vmem:[#allocation2] sm:$0xf]
      %v504 = vunpack.c.l.s4 1966171168
      %v505 = vunpack.c.0.s8 %v504
      %v506 = vlaneseq
      %v507 = vshrl.u32 %v506, 7
      %v508 = vsub.s32 %v505, %v507
      %v509 = vrot.slane %v439, %v508
      %v510 = vcombine.high %v509, %v509
      %v512 = vunpack.c.l.s4 1966171168
      %v513 = vunpack.c.0.s8 %v512
      %v514 = vlaneseq
      %v515 = vshrl.u32 %v514, 7
      %v516 = vsub.s32 %v513, %v515
      %v517 = vrot.slane %v509, %v516
      %v519 = vunpack.c.l.s4 1966171168
      %v520 = vunpack.c.0.s8 %v519
      %v521 = vlaneseq
      %v522 = vshrl.u32 %v521, 7
      %v523 = vsub.s32 %v520, %v522
      %v524 = vrot.slane %v510, %v523
      %v526 = vpack.i.b16 %v517, %v517
      %v528 = vlaneseq
      %v529 = vshrl.u32 %v528, 7
      %v530 = vsub.s32 0, %v529
      %v531 = vrot.slane %v526, %v530
      %v533 = vpack.i.b16 %v524, %v524
      %v535 = vlaneseq
      %v536 = vshrl.u32 %v535, 7
      %v537 = vsub.s32 0, %v536
      %v538 = vrot.slane %v533, %v537
      %v541 = vcombine.low %v531, %v538
      %v543 = vunpack.c.l.s4 1983009808
      %v544 = vunpack.c.0.s8 %v543
      %v545 = vlaneseq
      %v546 = vshrl.u32 %v545, 7
      %v547 = vsub.s32 %v544, %v546
      %v548 = vrot.slane %v541, %v547
      %v550 = vmul.bf16 %v501, %v548
      %v551 = vld [vmem:[%s3] sm:$0xf]
      %v552 = vld [vmem:[#allocation2] sm:$0x3f]
      %s553 = scalar_lea.vmem %s3, 4
      %v554 = vld [vmem:[%s553] sm:$0xf]
      %v556 = vcombine.high %v552, %v552
      %v558 = vunpack.c.l.s4 1983009808
      %v559 = vunpack.c.0.s8 %v558
      %v560 = vlaneseq
      %v561 = vshrl.u32 %v560, 7
      %v562 = vsub.s32 %v559, %v561
      %v563 = vrot.slane %v552, %v562
      %v565 = vunpack.c.l.s4 1983009808
      %v566 = vunpack.c.0.s8 %v565
      %v567 = vlaneseq
      %v568 = vshrl.u32 %v567, 7
      %v569 = vsub.s32 %v566, %v568
      %v570 = vrot.slane %v556, %v569
      %v571 = vcombine.high %v563, %v563
      %572 = vrot.lane.b32.xlu0 %v563, 127
      %v573 = vpop.permute.xlu0 %572
      %574 = vrot.lane.b32.xlu0 %v571, 127
      %v575 = vpop.permute.xlu0 %574
      %576 = vrot.lane.b32.xlu0 %v570, 127
      %v577 = vpop.permute.xlu0 %576
      %vm578 = vcmask 1039360
      %v579 = vsel %vm578, %v573, %v575
      %v580 = vsel %vm578, %v575, %v577
      %vm581 = vcmask 31744
      %v583 = vsel %vm581, %v554, 0
      %vm585 = vcmask 1041408
      %v587 = vsel %vm585, %v579, 0
      %v590 = vsel %vm585, %v580, 0
      %592 = vmatprep.subr.bf16.mxu0 0
      %593 = vmatpush1.bf16.msra.mxu0 0
      %594 = vmatprep.subr.bf16.mxu0 0
      %595 = vmatpush1.bf16.msra.mxu0 0
      %596 = vmatprep.subr.bf16.mxu0 0
      %597 = vmatpush1.bf16.msra.mxu0 0
      %598 = vmatprep.subr.bf16.mxu0 0
      %599 = vmatpush1.bf16.msra.mxu0 0
      %600 = vmatprep.subr.bf16.mxu0 0
      %601 = vmatpush1.bf16.msra.mxu0 0
      %602 = vmatprep.subr.bf16.mxu0 0
      %603 = vmatpush1.bf16.msra.mxu0 0
      %604 = vmatprep.subr.bf16.mxu0 0
      %605 = vmatpush1.bf16.msra.mxu0 0
      %606 = vmatprep.subr.bf16.mxu0 %v590
      %607 = vmatpush1.bf16.msra.mxu0 %v587
      %608 = vmatprep.subr.bf16.mxu0 0
      %609 = vmatpush2.bf16.msra.mxu0 0
      %610 = vmatprep.subr.bf16.mxu0 0
      %611 = vmatpush2.bf16.msra.mxu0 0
      %612 = vmatprep.subr.bf16.mxu0 0
      %613 = vmatpush2.bf16.msra.mxu0 0
      %614 = vmatprep.subr.bf16.mxu0 0
      %615 = vmatpush2.bf16.msra.mxu0 0
      %616 = vmatprep.subr.bf16.mxu0 0
      %617 = vmatpush2.bf16.msra.mxu0 0
      %618 = vmatprep.subr.bf16.mxu0 0
      %619 = vmatpush2.bf16.msra.mxu0 0
      %620 = vmatprep.subr.bf16.mxu0 0
      %621 = vmatpush2.bf16.msra.mxu0 0
      %622 = vmatprep.subr.bf16.mxu0 0
      %623 = vmatpush2.bf16.msra.mxu0 0
      %624 = vmatprep.mubr.bf16.mxu0 0
      %625 = vmatmul.mubr.bf16.gmra.mxu0 %v583
      %v626 = vpop.f32.mrf.mxu0
      %v627 = vadd.f32 0.0, %v626
      %v628 = vpop.f32.mrf.mxu0
      %v629 = vadd.f32 0.0, %v628
      %v630 = vpop.f32.mrf.mxu0
      %v631 = vpop.f32.mrf.mxu0
      %632 = vdwg.mxu0
      %v635 = vunpack.c.l.s4 1983009808
      %v636 = vunpack.c.0.s8 %v635
      %v637 = vlaneseq
      %v638 = vshrl.u32 %v637, 7
      %v639 = vsub.s32 %v636, %v638
      %v640 = vrot.slane %v550, %v639
      %v641 = vcombine.high %v640, %v640
      %v643 = vsel %vm581, %v551, 0
      %v646 = vsel %vm585, %v640, 0
      %v649 = vsel %vm585, %v641, 0
      %651 = vmatprep.subr.bf16.mxu0 0
      %652 = vmatpush1.bf16.msra.mxu0 0
      %653 = vmatprep.subr.bf16.mxu0 0
      %654 = vmatpush1.bf16.msra.mxu0 0
      %655 = vmatprep.subr.bf16.mxu0 0
      %656 = vmatpush1.bf16.msra.mxu0 0
      %657 = vmatprep.subr.bf16.mxu0 0
      %658 = vmatpush1.bf16.msra.mxu0 0
      %659 = vmatprep.subr.bf16.mxu0 0
      %660 = vmatpush1.bf16.msra.mxu0 0
      %661 = vmatprep.subr.bf16.mxu0 0
      %662 = vmatpush1.bf16.msra.mxu0 0
      %663 = vmatprep.subr.bf16.mxu0 0
      %664 = vmatpush1.bf16.msra.mxu0 0
      %665 = vmatprep.subr.bf16.mxu0 %v649
      %666 = vmatpush1.bf16.msra.mxu0 %v646
      %667 = vmatprep.subr.bf16.mxu0 0
      %668 = vmatpush2.bf16.msra.mxu0 0
      %669 = vmatprep.subr.bf16.mxu0 0
      %670 = vmatpush2.bf16.msra.mxu0 0
      %671 = vmatprep.subr.bf16.mxu0 0
      %672 = vmatpush2.bf16.msra.mxu0 0
      %673 = vmatprep.subr.bf16.mxu0 0
      %674 = vmatpush2.bf16.msra.mxu0 0
      %675 = vmatprep.subr.bf16.mxu0 0
      %676 = vmatpush2.bf16.msra.mxu0 0
      %677 = vmatprep.subr.bf16.mxu0 0
      %678 = vmatpush2.bf16.msra.mxu0 0
      %679 = vmatprep.subr.bf16.mxu0 0
      %680 = vmatpush2.bf16.msra.mxu0 0
      %681 = vmatprep.subr.bf16.mxu0 0
      %682 = vmatpush2.bf16.msra.mxu0 0
      %683 = vmatprep.mubr.bf16.mxu0 0
      %684 = vmatmul.mubr.bf16.gmra.mxu0 %v643
      %v685 = vpop.f32.mrf.mxu0
      %v686 = vadd.f32 %v627, %v685
      %v687 = vpop.f32.mrf.mxu0
      %v688 = vadd.f32 %v629, %v687
      %v689 = vpop.f32.mrf.mxu0
      %v690 = vpop.f32.mrf.mxu0
      %691 = vdwg.mxu0
      %v692 = vld [vmem:[#allocation2] sm:$0x3f]
      %v693 = vshrl.u32 %v517, 16
      %v694 = vpack.i.b16 %v693, %v693
      %v696 = vlaneseq
      %v697 = vshrl.u32 %v696, 7
      %v698 = vsub.s32 0, %v697
      %v699 = vrot.slane %v694, %v698
      %v700 = vshrl.u32 %v524, 16
      %v701 = vpack.i.b16 %v700, %v700
      %v703 = vlaneseq
      %v704 = vshrl.u32 %v703, 7
      %v705 = vsub.s32 0, %v704
      %v706 = vrot.slane %v701, %v705
      %v709 = vcombine.low %v699, %v706
      %v711 = vunpack.c.l.s4 1983009808
      %v712 = vunpack.c.0.s8 %v711
      %v713 = vlaneseq
      %v714 = vshrl.u32 %v713, 7
      %v715 = vsub.s32 %v712, %v714
      %v716 = vrot.slane %v709, %v715
      %717 = vrot.lane.b32.xlu0 %v716, 2
      %v718 = vpop.permute.xlu0 %717
      %v719 = vrot.slane %v718, 6
      %vm720 = vcmask 15360
      %v721 = vsel %vm720, %v719, %v718
      %v723 = vmul.bf16 %v692, %v721
      %s724 = scalar_lea.vmem %s3, 8
      %v725 = vld [vmem:[%s724] sm:$0xf]
      %v727 = vcombine.high %v723, %v723
      %v729 = vunpack.c.l.s4 1983009808
      %v730 = vunpack.c.0.s8 %v729
      %v731 = vlaneseq
      %v732 = vshrl.u32 %v731, 7
      %v733 = vsub.s32 %v730, %v732
      %v734 = vrot.slane %v723, %v733
      %v736 = vunpack.c.l.s4 1983009808
      %v737 = vunpack.c.0.s8 %v736
      %v738 = vlaneseq
      %v739 = vshrl.u32 %v738, 7
      %v740 = vsub.s32 %v737, %v739
      %v741 = vrot.slane %v727, %v740
      %v742 = vcombine.high %v734, %v734
      %743 = vrot.lane.b32.xlu0 %v734, 126
      %v744 = vpop.permute.xlu0 %743
      %745 = vrot.lane.b32.xlu0 %v742, 126
      %v746 = vpop.permute.xlu0 %745
      %747 = vrot.lane.b32.xlu0 %v741, 126
      %v748 = vpop.permute.xlu0 %747
      %vm749 = vcmask 1031168
      %v750 = vsel %vm749, %v744, %v746
      %v751 = vsel %vm749, %v746, %v748
      %v753 = vsel %vm581, %v725, 0
      %v756 = vsel %vm585, %v750, 0
      %v759 = vsel %vm585, %v751, 0
      %761 = vmatprep.subr.bf16.mxu0 0
      %762 = vmatpush1.bf16.msra.mxu0 0
      %763 = vmatprep.subr.bf16.mxu0 0
      %764 = vmatpush1.bf16.msra.mxu0 0
      %765 = vmatprep.subr.bf16.mxu0 0
      %766 = vmatpush1.bf16.msra.mxu0 0
      %767 = vmatprep.subr.bf16.mxu0 0
      %768 = vmatpush1.bf16.msra.mxu0 0
      %769 = vmatprep.subr.bf16.mxu0 0
      %770 = vmatpush1.bf16.msra.mxu0 0
      %771 = vmatprep.subr.bf16.mxu0 0
      %772 = vmatpush1.bf16.msra.mxu0 0
      %773 = vmatprep.subr.bf16.mxu0 0
      %774 = vmatpush1.bf16.msra.mxu0 0
      %775 = vmatprep.subr.bf16.mxu0 %v759
      %776 = vmatpush1.bf16.msra.mxu0 %v756
      %777 = vmatprep.subr.bf16.mxu0 0
      %778 = vmatpush2.bf16.msra.mxu0 0
      %779 = vmatprep.subr.bf16.mxu0 0
      %780 = vmatpush2.bf16.msra.mxu0 0
      %781 = vmatprep.subr.bf16.mxu0 0
      %782 = vmatpush2.bf16.msra.mxu0 0
      %783 = vmatprep.subr.bf16.mxu0 0
      %784 = vmatpush2.bf16.msra.mxu0 0
      %785 = vmatprep.subr.bf16.mxu0 0
      %786 = vmatpush2.bf16.msra.mxu0 0
      %787 = vmatprep.subr.bf16.mxu0 0
      %788 = vmatpush2.bf16.msra.mxu0 0
      %789 = vmatprep.subr.bf16.mxu0 0
      %790 = vmatpush2.bf16.msra.mxu0 0
      %791 = vmatprep.subr.bf16.mxu0 0
      %792 = vmatpush2.bf16.msra.mxu0 0
      %793 = vmatprep.mubr.bf16.mxu0 0
      %794 = vmatmul.mubr.bf16.gmra.mxu0 %v753
      %v795 = vpop.f32.mrf.mxu0
      %v796 = vadd.f32 0.0, %v795
      %v797 = vpop.f32.mrf.mxu0
      %v798 = vadd.f32 0.0, %v797
      %v799 = vpop.f32.mrf.mxu0
      %v800 = vpop.f32.mrf.mxu0
      %801 = vdwg.mxu0
      %v802 = vadd.f32 %v686, %v796
      %v803 = vadd.f32 %v688, %v798
      %v804 = vld [vmem:[#allocation2] sm:$0x3f]
      %805 = vrot.lane.b32.xlu0 %v548, 16
      %v806 = vpop.permute.xlu0 %805
      %v807 = vrot.slane %v806, 6
      %vm808 = vcmask 130048
      %v809 = vsel %vm808, %v807, %v806
      %v811 = vmul.bf16 %v804, %v809
      %s812 = scalar_lea.vmem %s3, 12
      %v813 = vld [vmem:[%s812] sm:$0xf]
      %v815 = vcombine.high %v811, %v811
      %v817 = vunpack.c.l.s4 1983009808
      %v818 = vunpack.c.0.s8 %v817
      %v819 = vlaneseq
      %v820 = vshrl.u32 %v819, 7
      %v821 = vsub.s32 %v818, %v820
      %v822 = vrot.slane %v811, %v821
      %v824 = vunpack.c.l.s4 1983009808
      %v825 = vunpack.c.0.s8 %v824
      %v826 = vlaneseq
      %v827 = vshrl.u32 %v826, 7
      %v828 = vsub.s32 %v825, %v827
      %v829 = vrot.slane %v815, %v828
      %v830 = vcombine.high %v822, %v822
      %831 = vrot.lane.b32.xlu0 %v822, 112
      %v832 = vpop.permute.xlu0 %831
      %833 = vrot.lane.b32.xlu0 %v830, 112
      %v834 = vpop.permute.xlu0 %833
      %835 = vrot.lane.b32.xlu0 %v829, 112
      %v836 = vpop.permute.xlu0 %835
      %vm837 = vcmask 916480
      %v838 = vsel %vm837, %v832, %v834
      %v839 = vsel %vm837, %v834, %v836
      %v841 = vsel %vm581, %v813, 0
      %v844 = vsel %vm585, %v838, 0
      %v847 = vsel %vm585, %v839, 0
      %849 = vmatprep.subr.bf16.mxu0 0
      %850 = vmatpush1.bf16.msra.mxu0 0
      %851 = vmatprep.subr.bf16.mxu0 0
      %852 = vmatpush1.bf16.msra.mxu0 0
      %853 = vmatprep.subr.bf16.mxu0 0
      %854 = vmatpush1.bf16.msra.mxu0 0
      %855 = vmatprep.subr.bf16.mxu0 0
      %856 = vmatpush1.bf16.msra.mxu0 0
      %857 = vmatprep.subr.bf16.mxu0 0
      %858 = vmatpush1.bf16.msra.mxu0 0
      %859 = vmatprep.subr.bf16.mxu0 0
      %860 = vmatpush1.bf16.msra.mxu0 0
      %861 = vmatprep.subr.bf16.mxu0 0
      %862 = vmatpush1.bf16.msra.mxu0 0
      %863 = vmatprep.subr.bf16.mxu0 %v847
      %864 = vmatpush1.bf16.msra.mxu0 %v844
      %865 = vmatprep.subr.bf16.mxu0 0
      %866 = vmatpush2.bf16.msra.mxu0 0
      %867 = vmatprep.subr.bf16.mxu0 0
      %868 = vmatpush2.bf16.msra.mxu0 0
      %869 = vmatprep.subr.bf16.mxu0 0
      %870 = vmatpush2.bf16.msra.mxu0 0
      %871 = vmatprep.subr.bf16.mxu0 0
      %872 = vmatpush2.bf16.msra.mxu0 0
      %873 = vmatprep.subr.bf16.mxu0 0
      %874 = vmatpush2.bf16.msra.mxu0 0
      %875 = vmatprep.subr.bf16.mxu0 0
      %876 = vmatpush2.bf16.msra.mxu0 0
      %877 = vmatprep.subr.bf16.mxu0 0
      %878 = vmatpush2.bf16.msra.mxu0 0
      %879 = vmatprep.subr.bf16.mxu0 0
      %880 = vmatpush2.bf16.msra.mxu0 0
      %881 = vmatprep.mubr.bf16.mxu0 0
      %882 = vmatmul.mubr.bf16.gmra.mxu0 %v841
      %v883 = vpop.f32.mrf.mxu0
      %v884 = vadd.f32 0.0, %v883
      %v885 = vpop.f32.mrf.mxu0
      %v886 = vadd.f32 0.0, %v885
      %v887 = vpop.f32.mrf.mxu0
      %v888 = vpop.f32.mrf.mxu0
      %889 = vdwg.mxu0
      %v890 = vadd.f32 %v802, %v884
      %v891 = vadd.f32 %v803, %v886
      %v892 = vld [vmem:[#allocation2] sm:$0x3f]
      %s893 = scalar_lea.vmem %s3, 16
      %v894 = vld [vmem:[%s893] sm:$0xf]
      %v896 = vcombine.high %v892, %v892
      %v898 = vunpack.c.l.s4 1983009808
      %v899 = vunpack.c.0.s8 %v898
      %v900 = vlaneseq
      %v901 = vshrl.u32 %v900, 7
      %v902 = vsub.s32 %v899, %v901
      %v903 = vrot.slane %v892, %v902
      %v905 = vunpack.c.l.s4 1983009808
      %v906 = vunpack.c.0.s8 %v905
      %v907 = vlaneseq
      %v908 = vshrl.u32 %v907, 7
      %v909 = vsub.s32 %v906, %v908
      %v910 = vrot.slane %v896, %v909
      %v911 = vcombine.high %v903, %v903
      %912 = vrot.lane.b32.xlu0 %v903, 111
      %v913 = vpop.permute.xlu0 %912
      %914 = vrot.lane.b32.xlu0 %v911, 111
      %v915 = vpop.permute.xlu0 %914
      %916 = vrot.lane.b32.xlu0 %v910, 111
      %v917 = vpop.permute.xlu0 %916
      %vm918 = vcmask 908288
      %v919 = vsel %vm918, %v913, %v915
      %v920 = vsel %vm918, %v915, %v917
      %v922 = vsel %vm581, %v894, 0
      %v925 = vsel %vm585, %v919, 0
      %v928 = vsel %vm585, %v920, 0
      %930 = vmatprep.subr.bf16.mxu0 0
      %931 = vmatpush1.bf16.msra.mxu0 0
      %932 = vmatprep.subr.bf16.mxu0 0
      %933 = vmatpush1.bf16.msra.mxu0 0
      %934 = vmatprep.subr.bf16.mxu0 0
      %935 = vmatpush1.bf16.msra.mxu0 0
      %936 = vmatprep.subr.bf16.mxu0 0
      %937 = vmatpush1.bf16.msra.mxu0 0
      %938 = vmatprep.subr.bf16.mxu0 0
      %939 = vmatpush1.bf16.msra.mxu0 0
      %940 = vmatprep.subr.bf16.mxu0 0
      %941 = vmatpush1.bf16.msra.mxu0 0
      %942 = vmatprep.subr.bf16.mxu0 0
      %943 = vmatpush1.bf16.msra.mxu0 0
      %944 = vmatprep.subr.bf16.mxu0 %v928
      %945 = vmatpush1.bf16.msra.mxu0 %v925
      %946 = vmatprep.subr.bf16.mxu0 0
      %947 = vmatpush2.bf16.msra.mxu0 0
      %948 = vmatprep.subr.bf16.mxu0 0
      %949 = vmatpush2.bf16.msra.mxu0 0
      %950 = vmatprep.subr.bf16.mxu0 0
      %951 = vmatpush2.bf16.msra.mxu0 0
      %952 = vmatprep.subr.bf16.mxu0 0
      %953 = vmatpush2.bf16.msra.mxu0 0
      %954 = vmatprep.subr.bf16.mxu0 0
      %955 = vmatpush2.bf16.msra.mxu0 0
      %956 = vmatprep.subr.bf16.mxu0 0
      %957 = vmatpush2.bf16.msra.mxu0 0
      %958 = vmatprep.subr.bf16.mxu0 0
      %959 = vmatpush2.bf16.msra.mxu0 0
      %960 = vmatprep.subr.bf16.mxu0 0
      %961 = vmatpush2.bf16.msra.mxu0 0
      %962 = vmatprep.mubr.bf16.mxu0 0
      %963 = vmatmul.mubr.bf16.gmra.mxu0 %v922
      %v964 = vpop.f32.mrf.mxu0
      %v965 = vadd.f32 0.0, %v964
      %v966 = vpop.f32.mrf.mxu0
      %v967 = vadd.f32 0.0, %v966
      %v968 = vpop.f32.mrf.mxu0
      %v969 = vpop.f32.mrf.mxu0
      %970 = vdwg.mxu0
      %v971 = vadd.f32 %v890, %v965
      %v972 = vadd.f32 %v891, %v967
      %v973 = vld [vmem:[#allocation2] sm:$0x3f]
      %974 = vrot.lane.b32.xlu0 %v716, 18
      %v975 = vpop.permute.xlu0 %974
      %v976 = vrot.slane %v975, 6
      %vm977 = vcmask 146432
      %v978 = vsel %vm977, %v976, %v975
      %v980 = vmul.bf16 %v973, %v978
      %s981 = scalar_lea.vmem %s3, 20
      %v982 = vld [vmem:[%s981] sm:$0xf]
      %v984 = vcombine.high %v980, %v980
      %v986 = vunpack.c.l.s4 1983009808
      %v987 = vunpack.c.0.s8 %v986
      %v988 = vlaneseq
      %v989 = vshrl.u32 %v988, 7
      %v990 = vsub.s32 %v987, %v989
      %v991 = vrot.slane %v980, %v990
      %v993 = vunpack.c.l.s4 1983009808
      %v994 = vunpack.c.0.s8 %v993
      %v995 = vlaneseq
      %v996 = vshrl.u32 %v995, 7
      %v997 = vsub.s32 %v994, %v996
      %v998 = vrot.slane %v984, %v997
      %v999 = vcombine.high %v991, %v991
      %1000 = vrot.lane.b32.xlu0 %v991, 110
      %v1001 = vpop.permute.xlu0 %1000
      %1002 = vrot.lane.b32.xlu0 %v999, 110
      %v1003 = vpop.permute.xlu0 %1002
      %1004 = vrot.lane.b32.xlu0 %v998, 110
      %v1005 = vpop.permute.xlu0 %1004
      %vm1006 = vcmask 900096
      %v1007 = vsel %vm1006, %v1001, %v1003
      %v1008 = vsel %vm1006, %v1003, %v1005
      %v1010 = vsel %vm581, %v982, 0
      %v1013 = vsel %vm585, %v1007, 0
      %v1016 = vsel %vm585, %v1008, 0
      %1018 = vmatprep.subr.bf16.mxu0 0
      %1019 = vmatpush1.bf16.msra.mxu0 0
      %1020 = vmatprep.subr.bf16.mxu0 0
      %1021 = vmatpush1.bf16.msra.mxu0 0
      %1022 = vmatprep.subr.bf16.mxu0 0
      %1023 = vmatpush1.bf16.msra.mxu0 0
      %1024 = vmatprep.subr.bf16.mxu0 0
      %1025 = vmatpush1.bf16.msra.mxu0 0
      %1026 = vmatprep.subr.bf16.mxu0 0
      %1027 = vmatpush1.bf16.msra.mxu0 0
      %1028 = vmatprep.subr.bf16.mxu0 0
      %1029 = vmatpush1.bf16.msra.mxu0 0
      %1030 = vmatprep.subr.bf16.mxu0 0
      %1031 = vmatpush1.bf16.msra.mxu0 0
      %1032 = vmatprep.subr.bf16.mxu0 %v1016
      %1033 = vmatpush1.bf16.msra.mxu0 %v1013
      %1034 = vmatprep.subr.bf16.mxu0 0
      %1035 = vmatpush2.bf16.msra.mxu0 0
      %1036 = vmatprep.subr.bf16.mxu0 0
      %1037 = vmatpush2.bf16.msra.mxu0 0
      %1038 = vmatprep.subr.bf16.mxu0 0
      %1039 = vmatpush2.bf16.msra.mxu0 0
      %1040 = vmatprep.subr.bf16.mxu0 0
      %1041 = vmatpush2.bf16.msra.mxu0 0
      %1042 = vmatprep.subr.bf16.mxu0 0
      %1043 = vmatpush2.bf16.msra.mxu0 0
      %1044 = vmatprep.subr.bf16.mxu0 0
      %1045 = vmatpush2.bf16.msra.mxu0 0
      %1046 = vmatprep.subr.bf16.mxu0 0
      %1047 = vmatpush2.bf16.msra.mxu0 0
      %1048 = vmatprep.subr.bf16.mxu0 0
      %1049 = vmatpush2.bf16.msra.mxu0 0
      %1050 = vmatprep.mubr.bf16.mxu0 0
      %1051 = vmatmul.mubr.bf16.gmra.mxu0 %v1010
      %v1052 = vpop.f32.mrf.mxu0
      %v1053 = vadd.f32 0.0, %v1052
      %v1054 = vpop.f32.mrf.mxu0
      %v1055 = vadd.f32 0.0, %v1054
      %v1056 = vpop.f32.mrf.mxu0
      %v1057 = vpop.f32.mrf.mxu0
      %1058 = vdwg.mxu0
      %v1059 = vadd.f32 %v971, %v1053
      %v1060 = vadd.f32 %v972, %v1055
      %v1061 = vld [vmem:[#allocation2] sm:$0x3f]
      %1062 = vrot.lane.b32.xlu0 %v548, 32
      %v1063 = vpop.permute.xlu0 %1062
      %v1064 = vrot.slane %v1063, 6
      %vm1065 = vcmask 261120
      %v1066 = vsel %vm1065, %v1064, %v1063
      %v1068 = vmul.bf16 %v1061, %v1066
      %s1069 = scalar_lea.vmem %s3, 24
      %v1070 = vld [vmem:[%s1069] sm:$0xf]
      %v1072 = vcombine.high %v1068, %v1068
      %v1074 = vunpack.c.l.s4 1983009808
      %v1075 = vunpack.c.0.s8 %v1074
      %v1076 = vlaneseq
      %v1077 = vshrl.u32 %v1076, 7
      %v1078 = vsub.s32 %v1075, %v1077
      %v1079 = vrot.slane %v1068, %v1078
      %v1081 = vunpack.c.l.s4 1983009808
      %v1082 = vunpack.c.0.s8 %v1081
      %v1083 = vlaneseq
      %v1084 = vshrl.u32 %v1083, 7
      %v1085 = vsub.s32 %v1082, %v1084
      %v1086 = vrot.slane %v1072, %v1085
      %v1087 = vcombine.high %v1079, %v1079
      %1088 = vrot.lane.b32.xlu0 %v1079, 96
      %v1089 = vpop.permute.xlu0 %1088
      %1090 = vrot.lane.b32.xlu0 %v1087, 96
      %v1091 = vpop.permute.xlu0 %1090
      %1092 = vrot.lane.b32.xlu0 %v1086, 96
      %v1093 = vpop.permute.xlu0 %1092
      %vm1094 = vcmask 785408
      %v1095 = vsel %vm1094, %v1089, %v1091
      %v1096 = vsel %vm1094, %v1091, %v1093
      %v1098 = vsel %vm581, %v1070, 0
      %v1101 = vsel %vm585, %v1095, 0
      %v1104 = vsel %vm585, %v1096, 0
      %1106 = vmatprep.subr.bf16.mxu0 0
      %1107 = vmatpush1.bf16.msra.mxu0 0
      %1108 = vmatprep.subr.bf16.mxu0 0
      %1109 = vmatpush1.bf16.msra.mxu0 0
      %1110 = vmatprep.subr.bf16.mxu0 0
      %1111 = vmatpush1.bf16.msra.mxu0 0
      %1112 = vmatprep.subr.bf16.mxu0 0
      %1113 = vmatpush1.bf16.msra.mxu0 0
      %1114 = vmatprep.subr.bf16.mxu0 0
      %1115 = vmatpush1.bf16.msra.mxu0 0
      %1116 = vmatprep.subr.bf16.mxu0 0
      %1117 = vmatpush1.bf16.msra.mxu0 0
      %1118 = vmatprep.subr.bf16.mxu0 0
      %1119 = vmatpush1.bf16.msra.mxu0 0
      %1120 = vmatprep.subr.bf16.mxu0 %v1104
      %1121 = vmatpush1.bf16.msra.mxu0 %v1101
      %1122 = vmatprep.subr.bf16.mxu0 0
      %1123 = vmatpush2.bf16.msra.mxu0 0
      %1124 = vmatprep.subr.bf16.mxu0 0
      %1125 = vmatpush2.bf16.msra.mxu0 0
      %1126 = vmatprep.subr.bf16.mxu0 0
      %1127 = vmatpush2.bf16.msra.mxu0 0
      %1128 = vmatprep.subr.bf16.mxu0 0
      %1129 = vmatpush2.bf16.msra.mxu0 0
      %1130 = vmatprep.subr.bf16.mxu0 0
      %1131 = vmatpush2.bf16.msra.mxu0 0
      %1132 = vmatprep.subr.bf16.mxu0 0
      %1133 = vmatpush2.bf16.msra.mxu0 0
      %1134 = vmatprep.subr.bf16.mxu0 0
      %1135 = vmatpush2.bf16.msra.mxu0 0
      %1136 = vmatprep.subr.bf16.mxu0 0
      %1137 = vmatpush2.bf16.msra.mxu0 0
      %1138 = vmatprep.mubr.bf16.mxu0 0
      %1139 = vmatmul.mubr.bf16.gmra.mxu0 %v1098
      %v1140 = vpop.f32.mrf.mxu0
      %v1141 = vadd.f32 0.0, %v1140
      %v1142 = vpop.f32.mrf.mxu0
      %v1143 = vadd.f32 0.0, %v1142
      %v1144 = vpop.f32.mrf.mxu0
      %v1145 = vpop.f32.mrf.mxu0
      %1146 = vdwg.mxu0
      %v1147 = vadd.f32 %v1059, %v1141
      %v1148 = vadd.f32 %v1060, %v1143
      %v1149 = vld [vmem:[#allocation2] sm:$0x3f]
      %s1150 = scalar_lea.vmem %s3, 28
      %v1151 = vld [vmem:[%s1150] sm:$0xf]
      %v1153 = vcombine.high %v1149, %v1149
      %v1155 = vunpack.c.l.s4 1983009808
      %v1156 = vunpack.c.0.s8 %v1155
      %v1157 = vlaneseq
      %v1158 = vshrl.u32 %v1157, 7
      %v1159 = vsub.s32 %v1156, %v1158
      %v1160 = vrot.slane %v1149, %v1159
      %v1162 = vunpack.c.l.s4 1983009808
      %v1163 = vunpack.c.0.s8 %v1162
      %v1164 = vlaneseq
      %v1165 = vshrl.u32 %v1164, 7
      %v1166 = vsub.s32 %v1163, %v1165
      %v1167 = vrot.slane %v1153, %v1166
      %v1168 = vcombine.high %v1160, %v1160
      %1169 = vrot.lane.b32.xlu0 %v1160, 95
      %v1170 = vpop.permute.xlu0 %1169
      %1171 = vrot.lane.b32.xlu0 %v1168, 95
      %v1172 = vpop.permute.xlu0 %1171
      %1173 = vrot.lane.b32.xlu0 %v1167, 95
      %v1174 = vpop.permute.xlu0 %1173
      %vm1175 = vcmask 777216
      %v1176 = vsel %vm1175, %v1170, %v1172
      %v1177 = vsel %vm1175, %v1172, %v1174
      %v1179 = vsel %vm581, %v1151, 0
      %v1182 = vsel %vm585, %v1176, 0
      %v1185 = vsel %vm585, %v1177, 0
      %1187 = vmatprep.subr.bf16.mxu0 0
      %1188 = vmatpush1.bf16.msra.mxu0 0
      %1189 = vmatprep.subr.bf16.mxu0 0
      %1190 = vmatpush1.bf16.msra.mxu0 0
      %1191 = vmatprep.subr.bf16.mxu0 0
      %1192 = vmatpush1.bf16.msra.mxu0 0
      %1193 = vmatprep.subr.bf16.mxu0 0
      %1194 = vmatpush1.bf16.msra.mxu0 0
      %1195 = vmatprep.subr.bf16.mxu0 0
      %1196 = vmatpush1.bf16.msra.mxu0 0
      %1197 = vmatprep.subr.bf16.mxu0 0
      %1198 = vmatpush1.bf16.msra.mxu0 0
      %1199 = vmatprep.subr.bf16.mxu0 0
      %1200 = vmatpush1.bf16.msra.mxu0 0
      %1201 = vmatprep.subr.bf16.mxu0 %v1185
      %1202 = vmatpush1.bf16.msra.mxu0 %v1182
      %1203 = vmatprep.subr.bf16.mxu0 0
      %1204 = vmatpush2.bf16.msra.mxu0 0
      %1205 = vmatprep.subr.bf16.mxu0 0
      %1206 = vmatpush2.bf16.msra.mxu0 0
      %1207 = vmatprep.subr.bf16.mxu0 0
      %1208 = vmatpush2.bf16.msra.mxu0 0
      %1209 = vmatprep.subr.bf16.mxu0 0
      %1210 = vmatpush2.bf16.msra.mxu0 0
      %1211 = vmatprep.subr.bf16.mxu0 0
      %1212 = vmatpush2.bf16.msra.mxu0 0
      %1213 = vmatprep.subr.bf16.mxu0 0
      %1214 = vmatpush2.bf16.msra.mxu0 0
      %1215 = vmatprep.subr.bf16.mxu0 0
      %1216 = vmatpush2.bf16.msra.mxu0 0
      %1217 = vmatprep.subr.bf16.mxu0 0
      %1218 = vmatpush2.bf16.msra.mxu0 0
      %1219 = vmatprep.mubr.bf16.mxu0 0
      %1220 = vmatmul.mubr.bf16.gmra.mxu0 %v1179
      %v1221 = vpop.f32.mrf.mxu0
      %v1222 = vadd.f32 0.0, %v1221
      %v1223 = vpop.f32.mrf.mxu0
      %v1224 = vadd.f32 0.0, %v1223
      %v1225 = vpop.f32.mrf.mxu0
      %v1226 = vpop.f32.mrf.mxu0
      %1227 = vdwg.mxu0
      %v1228 = vadd.f32 %v1147, %v1222
      %v1229 = vadd.f32 %v1148, %v1224
      %v1230 = vld [vmem:[#allocation2] sm:$0x3f]
      %1231 = vrot.lane.b32.xlu0 %v716, 34
      %v1232 = vpop.permute.xlu0 %1231
      %v1233 = vrot.slane %v1232, 6
      %vm1234 = vcmask 277504
      %v1235 = vsel %vm1234, %v1233, %v1232
      %v1237 = vmul.bf16 %v1230, %v1235
      %s1238 = scalar_lea.vmem %s3, 32
      %v1239 = vld [vmem:[%s1238] sm:$0xf]
      %v1241 = vcombine.high %v1237, %v1237
      %v1243 = vunpack.c.l.s4 1983009808
      %v1244 = vunpack.c.0.s8 %v1243
      %v1245 = vlaneseq
      %v1246 = vshrl.u32 %v1245, 7
      %v1247 = vsub.s32 %v1244, %v1246
      %v1248 = vrot.slane %v1237, %v1247
      %v1250 = vunpack.c.l.s4 1983009808
      %v1251 = vunpack.c.0.s8 %v1250
      %v1252 = vlaneseq
      %v1253 = vshrl.u32 %v1252, 7
      %v1254 = vsub.s32 %v1251, %v1253
      %v1255 = vrot.slane %v1241, %v1254
      %v1256 = vcombine.high %v1248, %v1248
      %1257 = vrot.lane.b32.xlu0 %v1248, 94
      %v1258 = vpop.permute.xlu0 %1257
      %1259 = vrot.lane.b32.xlu0 %v1256, 94
      %v1260 = vpop.permute.xlu0 %1259
      %1261 = vrot.lane.b32.xlu0 %v1255, 94
      %v1262 = vpop.permute.xlu0 %1261
      %vm1263 = vcmask 769024
      %v1264 = vsel %vm1263, %v1258, %v1260
      %v1265 = vsel %vm1263, %v1260, %v1262
      %v1267 = vsel %vm581, %v1239, 0
      %v1270 = vsel %vm585, %v1264, 0
      %v1273 = vsel %vm585, %v1265, 0
      %1275 = vmatprep.subr.bf16.mxu0 0
      %1276 = vmatpush1.bf16.msra.mxu0 0
      %1277 = vmatprep.subr.bf16.mxu0 0
      %1278 = vmatpush1.bf16.msra.mxu0 0
      %1279 = vmatprep.subr.bf16.mxu0 0
      %1280 = vmatpush1.bf16.msra.mxu0 0
      %1281 = vmatprep.subr.bf16.mxu0 0
      %1282 = vmatpush1.bf16.msra.mxu0 0
      %1283 = vmatprep.subr.bf16.mxu0 0
      %1284 = vmatpush1.bf16.msra.mxu0 0
      %1285 = vmatprep.subr.bf16.mxu0 0
      %1286 = vmatpush1.bf16.msra.mxu0 0
      %1287 = vmatprep.subr.bf16.mxu0 0
      %1288 = vmatpush1.bf16.msra.mxu0 0
      %1289 = vmatprep.subr.bf16.mxu0 %v1273
      %1290 = vmatpush1.bf16.msra.mxu0 %v1270
      %1291 = vmatprep.subr.bf16.mxu0 0
      %1292 = vmatpush2.bf16.msra.mxu0 0
      %1293 = vmatprep.subr.bf16.mxu0 0
      %1294 = vmatpush2.bf16.msra.mxu0 0
      %1295 = vmatprep.subr.bf16.mxu0 0
      %1296 = vmatpush2.bf16.msra.mxu0 0
      %1297 = vmatprep.subr.bf16.mxu0 0
      %1298 = vmatpush2.bf16.msra.mxu0 0
      %1299 = vmatprep.subr.bf16.mxu0 0
      %1300 = vmatpush2.bf16.msra.mxu0 0
      %1301 = vmatprep.subr.bf16.mxu0 0
      %1302 = vmatpush2.bf16.msra.mxu0 0
      %1303 = vmatprep.subr.bf16.mxu0 0
      %1304 = vmatpush2.bf16.msra.mxu0 0
      %1305 = vmatprep.subr.bf16.mxu0 0
      %1306 = vmatpush2.bf16.msra.mxu0 0
      %1307 = vmatprep.mubr.bf16.mxu0 0
      %1308 = vmatmul.mubr.bf16.gmra.mxu0 %v1267
      %v1309 = vpop.f32.mrf.mxu0
      %v1310 = vadd.f32 0.0, %v1309
      %v1311 = vpop.f32.mrf.mxu0
      %v1312 = vadd.f32 0.0, %v1311
      %v1313 = vpop.f32.mrf.mxu0
      %v1314 = vpop.f32.mrf.mxu0
      %1315 = vdwg.mxu0
      %v1316 = vadd.f32 %v1228, %v1310
      %v1317 = vadd.f32 %v1229, %v1312
      %1319 = vset.pattern.permute.xlu0 0
      %1320 = vperm.xlu0 %1319, %v442
      %v1321 = vpop.permute.xlu0 %1320
      %v1323 = vadd.f32 %v1316, %v1321
      %v1324 = vadd.f32 %v1317, %v1321
      %v1325 = vadd.f32 %v1323, %v1324
      %1326 = vadd.xlane.f32.xlu0 %v1325
      %v1327 = vpop.xlane.xlu0 %1326
      %v1328 = vmul.f32 %v1323, %v1323
      %v1329 = vmul.f32 %v1324, %v1324
      %v1330 = vadd.f32 %v1328, %v1329
      %1331 = vadd.xlane.f32.xlu0 %v1330
      %v1332 = vpop.xlane.xlu0 %1331
      %vm1333 = vcmask 7168
      %v1334 = vsel %vm1333, %v1327, %v1332
      %vm1335 = vcmask 15360
      %1336 = vst.msk [vmem:[%s436] sm:$0xff] %vm1335, %v1334
      %v1337 = vpack.c.bf16 %v1323, %v1323
      %v1338 = vpack.c.bf16 %v1324, %v1324
      %v1341 = vunpack.c.l.b16 %v1337
      %v1342 = vunpack.c.l.b16 %v1338
      %v1343 = vpack.c.b16 %v1342, %v1341
      %1345 = vst [vmem:[%s427] sm:$0xff] %v1343
      %v1346 = vld [vmem:[%s5] sm:$0xf]
      %v1347 = vld [vmem:[%s6] sm:$0xf]
      %v1348 = vld [vmem:[%s8] sm:$0xff]
      %1349 = vst.msk [vmem:[#allocation3] sm:$0x3] %vm443, 0
      %1350 = vst.msk [vmem:[#allocation3 + $0x4] sm:$0x3] %vm445, 0
      %1352 = vset.pattern.permute.xlu0 0
      %1353 = vperm.xlu0 %1352, %v1346
      %v1354 = vpop.permute.xlu0 %1353
      %v1356 = vunpack.c.l.s4 839922192
      %v1357 = vunpack.c.0.s8 %v1356
      %v1358 = vlaneseq
      %v1359 = vshrl.u32 %v1358, 7
      %v1360 = vsub.s32 %v1357, %v1359
      %v1361 = vrot.slane %v1354, %v1360
      %v1363 = vmul.f32 %v438, %v1361
      %1365 = vset.pattern.permute.xlu0 0
      %1366 = vperm.xlu0 %1365, %v1347
      %v1367 = vpop.permute.xlu0 %1366
      %v1369 = vunpack.c.l.s4 839922192
      %v1370 = vunpack.c.0.s8 %v1369
      %v1371 = vlaneseq
      %v1372 = vshrl.u32 %v1371, 7
      %v1373 = vsub.s32 %v1370, %v1372
      %v1374 = vrot.slane %v1367, %v1373
      %v1376 = vadd.f32 %v1363, %v1374
      %v1377 = vmax.f32 %v1376, 0.0
      %v1379 = vcombine.high %v1377, %v1377
      %v1381 = vpack.c.bf16 %v1377, %v1377
      %v1382 = vpack.c.bf16 %v1379, %v1379
      %v1385 = vcombine.low %v1381, %v1382
      %v1387 = vunpack.c.l.s4 1983009808
      %v1388 = vunpack.c.0.s8 %v1387
      %v1389 = vlaneseq
      %v1390 = vshrl.u32 %v1389, 7
      %v1391 = vsub.s32 %v1388, %v1390
      %v1392 = vrot.slane %v1385, %v1391
      %1393 = vrot.lane.b32.xlu0 %v1392, 17
      %v1394 = vpop.permute.xlu0 %1393
      %v1395 = vrot.slane %v1394, 6
      %v1396 = vsel %vm492, %v1395, %v1394
      %1398 = vst.msk [vmem:[#allocation3] sm:$0x3f] %vm499, %v1396
      %v1399 = vld [vmem:[#allocation3] sm:$0xf]
      %v1400 = vmul.bf16 %v1399, %v548
      %v1401 = vld [vmem:[%s7] sm:$0xf]
      %v1402 = vld [vmem:[#allocation3] sm:$0x3f]
      %s1403 = scalar_lea.vmem %s7, 4
      %v1404 = vld [vmem:[%s1403] sm:$0xf]
      %v1406 = vcombine.high %v1402, %v1402
      %v1408 = vunpack.c.l.s4 1983009808
      %v1409 = vunpack.c.0.s8 %v1408
      %v1410 = vlaneseq
      %v1411 = vshrl.u32 %v1410, 7
      %v1412 = vsub.s32 %v1409, %v1411
      %v1413 = vrot.slane %v1402, %v1412
      %v1415 = vunpack.c.l.s4 1983009808
      %v1416 = vunpack.c.0.s8 %v1415
      %v1417 = vlaneseq
      %v1418 = vshrl.u32 %v1417, 7
      %v1419 = vsub.s32 %v1416, %v1418
      %v1420 = vrot.slane %v1406, %v1419
      %v1421 = vcombine.high %v1413, %v1413
      %1422 = vrot.lane.b32.xlu0 %v1413, 127
      %v1423 = vpop.permute.xlu0 %1422
      %1424 = vrot.lane.b32.xlu0 %v1421, 127
      %v1425 = vpop.permute.xlu0 %1424
      %1426 = vrot.lane.b32.xlu0 %v1420, 127
      %v1427 = vpop.permute.xlu0 %1426
      %v1428 = vsel %vm578, %v1423, %v1425
      %v1429 = vsel %vm578, %v1425, %v1427
      %v1431 = vsel %vm581, %v1404, 0
      %v1434 = vsel %vm585, %v1428, 0
      %v1437 = vsel %vm585, %v1429, 0
      %1439 = vmatprep.subr.bf16.mxu0 0
      %1440 = vmatpush1.bf16.msra.mxu0 0
      %1441 = vmatprep.subr.bf16.mxu0 0
      %1442 = vmatpush1.bf16.msra.mxu0 0
      %1443 = vmatprep.subr.bf16.mxu0 0
      %1444 = vmatpush1.bf16.msra.mxu0 0
      %1445 = vmatprep.subr.bf16.mxu0 0
      %1446 = vmatpush1.bf16.msra.mxu0 0
      %1447 = vmatprep.subr.bf16.mxu0 0
      %1448 = vmatpush1.bf16.msra.mxu0 0
      %1449 = vmatprep.subr.bf16.mxu0 0
      %1450 = vmatpush1.bf16.msra.mxu0 0
      %1451 = vmatprep.subr.bf16.mxu0 0
      %1452 = vmatpush1.bf16.msra.mxu0 0
      %1453 = vmatprep.subr.bf16.mxu0 %v1437
      %1454 = vmatpush1.bf16.msra.mxu0 %v1434
      %1455 = vmatprep.subr.bf16.mxu0 0
      %1456 = vmatpush2.bf16.msra.mxu0 0
      %1457 = vmatprep.subr.bf16.mxu0 0
      %1458 = vmatpush2.bf16.msra.mxu0 0
      %1459 = vmatprep.subr.bf16.mxu0 0
      %1460 = vmatpush2.bf16.msra.mxu0 0
      %1461 = vmatprep.subr.bf16.mxu0 0
      %1462 = vmatpush2.bf16.msra.mxu0 0
      %1463 = vmatprep.subr.bf16.mxu0 0
      %1464 = vmatpush2.bf16.msra.mxu0 0
      %1465 = vmatprep.subr.bf16.mxu0 0
      %1466 = vmatpush2.bf16.msra.mxu0 0
      %1467 = vmatprep.subr.bf16.mxu0 0
      %1468 = vmatpush2.bf16.msra.mxu0 0
      %1469 = vmatprep.subr.bf16.mxu0 0
      %1470 = vmatpush2.bf16.msra.mxu0 0
      %1471 = vmatprep.mubr.bf16.mxu0 0
      %1472 = vmatmul.mubr.bf16.gmra.mxu0 %v1431
      %v1473 = vpop.f32.mrf.mxu0
      %v1474 = vadd.f32 0.0, %v1473
      %v1475 = vpop.f32.mrf.mxu0
      %v1476 = vadd.f32 0.0, %v1475
      %v1477 = vpop.f32.mrf.mxu0
      %v1478 = vpop.f32.mrf.mxu0
      %1479 = vdwg.mxu0
      %v1482 = vunpack.c.l.s4 1983009808
      %v1483 = vunpack.c.0.s8 %v1482
      %v1484 = vlaneseq
      %v1485 = vshrl.u32 %v1484, 7
      %v1486 = vsub.s32 %v1483, %v1485
      %v1487 = vrot.slane %v1400, %v1486
      %v1488 = vcombine.high %v1487, %v1487
      %v1490 = vsel %vm581, %v1401, 0
      %v1493 = vsel %vm585, %v1487, 0
      %v1496 = vsel %vm585, %v1488, 0
      %1498 = vmatprep.subr.bf16.mxu0 0
      %1499 = vmatpush1.bf16.msra.mxu0 0
      %1500 = vmatprep.subr.bf16.mxu0 0
      %1501 = vmatpush1.bf16.msra.mxu0 0
      %1502 = vmatprep.subr.bf16.mxu0 0
      %1503 = vmatpush1.bf16.msra.mxu0 0
      %1504 = vmatprep.subr.bf16.mxu0 0
      %1505 = vmatpush1.bf16.msra.mxu0 0
      %1506 = vmatprep.subr.bf16.mxu0 0
      %1507 = vmatpush1.bf16.msra.mxu0 0
      %1508 = vmatprep.subr.bf16.mxu0 0
      %1509 = vmatpush1.bf16.msra.mxu0 0
      %1510 = vmatprep.subr.bf16.mxu0 0
      %1511 = vmatpush1.bf16.msra.mxu0 0
      %1512 = vmatprep.subr.bf16.mxu0 %v1496
      %1513 = vmatpush1.bf16.msra.mxu0 %v1493
      %1514 = vmatprep.subr.bf16.mxu0 0
      %1515 = vmatpush2.bf16.msra.mxu0 0
      %1516 = vmatprep.subr.bf16.mxu0 0
      %1517 = vmatpush2.bf16.msra.mxu0 0
      %1518 = vmatprep.subr.bf16.mxu0 0
      %1519 = vmatpush2.bf16.msra.mxu0 0
      %1520 = vmatprep.subr.bf16.mxu0 0
      %1521 = vmatpush2.bf16.msra.mxu0 0
      %1522 = vmatprep.subr.bf16.mxu0 0
      %1523 = vmatpush2.bf16.msra.mxu0 0
      %1524 = vmatprep.subr.bf16.mxu0 0
      %1525 = vmatpush2.bf16.msra.mxu0 0
      %1526 = vmatprep.subr.bf16.mxu0 0
      %1527 = vmatpush2.bf16.msra.mxu0 0
      %1528 = vmatprep.subr.bf16.mxu0 0
      %1529 = vmatpush2.bf16.msra.mxu0 0
      %1530 = vmatprep.mubr.bf16.mxu0 0
      %1531 = vmatmul.mubr.bf16.gmra.mxu0 %v1490
      %v1532 = vpop.f32.mrf.mxu0
      %v1533 = vadd.f32 %v1474, %v1532
      %v1534 = vpop.f32.mrf.mxu0
      %v1535 = vadd.f32 %v1476, %v1534
      %v1536 = vpop.f32.mrf.mxu0
      %v1537 = vpop.f32.mrf.mxu0
      %1538 = vdwg.mxu0
      %v1539 = vld [vmem:[#allocation3] sm:$0x3f]
      %v1540 = vmul.bf16 %v1539, %v721
      %s1541 = scalar_lea.vmem %s7, 8
      %v1542 = vld [vmem:[%s1541] sm:$0xf]
      %v1544 = vcombine.high %v1540, %v1540
      %v1546 = vunpack.c.l.s4 1983009808
      %v1547 = vunpack.c.0.s8 %v1546
      %v1548 = vlaneseq
      %v1549 = vshrl.u32 %v1548, 7
      %v1550 = vsub.s32 %v1547, %v1549
      %v1551 = vrot.slane %v1540, %v1550
      %v1553 = vunpack.c.l.s4 1983009808
      %v1554 = vunpack.c.0.s8 %v1553
      %v1555 = vlaneseq
      %v1556 = vshrl.u32 %v1555, 7
      %v1557 = vsub.s32 %v1554, %v1556
      %v1558 = vrot.slane %v1544, %v1557
      %v1559 = vcombine.high %v1551, %v1551
      %1560 = vrot.lane.b32.xlu0 %v1551, 126
      %v1561 = vpop.permute.xlu0 %1560
      %1562 = vrot.lane.b32.xlu0 %v1559, 126
      %v1563 = vpop.permute.xlu0 %1562
      %1564 = vrot.lane.b32.xlu0 %v1558, 126
      %v1565 = vpop.permute.xlu0 %1564
      %v1566 = vsel %vm749, %v1561, %v1563
      %v1567 = vsel %vm749, %v1563, %v1565
      %v1569 = vsel %vm581, %v1542, 0
      %v1572 = vsel %vm585, %v1566, 0
      %v1575 = vsel %vm585, %v1567, 0
      %1577 = vmatprep.subr.bf16.mxu0 0
      %1578 = vmatpush1.bf16.msra.mxu0 0
      %1579 = vmatprep.subr.bf16.mxu0 0
      %1580 = vmatpush1.bf16.msra.mxu0 0
      %1581 = vmatprep.subr.bf16.mxu0 0
      %1582 = vmatpush1.bf16.msra.mxu0 0
      %1583 = vmatprep.subr.bf16.mxu0 0
      %1584 = vmatpush1.bf16.msra.mxu0 0
      %1585 = vmatprep.subr.bf16.mxu0 0
      %1586 = vmatpush1.bf16.msra.mxu0 0
      %1587 = vmatprep.subr.bf16.mxu0 0
      %1588 = vmatpush1.bf16.msra.mxu0 0
      %1589 = vmatprep.subr.bf16.mxu0 0
      %1590 = vmatpush1.bf16.msra.mxu0 0
      %1591 = vmatprep.subr.bf16.mxu0 %v1575
      %1592 = vmatpush1.bf16.msra.mxu0 %v1572
      %1593 = vmatprep.subr.bf16.mxu0 0
      %1594 = vmatpush2.bf16.msra.mxu0 0
      %1595 = vmatprep.subr.bf16.mxu0 0
      %1596 = vmatpush2.bf16.msra.mxu0 0
      %1597 = vmatprep.subr.bf16.mxu0 0
      %1598 = vmatpush2.bf16.msra.mxu0 0
      %1599 = vmatprep.subr.bf16.mxu0 0
      %1600 = vmatpush2.bf16.msra.mxu0 0
      %1601 = vmatprep.subr.bf16.mxu0 0
      %1602 = vmatpush2.bf16.msra.mxu0 0
      %1603 = vmatprep.subr.bf16.mxu0 0
      %1604 = vmatpush2.bf16.msra.mxu0 0
      %1605 = vmatprep.subr.bf16.mxu0 0
      %1606 = vmatpush2.bf16.msra.mxu0 0
      %1607 = vmatprep.subr.bf16.mxu0 0
      %1608 = vmatpush2.bf16.msra.mxu0 0
      %1609 = vmatprep.mubr.bf16.mxu0 0
      %1610 = vmatmul.mubr.bf16.gmra.mxu0 %v1569
      %v1611 = vpop.f32.mrf.mxu0
      %v1612 = vadd.f32 0.0, %v1611
      %v1613 = vpop.f32.mrf.mxu0
      %v1614 = vadd.f32 0.0, %v1613
      %v1615 = vpop.f32.mrf.mxu0
      %v1616 = vpop.f32.mrf.mxu0
      %1617 = vdwg.mxu0
      %v1618 = vadd.f32 %v1533, %v1612
      %v1619 = vadd.f32 %v1535, %v1614
      %v1620 = vld [vmem:[#allocation3] sm:$0x3f]
      %v1621 = vmul.bf16 %v1620, %v809
      %s1622 = scalar_lea.vmem %s7, 12
      %v1623 = vld [vmem:[%s1622] sm:$0xf]
      %v1625 = vcombine.high %v1621, %v1621
      %v1627 = vunpack.c.l.s4 1983009808
      %v1628 = vunpack.c.0.s8 %v1627
      %v1629 = vlaneseq
      %v1630 = vshrl.u32 %v1629, 7
      %v1631 = vsub.s32 %v1628, %v1630
      %v1632 = vrot.slane %v1621, %v1631
      %v1634 = vunpack.c.l.s4 1983009808
      %v1635 = vunpack.c.0.s8 %v1634
      %v1636 = vlaneseq
      %v1637 = vshrl.u32 %v1636, 7
      %v1638 = vsub.s32 %v1635, %v1637
      %v1639 = vrot.slane %v1625, %v1638
      %v1640 = vcombine.high %v1632, %v1632
      %1641 = vrot.lane.b32.xlu0 %v1632, 112
      %v1642 = vpop.permute.xlu0 %1641
      %1643 = vrot.lane.b32.xlu0 %v1640, 112
      %v1644 = vpop.permute.xlu0 %1643
      %1645 = vrot.lane.b32.xlu0 %v1639, 112
      %v1646 = vpop.permute.xlu0 %1645
      %v1647 = vsel %vm837, %v1642, %v1644
      %v1648 = vsel %vm837, %v1644, %v1646
      %v1650 = vsel %vm581, %v1623, 0
      %v1653 = vsel %vm585, %v1647, 0
      %v1656 = vsel %vm585, %v1648, 0
      %1658 = vmatprep.subr.bf16.mxu0 0
      %1659 = vmatpush1.bf16.msra.mxu0 0
      %1660 = vmatprep.subr.bf16.mxu0 0
      %1661 = vmatpush1.bf16.msra.mxu0 0
      %1662 = vmatprep.subr.bf16.mxu0 0
      %1663 = vmatpush1.bf16.msra.mxu0 0
      %1664 = vmatprep.subr.bf16.mxu0 0
      %1665 = vmatpush1.bf16.msra.mxu0 0
      %1666 = vmatprep.subr.bf16.mxu0 0
      %1667 = vmatpush1.bf16.msra.mxu0 0
      %1668 = vmatprep.subr.bf16.mxu0 0
      %1669 = vmatpush1.bf16.msra.mxu0 0
      %1670 = vmatprep.subr.bf16.mxu0 0
      %1671 = vmatpush1.bf16.msra.mxu0 0
      %1672 = vmatprep.subr.bf16.mxu0 %v1656
      %1673 = vmatpush1.bf16.msra.mxu0 %v1653
      %1674 = vmatprep.subr.bf16.mxu0 0
      %1675 = vmatpush2.bf16.msra.mxu0 0
      %1676 = vmatprep.subr.bf16.mxu0 0
      %1677 = vmatpush2.bf16.msra.mxu0 0
      %1678 = vmatprep.subr.bf16.mxu0 0
      %1679 = vmatpush2.bf16.msra.mxu0 0
      %1680 = vmatprep.subr.bf16.mxu0 0
      %1681 = vmatpush2.bf16.msra.mxu0 0
      %1682 = vmatprep.subr.bf16.mxu0 0
      %1683 = vmatpush2.bf16.msra.mxu0 0
      %1684 = vmatprep.subr.bf16.mxu0 0
      %1685 = vmatpush2.bf16.msra.mxu0 0
      %1686 = vmatprep.subr.bf16.mxu0 0
      %1687 = vmatpush2.bf16.msra.mxu0 0
      %1688 = vmatprep.subr.bf16.mxu0 0
      %1689 = vmatpush2.bf16.msra.mxu0 0
      %1690 = vmatprep.mubr.bf16.mxu0 0
      %1691 = vmatmul.mubr.bf16.gmra.mxu0 %v1650
      %v1692 = vpop.f32.mrf.mxu0
      %v1693 = vadd.f32 0.0, %v1692
      %v1694 = vpop.f32.mrf.mxu0
      %v1695 = vadd.f32 0.0, %v1694
      %v1696 = vpop.f32.mrf.mxu0
      %v1697 = vpop.f32.mrf.mxu0
      %1698 = vdwg.mxu0
      %v1699 = vadd.f32 %v1618, %v1693
      %v1700 = vadd.f32 %v1619, %v1695
      %v1701 = vld [vmem:[#allocation3] sm:$0x3f]
      %s1702 = scalar_lea.vmem %s7, 16
      %v1703 = vld [vmem:[%s1702] sm:$0xf]
      %v1705 = vcombine.high %v1701, %v1701
      %v1707 = vunpack.c.l.s4 1983009808
      %v1708 = vunpack.c.0.s8 %v1707
      %v1709 = vlaneseq
      %v1710 = vshrl.u32 %v1709, 7
      %v1711 = vsub.s32 %v1708, %v1710
      %v1712 = vrot.slane %v1701, %v1711
      %v1714 = vunpack.c.l.s4 1983009808
      %v1715 = vunpack.c.0.s8 %v1714
      %v1716 = vlaneseq
      %v1717 = vshrl.u32 %v1716, 7
      %v1718 = vsub.s32 %v1715, %v1717
      %v1719 = vrot.slane %v1705, %v1718
      %v1720 = vcombine.high %v1712, %v1712
      %1721 = vrot.lane.b32.xlu0 %v1712, 111
      %v1722 = vpop.permute.xlu0 %1721
      %1723 = vrot.lane.b32.xlu0 %v1720, 111
      %v1724 = vpop.permute.xlu0 %1723
      %1725 = vrot.lane.b32.xlu0 %v1719, 111
      %v1726 = vpop.permute.xlu0 %1725
      %v1727 = vsel %vm918, %v1722, %v1724
      %v1728 = vsel %vm918, %v1724, %v1726
      %v1730 = vsel %vm581, %v1703, 0
      %v1733 = vsel %vm585, %v1727, 0
      %v1736 = vsel %vm585, %v1728, 0
      %1738 = vmatprep.subr.bf16.mxu0 0
      %1739 = vmatpush1.bf16.msra.mxu0 0
      %1740 = vmatprep.subr.bf16.mxu0 0
      %1741 = vmatpush1.bf16.msra.mxu0 0
      %1742 = vmatprep.subr.bf16.mxu0 0
      %1743 = vmatpush1.bf16.msra.mxu0 0
      %1744 = vmatprep.subr.bf16.mxu0 0
      %1745 = vmatpush1.bf16.msra.mxu0 0
      %1746 = vmatprep.subr.bf16.mxu0 0
      %1747 = vmatpush1.bf16.msra.mxu0 0
      %1748 = vmatprep.subr.bf16.mxu0 0
      %1749 = vmatpush1.bf16.msra.mxu0 0
      %1750 = vmatprep.subr.bf16.mxu0 0
      %1751 = vmatpush1.bf16.msra.mxu0 0
      %1752 = vmatprep.subr.bf16.mxu0 %v1736
      %1753 = vmatpush1.bf16.msra.mxu0 %v1733
      %1754 = vmatprep.subr.bf16.mxu0 0
      %1755 = vmatpush2.bf16.msra.mxu0 0
      %1756 = vmatprep.subr.bf16.mxu0 0
      %1757 = vmatpush2.bf16.msra.mxu0 0
      %1758 = vmatprep.subr.bf16.mxu0 0
      %1759 = vmatpush2.bf16.msra.mxu0 0
      %1760 = vmatprep.subr.bf16.mxu0 0
      %1761 = vmatpush2.bf16.msra.mxu0 0
      %1762 = vmatprep.subr.bf16.mxu0 0
      %1763 = vmatpush2.bf16.msra.mxu0 0
      %1764 = vmatprep.subr.bf16.mxu0 0
      %1765 = vmatpush2.bf16.msra.mxu0 0
      %1766 = vmatprep.subr.bf16.mxu0 0
      %1767 = vmatpush2.bf16.msra.mxu0 0
      %1768 = vmatprep.subr.bf16.mxu0 0
      %1769 = vmatpush2.bf16.msra.mxu0 0
      %1770 = vmatprep.mubr.bf16.mxu0 0
      %1771 = vmatmul.mubr.bf16.gmra.mxu0 %v1730
      %v1772 = vpop.f32.mrf.mxu0
      %v1773 = vadd.f32 0.0, %v1772
      %v1774 = vpop.f32.mrf.mxu0
      %v1775 = vadd.f32 0.0, %v1774
      %v1776 = vpop.f32.mrf.mxu0
      %v1777 = vpop.f32.mrf.mxu0
      %1778 = vdwg.mxu0
      %v1779 = vadd.f32 %v1699, %v1773
      %v1780 = vadd.f32 %v1700, %v1775
      %v1781 = vld [vmem:[#allocation3] sm:$0x3f]
      %v1782 = vmul.bf16 %v1781, %v978
      %s1783 = scalar_lea.vmem %s7, 20
      %v1784 = vld [vmem:[%s1783] sm:$0xf]
      %v1786 = vcombine.high %v1782, %v1782
      %v1788 = vunpack.c.l.s4 1983009808
      %v1789 = vunpack.c.0.s8 %v1788
      %v1790 = vlaneseq
      %v1791 = vshrl.u32 %v1790, 7
      %v1792 = vsub.s32 %v1789, %v1791
      %v1793 = vrot.slane %v1782, %v1792
      %v1795 = vunpack.c.l.s4 1983009808
      %v1796 = vunpack.c.0.s8 %v1795
      %v1797 = vlaneseq
      %v1798 = vshrl.u32 %v1797, 7
      %v1799 = vsub.s32 %v1796, %v1798
      %v1800 = vrot.slane %v1786, %v1799
      %v1801 = vcombine.high %v1793, %v1793
      %1802 = vrot.lane.b32.xlu0 %v1793, 110
      %v1803 = vpop.permute.xlu0 %1802
      %1804 = vrot.lane.b32.xlu0 %v1801, 110
      %v1805 = vpop.permute.xlu0 %1804
      %1806 = vrot.lane.b32.xlu0 %v1800, 110
      %v1807 = vpop.permute.xlu0 %1806
      %v1808 = vsel %vm1006, %v1803, %v1805
      %v1809 = vsel %vm1006, %v1805, %v1807
      %v1811 = vsel %vm581, %v1784, 0
      %v1814 = vsel %vm585, %v1808, 0
      %v1817 = vsel %vm585, %v1809, 0
      %1819 = vmatprep.subr.bf16.mxu0 0
      %1820 = vmatpush1.bf16.msra.mxu0 0
      %1821 = vmatprep.subr.bf16.mxu0 0
      %1822 = vmatpush1.bf16.msra.mxu0 0
      %1823 = vmatprep.subr.bf16.mxu0 0
      %1824 = vmatpush1.bf16.msra.mxu0 0
      %1825 = vmatprep.subr.bf16.mxu0 0
      %1826 = vmatpush1.bf16.msra.mxu0 0
      %1827 = vmatprep.subr.bf16.mxu0 0
      %1828 = vmatpush1.bf16.msra.mxu0 0
      %1829 = vmatprep.subr.bf16.mxu0 0
      %1830 = vmatpush1.bf16.msra.mxu0 0
      %1831 = vmatprep.subr.bf16.mxu0 0
      %1832 = vmatpush1.bf16.msra.mxu0 0
      %1833 = vmatprep.subr.bf16.mxu0 %v1817
      %1834 = vmatpush1.bf16.msra.mxu0 %v1814
      %1835 = vmatprep.subr.bf16.mxu0 0
      %1836 = vmatpush2.bf16.msra.mxu0 0
      %1837 = vmatprep.subr.bf16.mxu0 0
      %1838 = vmatpush2.bf16.msra.mxu0 0
      %1839 = vmatprep.subr.bf16.mxu0 0
      %1840 = vmatpush2.bf16.msra.mxu0 0
      %1841 = vmatprep.subr.bf16.mxu0 0
      %1842 = vmatpush2.bf16.msra.mxu0 0
      %1843 = vmatprep.subr.bf16.mxu0 0
      %1844 = vmatpush2.bf16.msra.mxu0 0
      %1845 = vmatprep.subr.bf16.mxu0 0
      %1846 = vmatpush2.bf16.msra.mxu0 0
      %1847 = vmatprep.subr.bf16.mxu0 0
      %1848 = vmatpush2.bf16.msra.mxu0 0
      %1849 = vmatprep.subr.bf16.mxu0 0
      %1850 = vmatpush2.bf16.msra.mxu0 0
      %1851 = vmatprep.mubr.bf16.mxu0 0
      %1852 = vmatmul.mubr.bf16.gmra.mxu0 %v1811
      %v1853 = vpop.f32.mrf.mxu0
      %v1854 = vadd.f32 0.0, %v1853
      %v1855 = vpop.f32.mrf.mxu0
      %v1856 = vadd.f32 0.0, %v1855
      %v1857 = vpop.f32.mrf.mxu0
      %v1858 = vpop.f32.mrf.mxu0
      %1859 = vdwg.mxu0
      %v1860 = vadd.f32 %v1779, %v1854
      %v1861 = vadd.f32 %v1780, %v1856
      %v1862 = vld [vmem:[#allocation3] sm:$0x3f]
      %v1863 = vmul.bf16 %v1862, %v1066
      %s1864 = scalar_lea.vmem %s7, 24
      %v1865 = vld [vmem:[%s1864] sm:$0xf]
      %v1867 = vcombine.high %v1863, %v1863
      %v1869 = vunpack.c.l.s4 1983009808
      %v1870 = vunpack.c.0.s8 %v1869
      %v1871 = vlaneseq
      %v1872 = vshrl.u32 %v1871, 7
      %v1873 = vsub.s32 %v1870, %v1872
      %v1874 = vrot.slane %v1863, %v1873
      %v1876 = vunpack.c.l.s4 1983009808
      %v1877 = vunpack.c.0.s8 %v1876
      %v1878 = vlaneseq
      %v1879 = vshrl.u32 %v1878, 7
      %v1880 = vsub.s32 %v1877, %v1879
      %v1881 = vrot.slane %v1867, %v1880
      %v1882 = vcombine.high %v1874, %v1874
      %1883 = vrot.lane.b32.xlu0 %v1874, 96
      %v1884 = vpop.permute.xlu0 %1883
      %1885 = vrot.lane.b32.xlu0 %v1882, 96
      %v1886 = vpop.permute.xlu0 %1885
      %1887 = vrot.lane.b32.xlu0 %v1881, 96
      %v1888 = vpop.permute.xlu0 %1887
      %v1889 = vsel %vm1094, %v1884, %v1886
      %v1890 = vsel %vm1094, %v1886, %v1888
      %v1892 = vsel %vm581, %v1865, 0
      %v1895 = vsel %vm585, %v1889, 0
      %v1898 = vsel %vm585, %v1890, 0
      %1900 = vmatprep.subr.bf16.mxu0 0
      %1901 = vmatpush1.bf16.msra.mxu0 0
      %1902 = vmatprep.subr.bf16.mxu0 0
      %1903 = vmatpush1.bf16.msra.mxu0 0
      %1904 = vmatprep.subr.bf16.mxu0 0
      %1905 = vmatpush1.bf16.msra.mxu0 0
      %1906 = vmatprep.subr.bf16.mxu0 0
      %1907 = vmatpush1.bf16.msra.mxu0 0
      %1908 = vmatprep.subr.bf16.mxu0 0
      %1909 = vmatpush1.bf16.msra.mxu0 0
      %1910 = vmatprep.subr.bf16.mxu0 0
      %1911 = vmatpush1.bf16.msra.mxu0 0
      %1912 = vmatprep.subr.bf16.mxu0 0
      %1913 = vmatpush1.bf16.msra.mxu0 0
      %1914 = vmatprep.subr.bf16.mxu0 %v1898
      %1915 = vmatpush1.bf16.msra.mxu0 %v1895
      %1916 = vmatprep.subr.bf16.mxu0 0
      %1917 = vmatpush2.bf16.msra.mxu0 0
      %1918 = vmatprep.subr.bf16.mxu0 0
      %1919 = vmatpush2.bf16.msra.mxu0 0
      %1920 = vmatprep.subr.bf16.mxu0 0
      %1921 = vmatpush2.bf16.msra.mxu0 0
      %1922 = vmatprep.subr.bf16.mxu0 0
      %1923 = vmatpush2.bf16.msra.mxu0 0
      %1924 = vmatprep.subr.bf16.mxu0 0
      %1925 = vmatpush2.bf16.msra.mxu0 0
      %1926 = vmatprep.subr.bf16.mxu0 0
      %1927 = vmatpush2.bf16.msra.mxu0 0
      %1928 = vmatprep.subr.bf16.mxu0 0
      %1929 = vmatpush2.bf16.msra.mxu0 0
      %1930 = vmatprep.subr.bf16.mxu0 0
      %1931 = vmatpush2.bf16.msra.mxu0 0
      %1932 = vmatprep.mubr.bf16.mxu0 0
      %1933 = vmatmul.mubr.bf16.gmra.mxu0 %v1892
      %v1934 = vpop.f32.mrf.mxu0
      %v1935 = vadd.f32 0.0, %v1934
      %v1936 = vpop.f32.mrf.mxu0
      %v1937 = vadd.f32 0.0, %v1936
      %v1938 = vpop.f32.mrf.mxu0
      %v1939 = vpop.f32.mrf.mxu0
      %1940 = vdwg.mxu0
      %v1941 = vadd.f32 %v1860, %v1935
      %v1942 = vadd.f32 %v1861, %v1937
      %v1943 = vld [vmem:[#allocation3] sm:$0x3f]
      %s1944 = scalar_lea.vmem %s7, 28
      %v1945 = vld [vmem:[%s1944] sm:$0xf]
      %v1947 = vcombine.high %v1943, %v1943
      %v1949 = vunpack.c.l.s4 1983009808
      %v1950 = vunpack.c.0.s8 %v1949
      %v1951 = vlaneseq
      %v1952 = vshrl.u32 %v1951, 7
      %v1953 = vsub.s32 %v1950, %v1952
      %v1954 = vrot.slane %v1943, %v1953
      %v1956 = vunpack.c.l.s4 1983009808
      %v1957 = vunpack.c.0.s8 %v1956
      %v1958 = vlaneseq
      %v1959 = vshrl.u32 %v1958, 7
      %v1960 = vsub.s32 %v1957, %v1959
      %v1961 = vrot.slane %v1947, %v1960
      %v1962 = vcombine.high %v1954, %v1954
      %1963 = vrot.lane.b32.xlu0 %v1954, 95
      %v1964 = vpop.permute.xlu0 %1963
      %1965 = vrot.lane.b32.xlu0 %v1962, 95
      %v1966 = vpop.permute.xlu0 %1965
      %1967 = vrot.lane.b32.xlu0 %v1961, 95
      %v1968 = vpop.permute.xlu0 %1967
      %v1969 = vsel %vm1175, %v1964, %v1966
      %v1970 = vsel %vm1175, %v1966, %v1968
      %v1972 = vsel %vm581, %v1945, 0
      %v1975 = vsel %vm585, %v1969, 0
      %v1978 = vsel %vm585, %v1970, 0
      %1980 = vmatprep.subr.bf16.mxu0 0
      %1981 = vmatpush1.bf16.msra.mxu0 0
      %1982 = vmatprep.subr.bf16.mxu0 0
      %1983 = vmatpush1.bf16.msra.mxu0 0
      %1984 = vmatprep.subr.bf16.mxu0 0
      %1985 = vmatpush1.bf16.msra.mxu0 0
      %1986 = vmatprep.subr.bf16.mxu0 0
      %1987 = vmatpush1.bf16.msra.mxu0 0
      %1988 = vmatprep.subr.bf16.mxu0 0
      %1989 = vmatpush1.bf16.msra.mxu0 0
      %1990 = vmatprep.subr.bf16.mxu0 0
      %1991 = vmatpush1.bf16.msra.mxu0 0
      %1992 = vmatprep.subr.bf16.mxu0 0
      %1993 = vmatpush1.bf16.msra.mxu0 0
      %1994 = vmatprep.subr.bf16.mxu0 %v1978
      %1995 = vmatpush1.bf16.msra.mxu0 %v1975
      %1996 = vmatprep.subr.bf16.mxu0 0
      %1997 = vmatpush2.bf16.msra.mxu0 0
      %1998 = vmatprep.subr.bf16.mxu0 0
      %1999 = vmatpush2.bf16.msra.mxu0 0
      %2000 = vmatprep.subr.bf16.mxu0 0
      %2001 = vmatpush2.bf16.msra.mxu0 0
      %2002 = vmatprep.subr.bf16.mxu0 0
      %2003 = vmatpush2.bf16.msra.mxu0 0
      %2004 = vmatprep.subr.bf16.mxu0 0
      %2005 = vmatpush2.bf16.msra.mxu0 0
      %2006 = vmatprep.subr.bf16.mxu0 0
      %2007 = vmatpush2.bf16.msra.mxu0 0
      %2008 = vmatprep.subr.bf16.mxu0 0
      %2009 = vmatpush2.bf16.msra.mxu0 0
      %2010 = vmatprep.subr.bf16.mxu0 0
      %2011 = vmatpush2.bf16.msra.mxu0 0
      %2012 = vmatprep.mubr.bf16.mxu0 0
      %2013 = vmatmul.mubr.bf16.gmra.mxu0 %v1972
      %v2014 = vpop.f32.mrf.mxu0
      %v2015 = vadd.f32 0.0, %v2014
      %v2016 = vpop.f32.mrf.mxu0
      %v2017 = vadd.f32 0.0, %v2016
      %v2018 = vpop.f32.mrf.mxu0
      %v2019 = vpop.f32.mrf.mxu0
      %2020 = vdwg.mxu0
      %v2021 = vadd.f32 %v1941, %v2015
      %v2022 = vadd.f32 %v1942, %v2017
      %v2023 = vld [vmem:[#allocation3] sm:$0x3f]
      %v2024 = vmul.bf16 %v2023, %v1235
      %s2025 = scalar_lea.vmem %s7, 32
      %v2026 = vld [vmem:[%s2025] sm:$0xf]
      %v2028 = vcombine.high %v2024, %v2024
      %v2030 = vunpack.c.l.s4 1983009808
      %v2031 = vunpack.c.0.s8 %v2030
      %v2032 = vlaneseq
      %v2033 = vshrl.u32 %v2032, 7
      %v2034 = vsub.s32 %v2031, %v2033
      %v2035 = vrot.slane %v2024, %v2034
      %v2037 = vunpack.c.l.s4 1983009808
      %v2038 = vunpack.c.0.s8 %v2037
      %v2039 = vlaneseq
      %v2040 = vshrl.u32 %v2039, 7
      %v2041 = vsub.s32 %v2038, %v2040
      %v2042 = vrot.slane %v2028, %v2041
      %v2043 = vcombine.high %v2035, %v2035
      %2044 = vrot.lane.b32.xlu0 %v2035, 94
      %v2045 = vpop.permute.xlu0 %2044
      %2046 = vrot.lane.b32.xlu0 %v2043, 94
      %v2047 = vpop.permute.xlu0 %2046
      %2048 = vrot.lane.b32.xlu0 %v2042, 94
      %v2049 = vpop.permute.xlu0 %2048
      %v2050 = vsel %vm1263, %v2045, %v2047
      %v2051 = vsel %vm1263, %v2047, %v2049
      %v2053 = vsel %vm581, %v2026, 0
      %v2056 = vsel %vm585, %v2050, 0
      %v2059 = vsel %vm585, %v2051, 0
      %2061 = vmatprep.subr.bf16.mxu0 0
      %2062 = vmatpush1.bf16.msra.mxu0 0
      %2063 = vmatprep.subr.bf16.mxu0 0
      %2064 = vmatpush1.bf16.msra.mxu0 0
      %2065 = vmatprep.subr.bf16.mxu0 0
      %2066 = vmatpush1.bf16.msra.mxu0 0
      %2067 = vmatprep.subr.bf16.mxu0 0
      %2068 = vmatpush1.bf16.msra.mxu0 0
      %2069 = vmatprep.subr.bf16.mxu0 0
      %2070 = vmatpush1.bf16.msra.mxu0 0
      %2071 = vmatprep.subr.bf16.mxu0 0
      %2072 = vmatpush1.bf16.msra.mxu0 0
      %2073 = vmatprep.subr.bf16.mxu0 0
      %2074 = vmatpush1.bf16.msra.mxu0 0
      %2075 = vmatprep.subr.bf16.mxu0 %v2059
      %2076 = vmatpush1.bf16.msra.mxu0 %v2056
      %2077 = vmatprep.subr.bf16.mxu0 0
      %2078 = vmatpush2.bf16.msra.mxu0 0
      %2079 = vmatprep.subr.bf16.mxu0 0
      %2080 = vmatpush2.bf16.msra.mxu0 0
      %2081 = vmatprep.subr.bf16.mxu0 0
      %2082 = vmatpush2.bf16.msra.mxu0 0
      %2083 = vmatprep.subr.bf16.mxu0 0
      %2084 = vmatpush2.bf16.msra.mxu0 0
      %2085 = vmatprep.subr.bf16.mxu0 0
      %2086 = vmatpush2.bf16.msra.mxu0 0
      %2087 = vmatprep.subr.bf16.mxu0 0
      %2088 = vmatpush2.bf16.msra.mxu0 0
      %2089 = vmatprep.subr.bf16.mxu0 0
      %2090 = vmatpush2.bf16.msra.mxu0 0
      %2091 = vmatprep.subr.bf16.mxu0 0
      %2092 = vmatpush2.bf16.msra.mxu0 0
      %2093 = vmatprep.mubr.bf16.mxu0 0
      %2094 = vmatmul.mubr.bf16.gmra.mxu0 %v2053
      %v2095 = vpop.f32.mrf.mxu0
      %v2096 = vadd.f32 0.0, %v2095
      %v2097 = vpop.f32.mrf.mxu0
      %v2098 = vadd.f32 0.0, %v2097
      %v2099 = vpop.f32.mrf.mxu0
      %v2100 = vpop.f32.mrf.mxu0
      %2101 = vdwg.mxu0
      %v2102 = vadd.f32 %v2021, %v2096
      %v2103 = vadd.f32 %v2022, %v2098
      %2105 = vset.pattern.permute.xlu0 0
      %2106 = vperm.xlu0 %2105, %v1348
      %v2107 = vpop.permute.xlu0 %2106
      %v2109 = vadd.f32 %v2102, %v2107
      %v2110 = vadd.f32 %v2103, %v2107
      %v2111 = vpack.c.bf16 %v2109, %v2109
      %v2112 = vpack.c.bf16 %v2110, %v2110
      %v2115 = vunpack.c.l.b16 %v2111
      %v2116 = vunpack.c.l.b16 %v2112
      %v2117 = vpack.c.b16 %v2116, %v2115
      %2119 = vst [vmem:[%s432] sm:$0xff] %v2117
      %p2120 = scmp.lt.s32.totalorder %s24, 1
      %s2121 = scalar_select %p2120, %s24, 1
      %s2122 = smul.addr %s2121, 2
      %s2123 = smul.addr %s2122, 4
      %s2124 = scalar_lea.vmem %s10, %s2123
      %p2125 = scmp.lt.s32.totalorder %s24, 1
      %s2126 = scalar_select %p2125, %s24, 1
      %s2127 = smul.addr %s2126, 2
      %s2128 = smul.addr %s2127, 4
      %s2129 = scalar_lea.vmem %s11, %s2128
      %p2130 = scmp.lt.s32.totalorder %s24, 1
      %s2131 = scalar_select %p2130, %s24, 1
      %s2132 = smul.addr %s2131, 8
      %s2133 = scalar_lea.vmem %s12, %s2132
      // Predicated region
      $region61: #{conv_residual_forward.2} parent=59 // pred_check
        %p2134 = pneg %p257
      $region62: #{conv_residual_forward.2} parent=59 // pred_check_branch
        %2136 = sbr.rel (%p2134) target = $region64
      $region63: #{conv_residual_forward.2} parent=59 // pred_region
        _
      $region64: #{conv_residual_forward.2} parent=59 // pred_fallthru
        _
      // Predicated region
      $region65: #{conv_residual_forward.2} parent=59 // pred_check
        %p2137 = pneg %p283
      $region66: #{conv_residual_forward.2} parent=59 // pred_check_branch
        %2139 = sbr.rel (%p2137) target = $region68
      $region67: #{conv_residual_forward.2} parent=59 // pred_region
        _
      $region68: #{conv_residual_forward.2} parent=59 // pred_fallthru
        _
      // Predicated region
      $region69: #{conv_residual_forward.2} parent=59 // pred_check
        %p2140 = pneg %p309
      $region70: #{conv_residual_forward.2} parent=59 // pred_check_branch
        %2142 = sbr.rel (%p2140) target = $region72
      $region71: #{conv_residual_forward.2} parent=59 // pred_region
        _
      $region72: #{conv_residual_forward.2} parent=59 // pred_fallthru
        _
    $region60: #{conv_residual_forward.2} parent=5 // pred_fallthru
      _
    %p2143 = scmp.le.s32.totalorder 2, %s19
    // Predicated region
    $region73: #{conv_residual_forward.2} parent=5 // pred_check
      %p2144 = pneg %p2143
    $region74: #{conv_residual_forward.2} parent=5 // pred_check_branch
      %2146 = sbr.rel (%p2144) target = $region76
    $region75: #{conv_residual_forward.2} parent=5 // pred_region
      %s2147 = ssub.s32 %s19, 2
      // Predicated region
      $region77: #{conv_residual_forward.2} parent=75 // pred_check
        %p2148 = pneg %p263
      $region78: #{conv_residual_forward.2} parent=75 // pred_check_branch
        %2150 = sbr.rel (%p2148) target = $region80
      $region79: #{conv_residual_forward.2} parent=75 // pred_region
        %p2151 = scmp.lt.s32.totalorder %s25, 1
        %s2152 = scalar_select %p2151, %s25, 1
        %s2153 = smul.addr %s2152, 2
        %s2154 = smul.addr %s2153, 4
        %s2155 = scalar_lea.vmem %s10, %s2154
      $region80: #{conv_residual_forward.2} parent=75 // pred_fallthru
        _
      // Predicated region
      $region81: #{conv_residual_forward.2} parent=75 // pred_check
        %p2156 = pneg %p289
      $region82: #{conv_residual_forward.2} parent=75 // pred_check_branch
        %2158 = sbr.rel (%p2156) target = $region84
      $region83: #{conv_residual_forward.2} parent=75 // pred_region
        %p2159 = scmp.lt.s32.totalorder %s25, 1
        %s2160 = scalar_select %p2159, %s25, 1
        %s2161 = smul.addr %s2160, 2
        %s2162 = smul.addr %s2161, 4
        %s2163 = scalar_lea.vmem %s11, %s2162
      $region84: #{conv_residual_forward.2} parent=75 // pred_fallthru
        _
      // Predicated region
      $region85: #{conv_residual_forward.2} parent=75 // pred_check
        %p2164 = pneg %p315
      $region86: #{conv_residual_forward.2} parent=75 // pred_check_branch
        %2166 = sbr.rel (%p2164) target = $region88
      $region87: #{conv_residual_forward.2} parent=75 // pred_region
        %p2167 = scmp.lt.s32.totalorder %s25, 1
        %s2168 = scalar_select %p2167, %s25, 1
        %s2169 = smul.addr %s2168, 8
        %s2170 = scalar_lea.vmem %s12, %s2169
      $region88: #{conv_residual_forward.2} parent=75 // pred_fallthru
        _
    $region76: #{conv_residual_forward.2} parent=5 // pred_fallthru
      _
  $region6: #{conv_residual_forward.2} parent=0 // loop_footer
    %s23 = sadd.s32 1, %s19
  $region7: #{conv_residual_forward.2} parent=0 // loop_footer_branch
    %18 = sbr.rel target = $region3
  $region8: #{conv_residual_forward.2} parent=0 // loop_exit
    _

</llo_original>
